<compile_context>
chip_gen: v7x
topology: tpu7x:2x2x1
jax: 0.10.0
libtpu: 0.0.40
codegen_flags: <defaults>
</compile_context>

<pallas_src>
import functools

import jax
import jax.numpy as jnp
from jax import lax
from jax.experimental import pallas as pl
from jax.experimental.pallas import tpu as pltpu

# torch.finfo(torch.float32).eps — default eps used by F.rms_norm for fp32 input
RMS_EPS = 1.1920928955078125e-07


def _rms_norm(v, eps=RMS_EPS):
    # normalize over the last dim:  v / sqrt(mean(v^2) + eps)
    ms = jnp.mean(v * v, axis=-1, keepdims=True)
    return v * lax.rsqrt(ms + eps)


def rotary_cos_sin(seq_len, dim, base=10000.0):
    """Exactly mirrors the PyTorch `Rotary.forward` tables (bfloat16 cache).

    Returns (cos, sin) with the module's broadcast shape (1, T, 1, dim//2),
    dtype bfloat16.  (The module's seq_len cache is stateful memoization and
    has no kernel equivalent; tables are built once per shape host-side.)
    """
    inv_freq = 1.0 / (base ** (jnp.arange(0, dim, 2, dtype=jnp.float32) / dim))
    t = jnp.arange(seq_len, dtype=jnp.float32)
    freqs = jnp.outer(t, inv_freq)                       # (T, dim//2)
    cos = jnp.cos(freqs).astype(jnp.bfloat16)
    sin = jnp.sin(freqs).astype(jnp.bfloat16)
    return cos[None, :, None, :], sin[None, :, None, :]


def block_kernel(x_ref, wqkv_ref, wo_ref, wfc_ref, wpr_ref,
                 cos_ref, sin_ref, o_ref, qkv_sc, attn_sc, *, n_head, head_dim):
    T, C = x_ref.shape[1], x_ref.shape[2]
    H, Dh = n_head, head_dim
    inv_sqrt_d = 1.0 / (Dh ** 0.5)

    x = x_ref[0]                                   # (T, C) f32

    # ---------------- attention branch ----------------
    h = _rms_norm(x)                               # pre-attn rms_norm (f32)

    # fused QKV: one bf16 MXU pass, f32 accumulation, parked in VMEM scratch
    qkv_sc[...] = jnp.dot(h.astype(jnp.bfloat16), wqkv_ref[...],
                          preferred_element_type=jnp.float32)    # (T, 3C)
    attn_sc[...] = jnp.zeros_like(attn_sc)                        # (T, C) f32

    def head_body(hh, carry):
        # lane-aligned per-head offsets (Dh is a multiple of 128 here)
        lo_q = pl.multiple_of(hh * Dh, Dh)
        lo_k = pl.multiple_of(C + hh * Dh, Dh)
        lo_v = pl.multiple_of(2 * C + hh * Dh, Dh)

        qh = _rms_norm(qkv_sc[:, pl.ds(lo_q, Dh)])                # (T, Dh) f32
        kh = _rms_norm(qkv_sc[:, pl.ds(lo_k, Dh)])
        vh = qkv_sc[:, pl.ds(lo_v, Dh)]

        cos = cos_ref[...]                         # (T, Dh) = [cos |  cos]
        sin = sin_ref[...]                         # (T, Dh) = [sin | -sin]

        # RoPE via XLU half-rotation (no MXU push, no rot-matrix operand):
        #   out = t*[cos|cos] + roll(t, Dh/2)*[sin|-sin]
        qh = qh * cos + pltpu.roll(qh, shift=Dh // 2, axis=1) * sin
        kh = kh * cos + pltpu.roll(kh, shift=Dh // 2, axis=1) * sin

        qh = qh * inv_sqrt_d                       # fold softmax scale into q

        # scores: (T, T) — bf16 MXU inputs, f32 accumulate
        s = lax.dot_general(qh.astype(jnp.bfloat16), kh.astype(jnp.bfloat16),
                            (((1,), (1,)), ((), ())),
                            preferred_element_type=jnp.float32)
        row = lax.broadcasted_iota(jnp.int32, (T, T), 0)
        col = lax.broadcasted_iota(jnp.int32, (T, T), 1)
        s = jnp.where(row >= col, s, -1e30)        # finite mask (NaN-safe)
        s = s - jnp.max(s, axis=-1, keepdims=True)
        p = jnp.exp(s)                             # f32 (v5e-safe elementwise)
        p = p * pl.reciprocal(jnp.sum(p, axis=-1, keepdims=True), approx=True)

        yh = jnp.dot(p.astype(jnp.bfloat16), vh.astype(jnp.bfloat16),
                     preferred_element_type=jnp.float32)          # (T, Dh)

        # c_proj folded into the head loop: lane-dense (T, C) accumulate,
        # no sub-128-lane masked stores.
        attn_sc[...] += jnp.dot(yh.astype(jnp.bfloat16),
                                wo_ref[pl.ds(lo_q, Dh), :],
                                preferred_element_type=jnp.float32)
        return carry

    lax.fori_loop(0, H, head_body, 0)

    x = x + attn_sc[...]                           # residual 1

    # ---------------- MLP branch ----------------
    h2 = _rms_norm(x)
    a = jnp.dot(h2.astype(jnp.bfloat16), wfc_ref[...],
                preferred_element_type=jnp.float32)               # (T, 4C)
    a = jnp.square(jnp.maximum(a, 0.0))                            # relu(x)^2
    m = jnp.dot(a.astype(jnp.bfloat16), wpr_ref[...],
                preferred_element_type=jnp.float32)               # (T, C)

    o_ref[0] = (x + m).astype(o_ref.dtype)         # residual 2


def _vmem_budget_bytes(frac=0.85, fallback=48 * 1024 * 1024):
    """~85% of per-core VMEM (128 MiB v5e/v6e, 64 MiB v7x); safe fallback."""
    try:
        cap = pltpu.get_tpu_info().vmem_capacity_bytes
        return int(cap * frac)
    except Exception:
        return fallback


def prepare_block_params(params, seq_len, n_head):
    """One-time parameter prep (weight fusion, bf16 casts, rotary tables).

    Done once outside the per-call path so no per-launch HBM pass / extra HLO.
    """
    C = params["wq"].shape[0]
    head_dim = C // n_head

    wqkv = jnp.concatenate([params["wq"], params["wk"], params["wv"]],
                           axis=1).astype(jnp.bfloat16)          # (C, 3C)

    # Rotary tables (PyTorch `Rotary` semantics incl. the bfloat16 cache),
    # pre-tiled lane-dense: cos_cat = [cos|cos], sin_signed = [sin|-sin]
    # so that RoPE is  t*cos_cat + roll(t, Dh/2)*sin_signed.
    cos4, sin4 = rotary_cos_sin(seq_len, head_dim)
    cos = cos4[0, :, 0, :].astype(jnp.float32)                   # (T, Dh/2)
    sin = sin4[0, :, 0, :].astype(jnp.float32)
    cos_cat = jnp.concatenate([cos, cos], axis=1)                # (T, Dh)
    sin_signed = jnp.concatenate([sin, -sin], axis=1)            # (T, Dh)

    return {
        "wqkv": wqkv,
        "wo": params["wo"].astype(jnp.bfloat16),
        "wfc": params["wfc"].astype(jnp.bfloat16),
        "wpr": params["wpr"].astype(jnp.bfloat16),
        "cos": cos_cat,
        "sin": sin_signed,
    }


def block_forward(x, prep, *, n_head):
    B, T, C = x.shape
    head_dim = C // n_head

    kernel = functools.partial(block_kernel, n_head=n_head, head_dim=head_dim)

    def const(shape):
        # grid-invariant operand (weights / tables): constant block index.
        # TODO(synk): for C >~ 1.5-2K, K-tile wqkv/wfc/wpr (inner grid axis or
        # pltpu.emit_pipeline) instead of holding the whole weights in VMEM.
        return pl.BlockSpec(shape, lambda b: (0,) * len(shape))

    return pl.pallas_call(
        kernel,
        out_shape=jax.ShapeDtypeStruct((B, T, C), x.dtype),
        grid=(B,),
        in_specs=[
            pl.BlockSpec((1, T, C), lambda b: (b, 0, 0)),        # x
            const((C, 3 * C)),                                    # wqkv (fused)
            const((C, C)),                                        # wo (c_proj)
            const((C, 4 * C)),                                    # wfc
            const((4 * C, C)),                                    # w mlp proj
            const((T, head_dim)),                                 # [cos|cos]
            const((T, head_dim)),                                 # [sin|-sin]
        ],
        out_specs=pl.BlockSpec((1, T, C), lambda b: (b, 0, 0)),
        scratch_shapes=[
            pltpu.VMEM((T, 3 * C), jnp.float32),                  # fused qkv
            pltpu.VMEM((T, C), jnp.float32),                      # attn accum
        ],
        compiler_params=pltpu.CompilerParams(
            dimension_semantics=("parallel",),
            vmem_limit_bytes=_vmem_budget_bytes()),
    )(x, prep["wqkv"], prep["wo"], prep["wfc"], prep["wpr"],
      prep["cos"], prep["sin"])


# -------------------- pure-JAX f32 reference for validation --------------------
def block_reference(x, params, *, n_head):
    B, T, C = x.shape
    head_dim = C // n_head
    d = head_dim // 2
    cos4, sin4 = rotary_cos_sin(T, head_dim)
    cos = cos4.astype(jnp.float32)
    sin = sin4.astype(jnp.float32)

    def rope(t):
        t1, t2 = t[..., :d], t[..., d:]
        return jnp.concatenate([t1 * cos + t2 * sin, -t1 * sin + t2 * cos], -1)

    h = _rms_norm(x)
    q = (h @ params["wq"]).reshape(B, T, n_head, head_dim)
    k = (h @ params["wk"]).reshape(B, T, n_head, head_dim)
    v = (h @ params["wv"]).reshape(B, T, n_head, head_dim)
    q, k = rope(_rms_norm(q)), rope(_rms_norm(k))
    scores = jnp.einsum('bthd,bshd->bhts', q, k) / jnp.sqrt(jnp.float32(head_dim))
    mask = jnp.tril(jnp.ones((T, T), bool))
    scores = jnp.where(mask[None, None], scores, -jnp.inf)
    p = jax.nn.softmax(scores, axis=-1)
    y = jnp.einsum('bhts,bshd->bthd', p, v).reshape(B, T, C) @ params["wo"]
    x = x + y
    h2 = _rms_norm(x)
    m = jnp.square(jnp.maximum(h2 @ params["wfc"], 0.0)) @ params["wpr"]
    return x + m


if __name__ == "__main__":
    # head_dim = 128 → lane-aligned per-head tiles (see perf notes above)
    B, T, C, n_head = 2, 128, 256, 2

    key = jax.random.PRNGKey(0)
    kx, kq, kk, kv, ko, kf, kp = jax.random.split(key, 7)

    x = jax.random.normal(kx, (B, T, C), dtype=jnp.float32)

    # NOTE: the PyTorch module zero-initializes both c_proj weights (training
    # trick); small deterministic random weights are used here so the kernel
    # compute is actually exercised. Shapes match the module.
    s = 0.02
    params = {
        "wq":  s * jax.random.normal(kq, (C, C), dtype=jnp.float32),
        "wk":  s * jax.random.normal(kk, (C, C), dtype=jnp.float32),
        "wv":  s * jax.random.normal(kv, (C, C), dtype=jnp.float32),
        "wo":  s * jax.random.normal(ko, (C, C), dtype=jnp.float32),
        "wfc": s * jax.random.normal(kf, (C, 4 * C), dtype=jnp.float32),
        "wpr": s * jax.random.normal(kp, (4 * C, C), dtype=jnp.float32),
    }

    prep = jax.block_until_ready(prepare_block_params(params, T, n_head))
    fwd = jax.jit(functools.partial(block_forward, n_head=n_head))

    out = jax.block_until_ready(fwd(x, prep))
    ref = block_reference(x, params, n_head=n_head)

    assert out.shape == (B, T, C) and out.dtype == jnp.float32
    max_err = float(jnp.max(jnp.abs(out - ref)))
    # bf16 MXU inputs + approx reciprocal vs full-f32 reference → loose-ish tol
    assert jnp.allclose(out, ref, atol=2e-2, rtol=2e-2), \
        f"mismatch vs reference (max abs err {max_err})"

    print("KERNEL_OK")
</pallas_src>

<mosaic_0001>
module attributes {stable_mosaic.version = 11 : i64} {
  func.func @block_kernel(%arg0: i32, %arg1: memref<1x128x256xf32, #tpu.memory_space<vmem>>, %arg2: memref<256x768xbf16, #tpu.memory_space<vmem>>, %arg3: memref<256x256xbf16, #tpu.memory_space<vmem>>, %arg4: memref<256x1024xbf16, #tpu.memory_space<vmem>>, %arg5: memref<1024x256xbf16, #tpu.memory_space<vmem>>, %arg6: memref<128x128xf32, #tpu.memory_space<vmem>>, %arg7: memref<128x128xf32, #tpu.memory_space<vmem>>, %arg8: memref<1x128x256xf32, #tpu.memory_space<vmem>>, %arg9: memref<128x768xf32, #tpu.memory_space<vmem>>, %arg10: memref<128x256xf32, #tpu.memory_space<vmem>>) attributes {dimension_semantics = [#tpu.dimension_semantics<parallel>], iteration_bounds = array<i64: 2>, scalar_prefetch = 0 : i64, scratch_operands = 2 : i64, tpu.core_type = #tpu.core_type<tc>, window_params = [{transform_indices = @transform_0, window_bounds = array<i64: 1, 128, 256>}, {pipeline_mode = #tpu.pipeline_mode<synchronous>, transform_indices = @transform_1, window_bounds = array<i64: 256, 768>}, {pipeline_mode = #tpu.pipeline_mode<synchronous>, transform_indices = @transform_2, window_bounds = array<i64: 256, 256>}, {pipeline_mode = #tpu.pipeline_mode<synchronous>, transform_indices = @transform_3, window_bounds = array<i64: 256, 1024>}, {pipeline_mode = #tpu.pipeline_mode<synchronous>, transform_indices = @transform_4, window_bounds = array<i64: 1024, 256>}, {pipeline_mode = #tpu.pipeline_mode<synchronous>, transform_indices = @transform_5, window_bounds = array<i64: 128, 128>}, {pipeline_mode = #tpu.pipeline_mode<synchronous>, transform_indices = @transform_6, window_bounds = array<i64: 128, 128>}, {transform_indices = @transform_7, window_bounds = array<i64: 1, 128, 256>}]} {
    %c0 = arith.constant 0 : index
    %c0_0 = arith.constant 0 : index
    %c0_1 = arith.constant 0 : index
    %0 = vector.load %arg1[%c0, %c0_0, %c0_1] : memref<1x128x256xf32, #tpu.memory_space<vmem>>, vector<1x128x256xf32>
    %1 = vector.shape_cast %0 : vector<1x128x256xf32> to vector<128x256xf32>
    %2 = arith.mulf %1, %1 : vector<128x256xf32>
    %cst = arith.constant dense<0.000000e+00> : vector<128xf32>
    %3 = vector.multi_reduction <add>, %2, %cst [1] : vector<128x256xf32> to vector<128xf32>
    %4 = vector.shape_cast %3 : vector<128xf32> to vector<128x1xf32>
    %cst_2 = arith.constant 2.560000e+02 : f32
    %5 = vector.broadcast %cst_2 : f32 to vector<128x1xf32>
    %6 = arith.divf %4, %5 : vector<128x1xf32>
    %cst_3 = arith.constant 1.1920929E-7 : f32
    %7 = vector.broadcast %cst_3 : f32 to vector<128x1xf32>
    %8 = arith.addf %6, %7 : vector<128x1xf32>
    %9 = math.rsqrt %8 : vector<128x1xf32>
    %10 = vector.broadcast %9 : vector<128x1xf32> to vector<128x256xf32>
    %11 = arith.mulf %1, %10 : vector<128x256xf32>
    %12 = arith.truncf %11 : vector<128x256xf32> to vector<128x256xbf16>
    %c0_4 = arith.constant 0 : index
    %c0_5 = arith.constant 0 : index
    %13 = vector.load %arg2[%c0_4, %c0_5] : memref<256x768xbf16, #tpu.memory_space<vmem>>, vector<256x768xbf16>
    %cst_6 = arith.constant dense<0.000000e+00> : vector<128x768xf32>
    %14 = tpu.matmul %12, %13, %cst_6 {dimension_numbers = #tpu.dot_dimension_numbers<[1], [0], [0], [1], [0, 0, 1, 1], [], []>} : vector<128x256xbf16>, vector<256x768xbf16>, vector<128x768xf32> -> vector<128x768xf32>
    %c0_7 = arith.constant 0 : index
    %c0_8 = arith.constant 0 : index
    %15 = vector.load %arg9[%c0_7, %c0_8] : memref<128x768xf32, #tpu.memory_space<vmem>>, vector<128x768xf32>
    tpu.vector_store %arg9[%c0_7, %c0_8], %14 {strides = array<i32>} : memref<128x768xf32, #tpu.memory_space<vmem>>, vector<128x768xf32>,
    %cst_9 = arith.constant 0.000000e+00 : f32
    %16 = vector.broadcast %cst_9 : f32 to vector<128x256xf32>
    %c0_10 = arith.constant 0 : index
    %c0_11 = arith.constant 0 : index
    %17 = vector.load %arg10[%c0_10, %c0_11] : memref<128x256xf32, #tpu.memory_space<vmem>>, vector<128x256xf32>
    tpu.vector_store %arg10[%c0_10, %c0_11], %16 {strides = array<i32>} : memref<128x256xf32, #tpu.memory_space<vmem>>, vector<128x256xf32>,
    %c0_i32 = arith.constant 0 : i32
    %c2_i32 = arith.constant 2 : i32
    %18 = arith.addi %c0_i32, %c2_i32 : i32
    %c1_i32 = arith.constant 1 : i32
    scf.for %arg11 = %c0_i32 to %18 step %c1_i32  : i32 {
      %c128_i32 = arith.constant 128 : i32
      %44 = arith.muli %arg11, %c128_i32 : i32
      %45 = tpu.assume_multiple %44, 128 : i32
      %c128_i32_28 = arith.constant 128 : i32
      %46 = arith.muli %arg11, %c128_i32_28 : i32
      %c256_i32 = arith.constant 256 : i32
      %47 = arith.addi %c256_i32, %46 : i32
      %48 = tpu.assume_multiple %47, 128 : i32
      %c128_i32_29 = arith.constant 128 : i32
      %49 = arith.muli %arg11, %c128_i32_29 : i32
      %c512_i32 = arith.constant 512 : i32
      %50 = arith.addi %c512_i32, %49 : i32
      %51 = tpu.assume_multiple %50, 128 : i32
      %c0_30 = arith.constant 0 : index
      %52 = arith.index_cast %45 : i32 to index
      %53 = vector.load %arg9[%c0_30, %52] : memref<128x768xf32, #tpu.memory_space<vmem>>, vector<128x128xf32>
      %54 = arith.mulf %53, %53 : vector<128x128xf32>
      %cst_31 = arith.constant dense<0.000000e+00> : vector<128xf32>
      %55 = vector.multi_reduction <add>, %54, %cst_31 [1] : vector<128x128xf32> to vector<128xf32>
      %56 = vector.shape_cast %55 : vector<128xf32> to vector<128x1xf32>
      %cst_32 = arith.constant 1.280000e+02 : f32
      %57 = vector.broadcast %cst_32 : f32 to vector<128x1xf32>
      %58 = arith.divf %56, %57 : vector<128x1xf32>
      %cst_33 = arith.constant 1.1920929E-7 : f32
      %59 = vector.broadcast %cst_33 : f32 to vector<128x1xf32>
      %60 = arith.addf %58, %59 : vector<128x1xf32>
      %61 = math.rsqrt %60 : vector<128x1xf32>
      %62 = vector.broadcast %61 : vector<128x1xf32> to vector<128x128xf32>
      %63 = arith.mulf %53, %62 : vector<128x128xf32>
      %c0_34 = arith.constant 0 : index
      %64 = arith.index_cast %48 : i32 to index
      %65 = vector.load %arg9[%c0_34, %64] : memref<128x768xf32, #tpu.memory_space<vmem>>, vector<128x128xf32>
      %66 = arith.mulf %65, %65 : vector<128x128xf32>
      %cst_35 = arith.constant dense<0.000000e+00> : vector<128xf32>
      %67 = vector.multi_reduction <add>, %66, %cst_35 [1] : vector<128x128xf32> to vector<128xf32>
      %68 = vector.shape_cast %67 : vector<128xf32> to vector<128x1xf32>
      %cst_36 = arith.constant 1.280000e+02 : f32
      %69 = vector.broadcast %cst_36 : f32 to vector<128x1xf32>
      %70 = arith.divf %68, %69 : vector<128x1xf32>
      %cst_37 = arith.constant 1.1920929E-7 : f32
      %71 = vector.broadcast %cst_37 : f32 to vector<128x1xf32>
      %72 = arith.addf %70, %71 : vector<128x1xf32>
      %73 = math.rsqrt %72 : vector<128x1xf32>
      %74 = vector.broadcast %73 : vector<128x1xf32> to vector<128x128xf32>
      %75 = arith.mulf %65, %74 : vector<128x128xf32>
      %c0_38 = arith.constant 0 : index
      %76 = arith.index_cast %51 : i32 to index
      %77 = vector.load %arg9[%c0_38, %76] : memref<128x768xf32, #tpu.memory_space<vmem>>, vector<128x128xf32>
      %c0_39 = arith.constant 0 : index
      %c0_40 = arith.constant 0 : index
      %78 = vector.load %arg6[%c0_39, %c0_40] : memref<128x128xf32, #tpu.memory_space<vmem>>, vector<128x128xf32>
      %c0_41 = arith.constant 0 : index
      %c0_42 = arith.constant 0 : index
      %79 = vector.load %arg7[%c0_41, %c0_42] : memref<128x128xf32, #tpu.memory_space<vmem>>, vector<128x128xf32>
      %80 = arith.mulf %63, %78 : vector<128x128xf32>
      %c64_i32 = arith.constant 64 : i32
      %81 = tpu.dynamic_rotate %63 by %c64_i32 dim 1 : vector<128x128xf32>, i32 -> vector<128x128xf32>
      %82 = arith.mulf %81, %79 : vector<128x128xf32>
      %83 = arith.addf %80, %82 : vector<128x128xf32>
      %84 = arith.mulf %75, %78 : vector<128x128xf32>
      %c64_i32_43 = arith.constant 64 : i32
      %85 = tpu.dynamic_rotate %75 by %c64_i32_43 dim 1 : vector<128x128xf32>, i32 -> vector<128x128xf32>
      %86 = arith.mulf %85, %79 : vector<128x128xf32>
      %87 = arith.addf %84, %86 : vector<128x128xf32>
      %cst_44 = arith.constant 0.0883883461 : f32
      %88 = vector.broadcast %cst_44 : f32 to vector<128x128xf32>
      %89 = arith.mulf %83, %88 : vector<128x128xf32>
      %90 = arith.truncf %89 : vector<128x128xf32> to vector<128x128xbf16>
      %91 = arith.truncf %87 : vector<128x128xf32> to vector<128x128xbf16>
      %cst_45 = arith.constant dense<0.000000e+00> : vector<128x128xf32>
      %92 = tpu.matmul %90, %91, %cst_45 {dimension_numbers = #tpu.dot_dimension_numbers<[1], [1], [0], [0], [0, 0, 1, 0], [], []>} : vector<128x128xbf16>, vector<128x128xbf16>, vector<128x128xf32> -> vector<128x128xf32>
      %93 = tpu.iota {dimensions = array<i32: 0>} : vector<128x128xi32>
      %94 = tpu.iota {dimensions = array<i32: 1>} : vector<128x128xi32>
      %95 = arith.cmpi sge, %93, %94 : vector<128x128xi32>
      %cst_46 = arith.constant -1.000000e+30 : f32
      %96 = vector.broadcast %cst_46 : f32 to vector<128x128xf32>
      %97 = arith.select %95, %92, %96 : vector<128x128xi1>, vector<128x128xf32>
      %cst_47 = arith.constant dense<0xFF800000> : vector<128xf32>
      %98 = vector.multi_reduction <maximumf>, %97, %cst_47 [1] : vector<128x128xf32> to vector<128xf32>
      %99 = vector.shape_cast %98 : vector<128xf32> to vector<128x1xf32>
      %100 = vector.broadcast %99 : vector<128x1xf32> to vector<128x128xf32>
      %101 = arith.subf %97, %100 : vector<128x128xf32>
      %102 = math.exp %101 : vector<128x128xf32>
      %cst_48 = arith.constant dense<0.000000e+00> : vector<128xf32>
      %103 = vector.multi_reduction <add>, %102, %cst_48 [1] : vector<128x128xf32> to vector<128xf32>
      %104 = vector.shape_cast %103 : vector<128xf32> to vector<128x1xf32>
      %105 = tpu.reciprocal %104 {approx = true} : vector<128x1xf32> -> vector<128x1xf32>
      %106 = vector.broadcast %105 : vector<128x1xf32> to vector<128x128xf32>
      %107 = arith.mulf %102, %106 : vector<128x128xf32>
      %108 = arith.truncf %107 : vector<128x128xf32> to vector<128x128xbf16>
      %109 = arith.truncf %77 : vector<128x128xf32> to vector<128x128xbf16>
      %cst_49 = arith.constant dense<0.000000e+00> : vector<128x128xf32>
      %110 = tpu.matmul %108, %109, %cst_49 {dimension_numbers = #tpu.dot_dimension_numbers<[1], [0], [0], [1], [0, 0, 1, 1], [], []>} : vector<128x128xbf16>, vector<128x128xbf16>, vector<128x128xf32> -> vector<128x128xf32>
      %c0_50 = arith.constant 0 : index
      %c0_51 = arith.constant 0 : index
      %111 = vector.load %arg10[%c0_50, %c0_51] : memref<128x256xf32, #tpu.memory_space<vmem>>, vector<128x256xf32>
      %112 = arith.truncf %110 : vector<128x128xf32> to vector<128x128xbf16>
      %113 = arith.index_cast %45 : i32 to index
      %c0_52 = arith.constant 0 : index
      %114 = vector.load %arg3[%113, %c0_52] : memref<256x256xbf16, #tpu.memory_space<vmem>>, vector<128x256xbf16>
      %cst_53 = arith.constant dense<0.000000e+00> : vector<128x256xf32>
      %115 = tpu.matmul %112, %114, %cst_53 {dimension_numbers = #tpu.dot_dimension_numbers<[1], [0], [0], [1], [0, 0, 1, 1], [], []>} : vector<128x128xbf16>, vector<128x256xbf16>, vector<128x256xf32> -> vector<128x256xf32>
      %116 = arith.addf %111, %115 : vector<128x256xf32>
      %c0_54 = arith.constant 0 : index
      %c0_55 = arith.constant 0 : index
      %117 = vector.load %arg10[%c0_54, %c0_55] : memref<128x256xf32, #tpu.memory_space<vmem>>, vector<128x256xf32>
      tpu.vector_store %arg10[%c0_54, %c0_55], %116 {strides = array<i32>} : memref<128x256xf32, #tpu.memory_space<vmem>>, vector<128x256xf32>,
    }
    %c2_i32_12 = arith.constant 2 : i32
    %c0_13 = arith.constant 0 : index
    %c0_14 = arith.constant 0 : index
    %19 = vector.load %arg10[%c0_13, %c0_14] : memref<128x256xf32, #tpu.memory_space<vmem>>, vector<128x256xf32>
    %20 = arith.addf %1, %19 : vector<128x256xf32>
    %21 = arith.mulf %20, %20 : vector<128x256xf32>
    %cst_15 = arith.constant dense<0.000000e+00> : vector<128xf32>
    %22 = vector.multi_reduction <add>, %21, %cst_15 [1] : vector<128x256xf32> to vector<128xf32>
    %23 = vector.shape_cast %22 : vector<128xf32> to vector<128x1xf32>
    %cst_16 = arith.constant 2.560000e+02 : f32
    %24 = vector.broadcast %cst_16 : f32 to vector<128x1xf32>
    %25 = arith.divf %23, %24 : vector<128x1xf32>
    %cst_17 = arith.constant 1.1920929E-7 : f32
    %26 = vector.broadcast %cst_17 : f32 to vector<128x1xf32>
    %27 = arith.addf %25, %26 : vector<128x1xf32>
    %28 = math.rsqrt %27 : vector<128x1xf32>
    %29 = vector.broadcast %28 : vector<128x1xf32> to vector<128x256xf32>
    %30 = arith.mulf %20, %29 : vector<128x256xf32>
    %31 = arith.truncf %30 : vector<128x256xf32> to vector<128x256xbf16>
    %c0_18 = arith.constant 0 : index
    %c0_19 = arith.constant 0 : index
    %32 = vector.load %arg4[%c0_18, %c0_19] : memref<256x1024xbf16, #tpu.memory_space<vmem>>, vector<256x1024xbf16>
    %cst_20 = arith.constant dense<0.000000e+00> : vector<128x1024xf32>
    %33 = tpu.matmul %31, %32, %cst_20 {dimension_numbers = #tpu.dot_dimension_numbers<[1], [0], [0], [1], [0, 0, 1, 1], [], []>} : vector<128x256xbf16>, vector<256x1024xbf16>, vector<128x1024xf32> -> vector<128x1024xf32>
    %cst_21 = arith.constant 0.000000e+00 : f32
    %34 = vector.broadcast %cst_21 : f32 to vector<128x1024xf32>
    %35 = arith.maximumf %33, %34 : vector<128x1024xf32>
    %36 = arith.mulf %35, %35 : vector<128x1024xf32>
    %37 = arith.truncf %36 : vector<128x1024xf32> to vector<128x1024xbf16>
    %c0_22 = arith.constant 0 : index
    %c0_23 = arith.constant 0 : index
    %38 = vector.load %arg5[%c0_22, %c0_23] : memref<1024x256xbf16, #tpu.memory_space<vmem>>, vector<1024x256xbf16>
    %cst_24 = arith.constant dense<0.000000e+00> : vector<128x256xf32>
    %39 = tpu.matmul %37, %38, %cst_24 {dimension_numbers = #tpu.dot_dimension_numbers<[1], [0], [0], [1], [0, 0, 1, 1], [], []>} : vector<128x1024xbf16>, vector<1024x256xbf16>, vector<128x256xf32> -> vector<128x256xf32>
    %40 = arith.addf %20, %39 : vector<128x256xf32>
    %c0_25 = arith.constant 0 : index
    %c0_26 = arith.constant 0 : index
    %c0_27 = arith.constant 0 : index
    %41 = vector.load %arg8[%c0_25, %c0_26, %c0_27] : memref<1x128x256xf32, #tpu.memory_space<vmem>>, vector<1x128x256xf32>
    %42 = vector.shape_cast %41 : vector<1x128x256xf32> to vector<128x256xf32>
    %43 = vector.shape_cast %40 : vector<128x256xf32> to vector<1x128x256xf32>
    tpu.vector_store %arg8[%c0_25, %c0_26, %c0_27], %43 {strides = array<i32>} : memref<1x128x256xf32, #tpu.memory_space<vmem>>, vector<1x128x256xf32>,
    return
  }
  func.func @transform_0(%arg0: i32) -> (i32, i32, i32) {
    %c0_i32 = arith.constant 0 : i32
    %c0_i32_0 = arith.constant 0 : i32
    %c0_i32_1 = arith.constant 0 : i32
    return %arg0, %c0_i32, %c0_i32_0 : i32, i32, i32
  }
  func.func @transform_1(%arg0: i32) -> (i32, i32) {
    %c0_i32 = arith.constant 0 : i32
    %c0_i32_0 = arith.constant 0 : i32
    %c0_i32_1 = arith.constant 0 : i32
    return %c0_i32, %c0_i32_0 : i32, i32
  }
  func.func @transform_2(%arg0: i32) -> (i32, i32) {
    %c0_i32 = arith.constant 0 : i32
    %c0_i32_0 = arith.constant 0 : i32
    %c0_i32_1 = arith.constant 0 : i32
    return %c0_i32, %c0_i32_0 : i32, i32
  }
  func.func @transform_3(%arg0: i32) -> (i32, i32) {
    %c0_i32 = arith.constant 0 : i32
    %c0_i32_0 = arith.constant 0 : i32
    %c0_i32_1 = arith.constant 0 : i32
    return %c0_i32, %c0_i32_0 : i32, i32
  }
  func.func @transform_4(%arg0: i32) -> (i32, i32) {
    %c0_i32 = arith.constant 0 : i32
    %c0_i32_0 = arith.constant 0 : i32
    %c0_i32_1 = arith.constant 0 : i32
    return %c0_i32, %c0_i32_0 : i32, i32
  }
  func.func @transform_5(%arg0: i32) -> (i32, i32) {
    %c0_i32 = arith.constant 0 : i32
    %c0_i32_0 = arith.constant 0 : i32
    %c0_i32_1 = arith.constant 0 : i32
    return %c0_i32, %c0_i32_0 : i32, i32
  }
  func.func @transform_6(%arg0: i32) -> (i32, i32) {
    %c0_i32 = arith.constant 0 : i32
    %c0_i32_0 = arith.constant 0 : i32
    %c0_i32_1 = arith.constant 0 : i32
    return %c0_i32, %c0_i32_0 : i32, i32
  }
  func.func @transform_7(%arg0: i32) -> (i32, i32, i32) {
    %c0_i32 = arith.constant 0 : i32
    %c0_i32_0 = arith.constant 0 : i32
    %c0_i32_1 = arith.constant 0 : i32
    return %arg0, %c0_i32, %c0_i32_0 : i32, i32, i32
  }
}

</mosaic_0001>

<llo_original>
// kernel: block_forward.1
$region0: #{block_forward.1}
  #allocation0 [shape = 'u32[]', space=smem, size = 0x4, offset = 0x4, fixed_abs, tag = 'smem constant byte address 0x4 - core index']
  #allocation1 [shape = 'u32[144,128]{1,0:T(1,128)}', space=vmem, size = 0x12000, scoped, tag = 'internal scratch']
  #allocation2 [shape = 'f32[128,768]{1,0:T(8,128)}', space=vmem, size = 0x60000, scoped, tag = 'scratch operand']
  #allocation3 [shape = 'f32[128,256]{1,0:T(8,128)}', space=vmem, size = 0x20000, scoped, tag = 'scratch operand']
  %s0 = inlined_call_operand.hbm [shape: f32[2,128,256], index: 0, kind: input, shape index: {}]
  %s1 = inlined_call_operand.hbm [shape: bf16[256,768], index: 1, kind: input, shape index: {}]
  %s2 = inlined_call_operand.hbm [shape: bf16[256,256], index: 2, kind: input, shape index: {}]
  %s3 = inlined_call_operand.hbm [shape: bf16[256,1024], index: 3, kind: input, shape index: {}]
  %s4 = inlined_call_operand.hbm [shape: bf16[1024,256], index: 4, kind: input, shape index: {}]
  %s5 = inlined_call_operand.hbm [shape: f32[128,128], index: 5, kind: input, shape index: {}]
  %s6 = inlined_call_operand.hbm [shape: f32[128,128], index: 6, kind: input, shape index: {}]
  %s7 = inlined_call_operand.hbm [shape: f32[2,128,256], index: 7, kind: output, shape index: {}]
  %s8 = sld [smem:[#allocation0]]
  $region96: #{block_forward.1} parent=0
    _
  %s10 = ssub.s32 1, %s8
  %s11 = scalar_select 0, %s10, %s8
  $region1: #{block_forward.1} parent=0
    #allocation4 [shape = 'u8[262144]{0}', space=vmem, size = 0x40000, scoped, tag = 'input window, operand 0']
    #allocation5 [shape = 's32[2]{0}', space=sflag, size = 0x8, scoped, tag = 'scoped memory for block_forward.1']
    #allocation6 [shape = 's32[2]{0}', space=sflag, size = 0x8, scoped, tag = 'scoped memory for block_forward.1']
    #allocation7 [shape = 'u8[393216]{0}', space=vmem, size = 0x60000, scoped, tag = 'input window, operand 1, single buffered']
    #allocation8 [shape = 's32[1]{0}', space=sflag, size = 0x4, scoped, tag = 'scoped memory for block_forward.1']
    #allocation9 [shape = 'u8[131072]{0}', space=vmem, size = 0x20000, scoped, tag = 'input window, operand 2, single buffered']
    #allocation10 [shape = 'u8[524288]{0}', space=vmem, size = 0x80000, scoped, tag = 'input window, operand 3, single buffered']
    #allocation11 [shape = 's32[1]{0}', space=sflag, size = 0x4, scoped, tag = 'scoped memory for block_forward.1']
    #allocation12 [shape = 'u8[524288]{0}', space=vmem, size = 0x80000, scoped, tag = 'input window, operand 4, single buffered']
    #allocation13 [shape = 'u8[65536]{0}', space=vmem, size = 0x10000, scoped, tag = 'input window, operand 5, single buffered']
    #allocation14 [shape = 's32[1]{0}', space=sflag, size = 0x4, scoped, tag = 'scoped memory for block_forward.1']
    #allocation15 [shape = 'u8[65536]{0}', space=vmem, size = 0x10000, scoped, tag = 'input window, operand 6, single buffered']
    #allocation16 [shape = 'u8[262144]{0}', space=vmem, size = 0x40000, scoped, tag = 'output window, operand 0']
    %12 = vsyncpa [#allocation5], 0
    %s13 = scalar_lea.sflag [#allocation5], 1
    %14 = vsyncpa %s13, 0
    %15 = vsyncpa [#allocation8], 0
    %16 = vsyncpa [#allocation11], 0
    %17 = vsyncpa [#allocation14], 0
    %18 = vsyncpa [#allocation6], 0
    %s19 = scalar_lea.sflag [#allocation6], 1
    %20 = vsyncpa %s19, 0
    loop: start=0, step=1, limit=4
    $region2: #{block_forward.1} parent=1 // loop_pre_header
      _
    $region3: #{block_forward.1} parent=1 // loop_header
      %s22 = sphi 0, %s26
      %p23 = scmp.ge.s32.totalorder %s22, 4
      %s32 = sphi 0, %s34
      %s35 = sphi 0, %s32
      %s36 = sphi 0, %s35
      %s52 = sphi 0, %s36
      %s56 = sphi 0, %s56
      %s58 = sphi 0, %s56
      %s59 = sphi 0, %s58
      %s73 = sphi 0, %s59
      %s77 = sphi 0, %s77
      %s79 = sphi 0, %s77
      %s80 = sphi 0, %s79
      %s94 = sphi 0, %s80
      %s98 = sphi 0, %s98
      %s100 = sphi 0, %s98
      %s101 = sphi 0, %s100
      %s115 = sphi 0, %s101
      %s119 = sphi 0, %s119
      %s121 = sphi 0, %s119
      %s122 = sphi 0, %s121
      %s136 = sphi 0, %s122
      %s140 = sphi 0, %s140
      %s142 = sphi 0, %s140
      %s143 = sphi 0, %s142
      %s157 = sphi 0, %s143
      %s161 = sphi 0, %s161
      %s163 = sphi 0, %s161
      %s164 = sphi 0, %s163
      %s178 = sphi 0, %s164
      %s184 = sphi 0, %s186
      %s187 = sphi 0, %s184
      %s188 = sphi 0, %s187
      %s204 = sphi 0, %s188
    $region4: #{block_forward.1} parent=1 // loop_header_branch
      %25 = sbr.rel (%p23) target = $region8
    $region5: #{block_forward.1} parent=1 // loop_body
      %s27 = ssub.s32 %s22, 1
      %s28 = ssub.s32 %s22, 2
      %s29 = sadd.s32 %s22, 1
      %s30 = ssub.s32 %s22, %s29
      %p31 = scmp.eq.s32.totalorder %s30, 0
      %s33 = sadd.s32 %s32, 1
      %s34 = scalar_select %p31, %s32, %s33
      %p37 = pneg %p31
      %p38 = scmp.eq.s32.totalorder %s22, 1
      %p39 = por %p37, %p38
      %p40 = scmp.ne.s32.totalorder %s32, %s35
      %p41 = scmp.eq.s32.totalorder %s22, 0
      %p42 = por %p40, %p41
      %p43 = scmp.ne.s32.totalorder %s32, %s35
      %p44 = scmp.eq.s32.totalorder %s27, 1
      %p45 = por %p43, %p44
      %p46 = scmp.ne.s32.totalorder %s35, %s36
      %p47 = scmp.eq.s32.totalorder %s27, 0
      %p48 = por %p46, %p47
      %p49 = scmp.ne.s32.totalorder %s35, %s36
      %p50 = scmp.eq.s32.totalorder %s28, 1
      %p51 = por %p49, %p50
      %p53 = scmp.ne.s32.totalorder %s36, %s52
      %p54 = scmp.eq.s32.totalorder %s28, 0
      %p55 = por %p53, %p54
      %s57 = sadd.s32 %s56, 1
      %p60 = scmp.eq.s32.totalorder %s22, 1
      %p61 = scmp.ne.s32.totalorder %s56, %s58
      %p62 = scmp.eq.s32.totalorder %s22, 0
      %p63 = por %p61, %p62
      %p64 = scmp.ne.s32.totalorder %s56, %s58
      %p65 = scmp.eq.s32.totalorder %s27, 1
      %p66 = por %p64, %p65
      %p67 = scmp.ne.s32.totalorder %s58, %s59
      %p68 = scmp.eq.s32.totalorder %s27, 0
      %p69 = por %p67, %p68
      %p70 = scmp.ne.s32.totalorder %s58, %s59
      %p71 = scmp.eq.s32.totalorder %s28, 1
      %p72 = por %p70, %p71
      %p74 = scmp.ne.s32.totalorder %s59, %s73
      %p75 = scmp.eq.s32.totalorder %s28, 0
      %p76 = por %p74, %p75
      %s78 = sadd.s32 %s77, 1
      %p81 = scmp.eq.s32.totalorder %s22, 1
      %p82 = scmp.ne.s32.totalorder %s77, %s79
      %p83 = scmp.eq.s32.totalorder %s22, 0
      %p84 = por %p82, %p83
      %p85 = scmp.ne.s32.totalorder %s77, %s79
      %p86 = scmp.eq.s32.totalorder %s27, 1
      %p87 = por %p85, %p86
      %p88 = scmp.ne.s32.totalorder %s79, %s80
      %p89 = scmp.eq.s32.totalorder %s27, 0
      %p90 = por %p88, %p89
      %p91 = scmp.ne.s32.totalorder %s79, %s80
      %p92 = scmp.eq.s32.totalorder %s28, 1
      %p93 = por %p91, %p92
      %p95 = scmp.ne.s32.totalorder %s80, %s94
      %p96 = scmp.eq.s32.totalorder %s28, 0
      %p97 = por %p95, %p96
      %s99 = sadd.s32 %s98, 1
      %p102 = scmp.eq.s32.totalorder %s22, 1
      %p103 = scmp.ne.s32.totalorder %s98, %s100
      %p104 = scmp.eq.s32.totalorder %s22, 0
      %p105 = por %p103, %p104
      %p106 = scmp.ne.s32.totalorder %s98, %s100
      %p107 = scmp.eq.s32.totalorder %s27, 1
      %p108 = por %p106, %p107
      %p109 = scmp.ne.s32.totalorder %s100, %s101
      %p110 = scmp.eq.s32.totalorder %s27, 0
      %p111 = por %p109, %p110
      %p112 = scmp.ne.s32.totalorder %s100, %s101
      %p113 = scmp.eq.s32.totalorder %s28, 1
      %p114 = por %p112, %p113
      %p116 = scmp.ne.s32.totalorder %s101, %s115
      %p117 = scmp.eq.s32.totalorder %s28, 0
      %p118 = por %p116, %p117
      %s120 = sadd.s32 %s119, 1
      %p123 = scmp.eq.s32.totalorder %s22, 1
      %p124 = scmp.ne.s32.totalorder %s119, %s121
      %p125 = scmp.eq.s32.totalorder %s22, 0
      %p126 = por %p124, %p125
      %p127 = scmp.ne.s32.totalorder %s119, %s121
      %p128 = scmp.eq.s32.totalorder %s27, 1
      %p129 = por %p127, %p128
      %p130 = scmp.ne.s32.totalorder %s121, %s122
      %p131 = scmp.eq.s32.totalorder %s27, 0
      %p132 = por %p130, %p131
      %p133 = scmp.ne.s32.totalorder %s121, %s122
      %p134 = scmp.eq.s32.totalorder %s28, 1
      %p135 = por %p133, %p134
      %p137 = scmp.ne.s32.totalorder %s122, %s136
      %p138 = scmp.eq.s32.totalorder %s28, 0
      %p139 = por %p137, %p138
      %s141 = sadd.s32 %s140, 1
      %p144 = scmp.eq.s32.totalorder %s22, 1
      %p145 = scmp.ne.s32.totalorder %s140, %s142
      %p146 = scmp.eq.s32.totalorder %s22, 0
      %p147 = por %p145, %p146
      %p148 = scmp.ne.s32.totalorder %s140, %s142
      %p149 = scmp.eq.s32.totalorder %s27, 1
      %p150 = por %p148, %p149
      %p151 = scmp.ne.s32.totalorder %s142, %s143
      %p152 = scmp.eq.s32.totalorder %s27, 0
      %p153 = por %p151, %p152
      %p154 = scmp.ne.s32.totalorder %s142, %s143
      %p155 = scmp.eq.s32.totalorder %s28, 1
      %p156 = por %p154, %p155
      %p158 = scmp.ne.s32.totalorder %s143, %s157
      %p159 = scmp.eq.s32.totalorder %s28, 0
      %p160 = por %p158, %p159
      %s162 = sadd.s32 %s161, 1
      %p165 = scmp.eq.s32.totalorder %s22, 1
      %p166 = scmp.ne.s32.totalorder %s161, %s163
      %p167 = scmp.eq.s32.totalorder %s22, 0
      %p168 = por %p166, %p167
      %p169 = scmp.ne.s32.totalorder %s161, %s163
      %p170 = scmp.eq.s32.totalorder %s27, 1
      %p171 = por %p169, %p170
      %p172 = scmp.ne.s32.totalorder %s163, %s164
      %p173 = scmp.eq.s32.totalorder %s27, 0
      %p174 = por %p172, %p173
      %p175 = scmp.ne.s32.totalorder %s163, %s164
      %p176 = scmp.eq.s32.totalorder %s28, 1
      %p177 = por %p175, %p176
      %p179 = scmp.ne.s32.totalorder %s164, %s178
      %p180 = scmp.eq.s32.totalorder %s28, 0
      %p181 = por %p179, %p180
      %s182 = ssub.s32 %s22, %s29
      %p183 = scmp.eq.s32.totalorder %s182, 0
      %s185 = sadd.s32 %s184, 1
      %s186 = scalar_select %p183, %s184, %s185
      %p189 = pneg %p183
      %p190 = scmp.eq.s32.totalorder %s22, 1
      %p191 = por %p189, %p190
      %p192 = scmp.ne.s32.totalorder %s184, %s187
      %p193 = scmp.eq.s32.totalorder %s22, 0
      %p194 = por %p192, %p193
      %p195 = scmp.ne.s32.totalorder %s184, %s187
      %p196 = scmp.eq.s32.totalorder %s27, 1
      %p197 = por %p195, %p196
      %p198 = scmp.ne.s32.totalorder %s187, %s188
      %p199 = scmp.eq.s32.totalorder %s27, 0
      %p200 = por %p198, %p199
      %p201 = scmp.ne.s32.totalorder %s187, %s188
      %p202 = scmp.eq.s32.totalorder %s28, 1
      %p203 = por %p201, %p202
      %p205 = scmp.ne.s32.totalorder %s188, %s204
      %p206 = scmp.eq.s32.totalorder %s28, 0
      %p207 = por %p205, %p206
      %p208 = scmp.le.s32.totalorder 1, %s22
      %p209 = scmp.lt.s32.totalorder %s22, 3
      %p210 = pnand %p208, %p209
      %p211 = pneg %p210
      // Predicated region
      $region9: #{block_forward.1} parent=5 // pred_check
        _
      $region10: #{block_forward.1} parent=5 // pred_check_branch
        %213 = sbr.rel (%p210) target = $region12
      $region11: #{block_forward.1} parent=5 // pred_region
        %s214 = ssub.s32 %s22, 1
        // Predicated region
        $region13: #{block_forward.1} parent=11 // pred_check
          %p215 = pneg %p69
        $region14: #{block_forward.1} parent=11 // pred_check_branch
          %217 = sbr.rel (%p215) target = $region16
        $region15: #{block_forward.1} parent=11 // pred_region
          %s219 = ssub.s32 12288, 12288
          %220 = vsyncadd [#allocation8], %s219
          %s221 = sshll.u32 [#allocation7], 4
          %s222 = int_to_ptr.vmem [resolvable:$true] %s221
          %227 = dma.hbm_to_vmem [thread:$0]  %s1, 12288, %s222, [#allocation8], 384, 384, 24
        $region16: #{block_forward.1} parent=11 // pred_fallthru
          _
        // Predicated region
        $region17: #{block_forward.1} parent=11 // pred_check
          %p228 = pneg %p90
        $region18: #{block_forward.1} parent=11 // pred_check_branch
          %230 = sbr.rel (%p228) target = $region20
        $region19: #{block_forward.1} parent=11 // pred_region
          %s232 = ssub.s32 4096, 4096
          %233 = vsyncadd [#allocation8], %s232
          %s234 = sshll.u32 [#allocation9], 4
          %s235 = int_to_ptr.vmem [resolvable:$true] %s234
          %240 = dma.hbm_to_vmem [thread:$0]  %s2, 4096, %s235, [#allocation8], 128, 128, 8
        $region20: #{block_forward.1} parent=11 // pred_fallthru
          _
        // Predicated region
        $region21: #{block_forward.1} parent=11 // pred_check
          %p241 = pneg %p111
        $region22: #{block_forward.1} parent=11 // pred_check_branch
          %243 = sbr.rel (%p241) target = $region24
        $region23: #{block_forward.1} parent=11 // pred_region
          %s245 = ssub.s32 16384, 16384
          %246 = vsyncadd [#allocation11], %s245
          %s247 = sshll.u32 [#allocation10], 4
          %s248 = int_to_ptr.vmem [resolvable:$true] %s247
          %253 = dma.hbm_to_vmem [thread:$0]  %s3, 16384, %s248, [#allocation11], 512, 512, 32
        $region24: #{block_forward.1} parent=11 // pred_fallthru
          _
        // Predicated region
        $region25: #{block_forward.1} parent=11 // pred_check
          %p254 = pneg %p132
        $region26: #{block_forward.1} parent=11 // pred_check_branch
          %256 = sbr.rel (%p254) target = $region28
        $region27: #{block_forward.1} parent=11 // pred_region
          %s258 = ssub.s32 16384, 16384
          %259 = vsyncadd [#allocation11], %s258
          %s260 = sshll.u32 [#allocation12], 4
          %s261 = int_to_ptr.vmem [resolvable:$true] %s260
          %266 = dma.hbm_to_vmem [thread:$0]  %s4, 16384, %s261, [#allocation11], 128, 128, 8
        $region28: #{block_forward.1} parent=11 // pred_fallthru
          _
        // Predicated region
        $region29: #{block_forward.1} parent=11 // pred_check
          %p267 = pneg %p153
        $region30: #{block_forward.1} parent=11 // pred_check_branch
          %269 = sbr.rel (%p267) target = $region32
        $region31: #{block_forward.1} parent=11 // pred_region
          %s271 = ssub.s32 2048, 2048
          %272 = vsyncadd [#allocation14], %s271
          %s273 = sshll.u32 [#allocation13], 4
          %s274 = int_to_ptr.vmem [resolvable:$true] %s273
          %279 = dma.hbm_to_vmem [thread:$0]  %s5, 2048, %s274, [#allocation14], 128, 128, 8
        $region32: #{block_forward.1} parent=11 // pred_fallthru
          _
        // Predicated region
        $region33: #{block_forward.1} parent=11 // pred_check
          %p280 = pneg %p174
        $region34: #{block_forward.1} parent=11 // pred_check_branch
          %282 = sbr.rel (%p280) target = $region36
        $region35: #{block_forward.1} parent=11 // pred_region
          %s284 = ssub.s32 2048, 2048
          %285 = vsyncadd [#allocation14], %s284
          %s286 = sshll.u32 [#allocation15], 4
          %s287 = int_to_ptr.vmem [resolvable:$true] %s286
          %292 = dma.hbm_to_vmem [thread:$0]  %s6, 2048, %s287, [#allocation14], 128, 128, 8
        $region36: #{block_forward.1} parent=11 // pred_fallthru
          _
      $region12: #{block_forward.1} parent=5 // pred_fallthru
        _
      %p293 = scmp.lt.s32.totalorder %s22, 2
      // Predicated region
      $region37: #{block_forward.1} parent=5 // pred_check
        %p294 = pneg %p293
      $region38: #{block_forward.1} parent=5 // pred_check_branch
        %296 = sbr.rel (%p294) target = $region40
      $region39: #{block_forward.1} parent=5 // pred_region
        // Predicated region
        $region41: #{block_forward.1} parent=39 // pred_check
          %p297 = pneg %p42
        $region42: #{block_forward.1} parent=39 // pred_check_branch
          %299 = sbr.rel (%p297) target = $region44
        $region43: #{block_forward.1} parent=39 // pred_region
          %s300 = sand.u32 %s32, 1
          %s301 = scalar_lea.sflag [#allocation5], %s300
          %s302 = sand.u32 %s32, 1
          %s303 = smul.addr %s302, 256
          %s304 = scalar_lea.vmem [#allocation4], %s303
          %s306 = ssub.s32 4096, 4096
          %307 = vsyncadd %s301, %s306
          %s308 = smul.addr %s22, 32
          %s309 = smul.addr %s308, 128
          %s310 = scalar_lea.hbm %s0, %s309
          %s311 = sshll.u32 %s304, 4
          %s312 = int_to_ptr.vmem [resolvable:$true] %s311
          %317 = dma.hbm_to_vmem [thread:$0]  %s310, 4096, %s312, %s301, 256, 256, 16
        $region44: #{block_forward.1} parent=39 // pred_fallthru
          _
      $region40: #{block_forward.1} parent=5 // pred_fallthru
        _
      %p318 = scmp.le.s32.totalorder 1, %s22
      %p319 = scmp.lt.s32.totalorder %s22, 3
      %p320 = pnand %p318, %p319
      %p321 = pneg %p320
      // Predicated region
      $region45: #{block_forward.1} parent=5 // pred_check
        _
      $region46: #{block_forward.1} parent=5 // pred_check_branch
        %323 = sbr.rel (%p320) target = $region48
      $region47: #{block_forward.1} parent=5 // pred_region
        %s324 = ssub.s32 %s22, 1
        %s325 = sand.u32 %s35, 1
        %s326 = scalar_lea.sflag [#allocation5], %s325
        %s327 = sand.u32 %s35, 1
        %s328 = smul.addr %s327, 256
        %s329 = scalar_lea.vmem [#allocation4], %s328
        // Predicated region
        $region49: #{block_forward.1} parent=47 // pred_check
          %p330 = pneg %p48
        $region50: #{block_forward.1} parent=47 // pred_check_branch
          %332 = sbr.rel (%p330) target = $region52
        $region51: #{block_forward.1} parent=47 // pred_region
          %333 = dma.done %s326, 4096
        $region52: #{block_forward.1} parent=47 // pred_fallthru
          _
        // Predicated region
        $region53: #{block_forward.1} parent=47 // pred_check
          %p334 = pneg %p69
        $region54: #{block_forward.1} parent=47 // pred_check_branch
          %336 = sbr.rel (%p334) target = $region56
        $region55: #{block_forward.1} parent=47 // pred_region
          %337 = dma.done [#allocation8], 12288
        $region56: #{block_forward.1} parent=47 // pred_fallthru
          _
        // Predicated region
        $region57: #{block_forward.1} parent=47 // pred_check
          %p338 = pneg %p90
        $region58: #{block_forward.1} parent=47 // pred_check_branch
          %340 = sbr.rel (%p338) target = $region60
        $region59: #{block_forward.1} parent=47 // pred_region
          %341 = dma.done [#allocation8], 4096
        $region60: #{block_forward.1} parent=47 // pred_fallthru
          _
        // Predicated region
        $region61: #{block_forward.1} parent=47 // pred_check
          %p342 = pneg %p111
        $region62: #{block_forward.1} parent=47 // pred_check_branch
          %344 = sbr.rel (%p342) target = $region64
        $region63: #{block_forward.1} parent=47 // pred_region
          %345 = dma.done [#allocation11], 16384
        $region64: #{block_forward.1} parent=47 // pred_fallthru
          _
        // Predicated region
        $region65: #{block_forward.1} parent=47 // pred_check
          %p346 = pneg %p132
        $region66: #{block_forward.1} parent=47 // pred_check_branch
          %348 = sbr.rel (%p346) target = $region68
        $region67: #{block_forward.1} parent=47 // pred_region
          %349 = dma.done [#allocation11], 16384
        $region68: #{block_forward.1} parent=47 // pred_fallthru
          _
        // Predicated region
        $region69: #{block_forward.1} parent=47 // pred_check
          %p350 = pneg %p153
        $region70: #{block_forward.1} parent=47 // pred_check_branch
          %352 = sbr.rel (%p350) target = $region72
        $region71: #{block_forward.1} parent=47 // pred_region
          %353 = dma.done [#allocation14], 2048
        $region72: #{block_forward.1} parent=47 // pred_fallthru
          _
        // Predicated region
        $region73: #{block_forward.1} parent=47 // pred_check
          %p354 = pneg %p174
        $region74: #{block_forward.1} parent=47 // pred_check_branch
          %356 = sbr.rel (%p354) target = $region76
        $region75: #{block_forward.1} parent=47 // pred_region
          %357 = dma.done [#allocation14], 2048
        $region76: #{block_forward.1} parent=47 // pred_fallthru
          _
        %s358 = sand.u32 %s35, 1
        %s359 = scalar_lea.sflag [#allocation5], %s358
        %s360 = sand.u32 %s35, 1
        %s361 = smul.addr %s360, 256
        %s362 = scalar_lea.vmem [#allocation4], %s361
        %p363 = pneg %p48
        %p364 = pneg %p45
        %p365 = pneg %p69
        %p366 = pneg %p66
        %p367 = pneg %p90
        %p368 = pneg %p87
        %p369 = pneg %p111
        %p370 = pneg %p108
        %p371 = pneg %p132
        %p372 = pneg %p129
        %p373 = pneg %p153
        %p374 = pneg %p150
        %p375 = pneg %p174
        %p376 = pneg %p171
        %p377 = pneg %p200
        %p378 = pneg %p197
        %s379 = sand.u32 %s187, 1
        %s380 = scalar_lea.sflag [#allocation6], %s379
        %s381 = sand.u32 %s187, 1
        %s382 = smul.addr %s381, 256
        %s383 = scalar_lea.vmem [#allocation16], %s382
        %v385 = vld [vmem:[%s329] sm:$0xff]
        %v386 = vld [vmem:[%s329 + $0x8] sm:$0xff]
        %v387 = vld [vmem:[%s329 + $0x10] sm:$0xff]
        %v388 = vld [vmem:[%s329 + $0x18] sm:$0xff]
        %v389 = vld [vmem:[%s329 + $0x20] sm:$0xff]
        %v390 = vld [vmem:[%s329 + $0x28] sm:$0xff]
        %v391 = vld [vmem:[%s329 + $0x30] sm:$0xff]
        %v392 = vld [vmem:[%s329 + $0x38] sm:$0xff]
        %v393 = vld [vmem:[%s329 + $0x40] sm:$0xff]
        %v394 = vld [vmem:[%s329 + $0x48] sm:$0xff]
        %v395 = vld [vmem:[%s329 + $0x50] sm:$0xff]
        %v396 = vld [vmem:[%s329 + $0x58] sm:$0xff]
        %v397 = vld [vmem:[%s329 + $0x60] sm:$0xff]
        %v398 = vld [vmem:[%s329 + $0x68] sm:$0xff]
        %v399 = vld [vmem:[%s329 + $0x70] sm:$0xff]
        %v400 = vld [vmem:[%s329 + $0x78] sm:$0xff]
        %v401 = vld [vmem:[%s329 + $0x80] sm:$0xff]
        %v402 = vld [vmem:[%s329 + $0x88] sm:$0xff]
        %v403 = vld [vmem:[%s329 + $0x90] sm:$0xff]
        %v404 = vld [vmem:[%s329 + $0x98] sm:$0xff]
        %v405 = vld [vmem:[%s329 + $0xa0] sm:$0xff]
        %v406 = vld [vmem:[%s329 + $0xa8] sm:$0xff]
        %v407 = vld [vmem:[%s329 + $0xb0] sm:$0xff]
        %v408 = vld [vmem:[%s329 + $0xb8] sm:$0xff]
        %v409 = vld [vmem:[%s329 + $0xc0] sm:$0xff]
        %v410 = vld [vmem:[%s329 + $0xc8] sm:$0xff]
        %v411 = vld [vmem:[%s329 + $0xd0] sm:$0xff]
        %v412 = vld [vmem:[%s329 + $0xd8] sm:$0xff]
        %v413 = vld [vmem:[%s329 + $0xe0] sm:$0xff]
        %v414 = vld [vmem:[%s329 + $0xe8] sm:$0xff]
        %v415 = vld [vmem:[%s329 + $0xf0] sm:$0xff]
        %v416 = vld [vmem:[%s329 + $0xf8] sm:$0xff]
        %v417 = vmul.f32 %v385, %v385
        %v418 = vmul.f32 %v386, %v386
        %v419 = vmul.f32 %v387, %v387
        %v420 = vmul.f32 %v388, %v388
        %v421 = vmul.f32 %v389, %v389
        %v422 = vmul.f32 %v390, %v390
        %v423 = vmul.f32 %v391, %v391
        %v424 = vmul.f32 %v392, %v392
        %v425 = vmul.f32 %v393, %v393
        %v426 = vmul.f32 %v394, %v394
        %v427 = vmul.f32 %v395, %v395
        %v428 = vmul.f32 %v396, %v396
        %v429 = vmul.f32 %v397, %v397
        %v430 = vmul.f32 %v398, %v398
        %v431 = vmul.f32 %v399, %v399
        %v432 = vmul.f32 %v400, %v400
        %v433 = vmul.f32 %v401, %v401
        %v434 = vmul.f32 %v402, %v402
        %v435 = vmul.f32 %v403, %v403
        %v436 = vmul.f32 %v404, %v404
        %v437 = vmul.f32 %v405, %v405
        %v438 = vmul.f32 %v406, %v406
        %v439 = vmul.f32 %v407, %v407
        %v440 = vmul.f32 %v408, %v408
        %v441 = vmul.f32 %v409, %v409
        %v442 = vmul.f32 %v410, %v410
        %v443 = vmul.f32 %v411, %v411
        %v444 = vmul.f32 %v412, %v412
        %v445 = vmul.f32 %v413, %v413
        %v446 = vmul.f32 %v414, %v414
        %v447 = vmul.f32 %v415, %v415
        %v448 = vmul.f32 %v416, %v416
        %v449 = vadd.f32 %v417, %v418
        %450 = vadd.xlane.f32.xlu0 %v449
        %v451 = vpop.xlane.xlu0 %450
        %v452 = vadd.f32 %v419, %v420
        %453 = vadd.xlane.f32.xlu0 %v452
        %v454 = vpop.xlane.xlu0 %453
        %v455 = vadd.f32 %v421, %v422
        %456 = vadd.xlane.f32.xlu0 %v455
        %v457 = vpop.xlane.xlu0 %456
        %v458 = vadd.f32 %v423, %v424
        %459 = vadd.xlane.f32.xlu0 %v458
        %v460 = vpop.xlane.xlu0 %459
        %v461 = vadd.f32 %v425, %v426
        %462 = vadd.xlane.f32.xlu0 %v461
        %v463 = vpop.xlane.xlu0 %462
        %v464 = vadd.f32 %v427, %v428
        %465 = vadd.xlane.f32.xlu0 %v464
        %v466 = vpop.xlane.xlu0 %465
        %v467 = vadd.f32 %v429, %v430
        %468 = vadd.xlane.f32.xlu0 %v467
        %v469 = vpop.xlane.xlu0 %468
        %v470 = vadd.f32 %v431, %v432
        %471 = vadd.xlane.f32.xlu0 %v470
        %v472 = vpop.xlane.xlu0 %471
        %v473 = vadd.f32 %v433, %v434
        %474 = vadd.xlane.f32.xlu0 %v473
        %v475 = vpop.xlane.xlu0 %474
        %v476 = vadd.f32 %v435, %v436
        %477 = vadd.xlane.f32.xlu0 %v476
        %v478 = vpop.xlane.xlu0 %477
        %v479 = vadd.f32 %v437, %v438
        %480 = vadd.xlane.f32.xlu0 %v479
        %v481 = vpop.xlane.xlu0 %480
        %v482 = vadd.f32 %v439, %v440
        %483 = vadd.xlane.f32.xlu0 %v482
        %v484 = vpop.xlane.xlu0 %483
        %v485 = vadd.f32 %v441, %v442
        %486 = vadd.xlane.f32.xlu0 %v485
        %v487 = vpop.xlane.xlu0 %486
        %v488 = vadd.f32 %v443, %v444
        %489 = vadd.xlane.f32.xlu0 %v488
        %v490 = vpop.xlane.xlu0 %489
        %v491 = vadd.f32 %v445, %v446
        %492 = vadd.xlane.f32.xlu0 %v491
        %v493 = vpop.xlane.xlu0 %492
        %v494 = vadd.f32 %v447, %v448
        %495 = vadd.xlane.f32.xlu0 %v494
        %v496 = vpop.xlane.xlu0 %495
        %v497 = vrcp.pop 256.0
        %v498 = vmul.f32 %v451, %v497
        %v499 = vmul.f32 %v454, %v497
        %v500 = vmul.f32 %v457, %v497
        %v501 = vmul.f32 %v460, %v497
        %v502 = vmul.f32 %v463, %v497
        %v503 = vmul.f32 %v466, %v497
        %v504 = vmul.f32 %v469, %v497
        %v505 = vmul.f32 %v472, %v497
        %v506 = vmul.f32 %v475, %v497
        %v507 = vmul.f32 %v478, %v497
        %v508 = vmul.f32 %v481, %v497
        %v509 = vmul.f32 %v484, %v497
        %v510 = vmul.f32 %v487, %v497
        %v511 = vmul.f32 %v490, %v497
        %v512 = vmul.f32 %v493, %v497
        %v513 = vmul.f32 %v496, %v497
        %v514 = vadd.f32 %v498, 1.1920929e-07
        %v515 = vadd.f32 %v499, 1.1920929e-07
        %v516 = vadd.f32 %v500, 1.1920929e-07
        %v517 = vadd.f32 %v501, 1.1920929e-07
        %v518 = vadd.f32 %v502, 1.1920929e-07
        %v519 = vadd.f32 %v503, 1.1920929e-07
        %v520 = vadd.f32 %v504, 1.1920929e-07
        %v521 = vadd.f32 %v505, 1.1920929e-07
        %v522 = vadd.f32 %v506, 1.1920929e-07
        %v523 = vadd.f32 %v507, 1.1920929e-07
        %v524 = vadd.f32 %v508, 1.1920929e-07
        %v525 = vadd.f32 %v509, 1.1920929e-07
        %v526 = vadd.f32 %v510, 1.1920929e-07
        %v527 = vadd.f32 %v511, 1.1920929e-07
        %v528 = vadd.f32 %v512, 1.1920929e-07
        %v529 = vadd.f32 %v513, 1.1920929e-07
        %v530 = vrsqrt.pop %v514
        %v531 = vrsqrt.pop %v515
        %v532 = vrsqrt.pop %v516
        %v533 = vrsqrt.pop %v517
        %v534 = vrsqrt.pop %v518
        %v535 = vrsqrt.pop %v519
        %v536 = vrsqrt.pop %v520
        %v537 = vrsqrt.pop %v521
        %v538 = vrsqrt.pop %v522
        %v539 = vrsqrt.pop %v523
        %v540 = vrsqrt.pop %v524
        %v541 = vrsqrt.pop %v525
        %v542 = vrsqrt.pop %v526
        %v543 = vrsqrt.pop %v527
        %v544 = vrsqrt.pop %v528
        %v545 = vrsqrt.pop %v529
        %v546 = vmul.f32 %v385, %v530
        %v547 = vmul.f32 %v386, %v530
        %v548 = vmul.f32 %v387, %v531
        %v549 = vmul.f32 %v388, %v531
        %v550 = vmul.f32 %v389, %v532
        %v551 = vmul.f32 %v390, %v532
        %v552 = vmul.f32 %v391, %v533
        %v553 = vmul.f32 %v392, %v533
        %v554 = vmul.f32 %v393, %v534
        %v555 = vmul.f32 %v394, %v534
        %v556 = vmul.f32 %v395, %v535
        %v557 = vmul.f32 %v396, %v535
        %v558 = vmul.f32 %v397, %v536
        %v559 = vmul.f32 %v398, %v536
        %v560 = vmul.f32 %v399, %v537
        %v561 = vmul.f32 %v400, %v537
        %v562 = vmul.f32 %v401, %v538
        %v563 = vmul.f32 %v402, %v538
        %v564 = vmul.f32 %v403, %v539
        %v565 = vmul.f32 %v404, %v539
        %v566 = vmul.f32 %v405, %v540
        %v567 = vmul.f32 %v406, %v540
        %v568 = vmul.f32 %v407, %v541
        %v569 = vmul.f32 %v408, %v541
        %v570 = vmul.f32 %v409, %v542
        %v571 = vmul.f32 %v410, %v542
        %v572 = vmul.f32 %v411, %v543
        %v573 = vmul.f32 %v412, %v543
        %v574 = vmul.f32 %v413, %v544
        %v575 = vmul.f32 %v414, %v544
        %v576 = vmul.f32 %v415, %v545
        %v577 = vmul.f32 %v416, %v545
        %v578 = vpack.c.bf16 %v548, %v546
        %v579 = vpack.c.bf16 %v549, %v547
        %v580 = vpack.c.bf16 %v552, %v550
        %v581 = vpack.c.bf16 %v553, %v551
        %v582 = vpack.c.bf16 %v556, %v554
        %v583 = vpack.c.bf16 %v557, %v555
        %v584 = vpack.c.bf16 %v560, %v558
        %v585 = vpack.c.bf16 %v561, %v559
        %v586 = vpack.c.bf16 %v564, %v562
        %v587 = vpack.c.bf16 %v565, %v563
        %v588 = vpack.c.bf16 %v568, %v566
        %v589 = vpack.c.bf16 %v569, %v567
        %v590 = vpack.c.bf16 %v572, %v570
        %v591 = vpack.c.bf16 %v573, %v571
        %v592 = vpack.c.bf16 %v576, %v574
        %v593 = vpack.c.bf16 %v577, %v575
        %v594 = vld [vmem:[#allocation7] sm:$0xff]
        %v595 = vld [vmem:[#allocation7 + $0x8] sm:$0xff]
        %v596 = vld [vmem:[#allocation7 + $0x10] sm:$0xff]
        %v597 = vld [vmem:[#allocation7 + $0x18] sm:$0xff]
        %v598 = vld [vmem:[#allocation7 + $0x20] sm:$0xff]
        %v599 = vld [vmem:[#allocation7 + $0x28] sm:$0xff]
        %v600 = vld [vmem:[#allocation7 + $0x30] sm:$0xff]
        %v601 = vld [vmem:[#allocation7 + $0x38] sm:$0xff]
        %v602 = vld [vmem:[#allocation7 + $0x40] sm:$0xff]
        %v603 = vld [vmem:[#allocation7 + $0x48] sm:$0xff]
        %v604 = vld [vmem:[#allocation7 + $0x50] sm:$0xff]
        %v605 = vld [vmem:[#allocation7 + $0x58] sm:$0xff]
        %v606 = vld [vmem:[#allocation7 + $0x60] sm:$0xff]
        %v607 = vld [vmem:[#allocation7 + $0x68] sm:$0xff]
        %v608 = vld [vmem:[#allocation7 + $0x70] sm:$0xff]
        %v609 = vld [vmem:[#allocation7 + $0x78] sm:$0xff]
        %v610 = vld [vmem:[#allocation7 + $0x80] sm:$0xff]
        %v611 = vld [vmem:[#allocation7 + $0x88] sm:$0xff]
        %v612 = vld [vmem:[#allocation7 + $0x90] sm:$0xff]
        %v613 = vld [vmem:[#allocation7 + $0x98] sm:$0xff]
        %v614 = vld [vmem:[#allocation7 + $0xa0] sm:$0xff]
        %v615 = vld [vmem:[#allocation7 + $0xa8] sm:$0xff]
        %v616 = vld [vmem:[#allocation7 + $0xb0] sm:$0xff]
        %v617 = vld [vmem:[#allocation7 + $0xb8] sm:$0xff]
        %v618 = vld [vmem:[#allocation7 + $0xc0] sm:$0xff]
        %v619 = vld [vmem:[#allocation7 + $0xc8] sm:$0xff]
        %v620 = vld [vmem:[#allocation7 + $0xd0] sm:$0xff]
        %v621 = vld [vmem:[#allocation7 + $0xd8] sm:$0xff]
        %v622 = vld [vmem:[#allocation7 + $0xe0] sm:$0xff]
        %v623 = vld [vmem:[#allocation7 + $0xe8] sm:$0xff]
        %v624 = vld [vmem:[#allocation7 + $0xf0] sm:$0xff]
        %v625 = vld [vmem:[#allocation7 + $0xf8] sm:$0xff]
        %v626 = vld [vmem:[#allocation7 + $0x100] sm:$0xff]
        %v627 = vld [vmem:[#allocation7 + $0x108] sm:$0xff]
        %v628 = vld [vmem:[#allocation7 + $0x110] sm:$0xff]
        %v629 = vld [vmem:[#allocation7 + $0x118] sm:$0xff]
        %v630 = vld [vmem:[#allocation7 + $0x120] sm:$0xff]
        %v631 = vld [vmem:[#allocation7 + $0x128] sm:$0xff]
        %v632 = vld [vmem:[#allocation7 + $0x130] sm:$0xff]
        %v633 = vld [vmem:[#allocation7 + $0x138] sm:$0xff]
        %v634 = vld [vmem:[#allocation7 + $0x140] sm:$0xff]
        %v635 = vld [vmem:[#allocation7 + $0x148] sm:$0xff]
        %v636 = vld [vmem:[#allocation7 + $0x150] sm:$0xff]
        %v637 = vld [vmem:[#allocation7 + $0x158] sm:$0xff]
        %v638 = vld [vmem:[#allocation7 + $0x160] sm:$0xff]
        %v639 = vld [vmem:[#allocation7 + $0x168] sm:$0xff]
        %v640 = vld [vmem:[#allocation7 + $0x170] sm:$0xff]
        %v641 = vld [vmem:[#allocation7 + $0x178] sm:$0xff]
        %v642 = vld [vmem:[#allocation7 + $0x180] sm:$0xff]
        %v643 = vld [vmem:[#allocation7 + $0x188] sm:$0xff]
        %v644 = vld [vmem:[#allocation7 + $0x190] sm:$0xff]
        %v645 = vld [vmem:[#allocation7 + $0x198] sm:$0xff]
        %v646 = vld [vmem:[#allocation7 + $0x1a0] sm:$0xff]
        %v647 = vld [vmem:[#allocation7 + $0x1a8] sm:$0xff]
        %v648 = vld [vmem:[#allocation7 + $0x1b0] sm:$0xff]
        %v649 = vld [vmem:[#allocation7 + $0x1b8] sm:$0xff]
        %v650 = vld [vmem:[#allocation7 + $0x1c0] sm:$0xff]
        %v651 = vld [vmem:[#allocation7 + $0x1c8] sm:$0xff]
        %v652 = vld [vmem:[#allocation7 + $0x1d0] sm:$0xff]
        %v653 = vld [vmem:[#allocation7 + $0x1d8] sm:$0xff]
        %v654 = vld [vmem:[#allocation7 + $0x1e0] sm:$0xff]
        %v655 = vld [vmem:[#allocation7 + $0x1e8] sm:$0xff]
        %v656 = vld [vmem:[#allocation7 + $0x1f0] sm:$0xff]
        %v657 = vld [vmem:[#allocation7 + $0x1f8] sm:$0xff]
        %v658 = vld [vmem:[#allocation7 + $0x200] sm:$0xff]
        %v659 = vld [vmem:[#allocation7 + $0x208] sm:$0xff]
        %v660 = vld [vmem:[#allocation7 + $0x210] sm:$0xff]
        %v661 = vld [vmem:[#allocation7 + $0x218] sm:$0xff]
        %v662 = vld [vmem:[#allocation7 + $0x220] sm:$0xff]
        %v663 = vld [vmem:[#allocation7 + $0x228] sm:$0xff]
        %v664 = vld [vmem:[#allocation7 + $0x230] sm:$0xff]
        %v665 = vld [vmem:[#allocation7 + $0x238] sm:$0xff]
        %v666 = vld [vmem:[#allocation7 + $0x240] sm:$0xff]
        %v667 = vld [vmem:[#allocation7 + $0x248] sm:$0xff]
        %v668 = vld [vmem:[#allocation7 + $0x250] sm:$0xff]
        %v669 = vld [vmem:[#allocation7 + $0x258] sm:$0xff]
        %v670 = vld [vmem:[#allocation7 + $0x260] sm:$0xff]
        %v671 = vld [vmem:[#allocation7 + $0x268] sm:$0xff]
        %v672 = vld [vmem:[#allocation7 + $0x270] sm:$0xff]
        %v673 = vld [vmem:[#allocation7 + $0x278] sm:$0xff]
        %v674 = vld [vmem:[#allocation7 + $0x280] sm:$0xff]
        %v675 = vld [vmem:[#allocation7 + $0x288] sm:$0xff]
        %v676 = vld [vmem:[#allocation7 + $0x290] sm:$0xff]
        %v677 = vld [vmem:[#allocation7 + $0x298] sm:$0xff]
        %v678 = vld [vmem:[#allocation7 + $0x2a0] sm:$0xff]
        %v679 = vld [vmem:[#allocation7 + $0x2a8] sm:$0xff]
        %v680 = vld [vmem:[#allocation7 + $0x2b0] sm:$0xff]
        %v681 = vld [vmem:[#allocation7 + $0x2b8] sm:$0xff]
        %v682 = vld [vmem:[#allocation7 + $0x2c0] sm:$0xff]
        %v683 = vld [vmem:[#allocation7 + $0x2c8] sm:$0xff]
        %v684 = vld [vmem:[#allocation7 + $0x2d0] sm:$0xff]
        %v685 = vld [vmem:[#allocation7 + $0x2d8] sm:$0xff]
        %v686 = vld [vmem:[#allocation7 + $0x2e0] sm:$0xff]
        %v687 = vld [vmem:[#allocation7 + $0x2e8] sm:$0xff]
        %v688 = vld [vmem:[#allocation7 + $0x2f0] sm:$0xff]
        %v689 = vld [vmem:[#allocation7 + $0x2f8] sm:$0xff]
        %v786 = vunpack.c.l.b16 %v594
        %v787 = vunpack.c.h.b16 %v594
        %v788 = vunpack.c.l.b16 %v595
        %v789 = vunpack.c.h.b16 %v595
        %v790 = vunpack.c.l.b16 %v596
        %v791 = vunpack.c.h.b16 %v596
        %v792 = vunpack.c.l.b16 %v597
        %v793 = vunpack.c.h.b16 %v597
        %v794 = vunpack.c.l.b16 %v598
        %v795 = vunpack.c.h.b16 %v598
        %v796 = vunpack.c.l.b16 %v599
        %v797 = vunpack.c.h.b16 %v599
        %v798 = vunpack.c.l.b16 %v600
        %v799 = vunpack.c.h.b16 %v600
        %v800 = vunpack.c.l.b16 %v601
        %v801 = vunpack.c.h.b16 %v601
        %v802 = vunpack.c.l.b16 %v602
        %v803 = vunpack.c.h.b16 %v602
        %v804 = vunpack.c.l.b16 %v603
        %v805 = vunpack.c.h.b16 %v603
        %v806 = vunpack.c.l.b16 %v604
        %v807 = vunpack.c.h.b16 %v604
        %v808 = vunpack.c.l.b16 %v605
        %v809 = vunpack.c.h.b16 %v605
        %v810 = vunpack.c.l.b16 %v606
        %v811 = vunpack.c.h.b16 %v606
        %v812 = vunpack.c.l.b16 %v607
        %v813 = vunpack.c.h.b16 %v607
        %v814 = vunpack.c.l.b16 %v608
        %v815 = vunpack.c.h.b16 %v608
        %v816 = vunpack.c.l.b16 %v609
        %v817 = vunpack.c.h.b16 %v609
        %v818 = vunpack.c.l.b16 %v610
        %v819 = vunpack.c.h.b16 %v610
        %v820 = vunpack.c.l.b16 %v611
        %v821 = vunpack.c.h.b16 %v611
        %v822 = vunpack.c.l.b16 %v612
        %v823 = vunpack.c.h.b16 %v612
        %v824 = vunpack.c.l.b16 %v613
        %v825 = vunpack.c.h.b16 %v613
        %v826 = vunpack.c.l.b16 %v614
        %v827 = vunpack.c.h.b16 %v614
        %v828 = vunpack.c.l.b16 %v615
        %v829 = vunpack.c.h.b16 %v615
        %v830 = vunpack.c.l.b16 %v616
        %v831 = vunpack.c.h.b16 %v616
        %v832 = vunpack.c.l.b16 %v617
        %v833 = vunpack.c.h.b16 %v617
        %v834 = vunpack.c.l.b16 %v618
        %v835 = vunpack.c.h.b16 %v618
        %v836 = vunpack.c.l.b16 %v619
        %v837 = vunpack.c.h.b16 %v619
        %v838 = vunpack.c.l.b16 %v620
        %v839 = vunpack.c.h.b16 %v620
        %v840 = vunpack.c.l.b16 %v621
        %v841 = vunpack.c.h.b16 %v621
        %v842 = vunpack.c.l.b16 %v622
        %v843 = vunpack.c.h.b16 %v622
        %v844 = vunpack.c.l.b16 %v623
        %v845 = vunpack.c.h.b16 %v623
        %v846 = vunpack.c.l.b16 %v624
        %v847 = vunpack.c.h.b16 %v624
        %v848 = vunpack.c.l.b16 %v625
        %v849 = vunpack.c.h.b16 %v625
        %v850 = vunpack.c.l.b16 %v626
        %v851 = vunpack.c.h.b16 %v626
        %v852 = vunpack.c.l.b16 %v627
        %v853 = vunpack.c.h.b16 %v627
        %v854 = vunpack.c.l.b16 %v628
        %v855 = vunpack.c.h.b16 %v628
        %v856 = vunpack.c.l.b16 %v629
        %v857 = vunpack.c.h.b16 %v629
        %v858 = vunpack.c.l.b16 %v630
        %v859 = vunpack.c.h.b16 %v630
        %v860 = vunpack.c.l.b16 %v631
        %v861 = vunpack.c.h.b16 %v631
        %v862 = vunpack.c.l.b16 %v632
        %v863 = vunpack.c.h.b16 %v632
        %v864 = vunpack.c.l.b16 %v633
        %v865 = vunpack.c.h.b16 %v633
        %v866 = vunpack.c.l.b16 %v634
        %v867 = vunpack.c.h.b16 %v634
        %v868 = vunpack.c.l.b16 %v635
        %v869 = vunpack.c.h.b16 %v635
        %v870 = vunpack.c.l.b16 %v636
        %v871 = vunpack.c.h.b16 %v636
        %v872 = vunpack.c.l.b16 %v637
        %v873 = vunpack.c.h.b16 %v637
        %v874 = vunpack.c.l.b16 %v638
        %v875 = vunpack.c.h.b16 %v638
        %v876 = vunpack.c.l.b16 %v639
        %v877 = vunpack.c.h.b16 %v639
        %v878 = vunpack.c.l.b16 %v640
        %v879 = vunpack.c.h.b16 %v640
        %v880 = vunpack.c.l.b16 %v641
        %v881 = vunpack.c.h.b16 %v641
        %v882 = vunpack.c.l.b16 %v642
        %v883 = vunpack.c.h.b16 %v642
        %v884 = vunpack.c.l.b16 %v643
        %v885 = vunpack.c.h.b16 %v643
        %v886 = vunpack.c.l.b16 %v644
        %v887 = vunpack.c.h.b16 %v644
        %v888 = vunpack.c.l.b16 %v645
        %v889 = vunpack.c.h.b16 %v645
        %v890 = vunpack.c.l.b16 %v646
        %v891 = vunpack.c.h.b16 %v646
        %v892 = vunpack.c.l.b16 %v647
        %v893 = vunpack.c.h.b16 %v647
        %v894 = vunpack.c.l.b16 %v648
        %v895 = vunpack.c.h.b16 %v648
        %v896 = vunpack.c.l.b16 %v649
        %v897 = vunpack.c.h.b16 %v649
        %v898 = vunpack.c.l.b16 %v650
        %v899 = vunpack.c.h.b16 %v650
        %v900 = vunpack.c.l.b16 %v651
        %v901 = vunpack.c.h.b16 %v651
        %v902 = vunpack.c.l.b16 %v652
        %v903 = vunpack.c.h.b16 %v652
        %v904 = vunpack.c.l.b16 %v653
        %v905 = vunpack.c.h.b16 %v653
        %v906 = vunpack.c.l.b16 %v654
        %v907 = vunpack.c.h.b16 %v654
        %v908 = vunpack.c.l.b16 %v655
        %v909 = vunpack.c.h.b16 %v655
        %v910 = vunpack.c.l.b16 %v656
        %v911 = vunpack.c.h.b16 %v656
        %v912 = vunpack.c.l.b16 %v657
        %v913 = vunpack.c.h.b16 %v657
        %v914 = vunpack.c.l.b16 %v658
        %v915 = vunpack.c.h.b16 %v658
        %v916 = vunpack.c.l.b16 %v659
        %v917 = vunpack.c.h.b16 %v659
        %v918 = vunpack.c.l.b16 %v660
        %v919 = vunpack.c.h.b16 %v660
        %v920 = vunpack.c.l.b16 %v661
        %v921 = vunpack.c.h.b16 %v661
        %v922 = vunpack.c.l.b16 %v662
        %v923 = vunpack.c.h.b16 %v662
        %v924 = vunpack.c.l.b16 %v663
        %v925 = vunpack.c.h.b16 %v663
        %v926 = vunpack.c.l.b16 %v664
        %v927 = vunpack.c.h.b16 %v664
        %v928 = vunpack.c.l.b16 %v665
        %v929 = vunpack.c.h.b16 %v665
        %v930 = vunpack.c.l.b16 %v666
        %v931 = vunpack.c.h.b16 %v666
        %v932 = vunpack.c.l.b16 %v667
        %v933 = vunpack.c.h.b16 %v667
        %v934 = vunpack.c.l.b16 %v668
        %v935 = vunpack.c.h.b16 %v668
        %v936 = vunpack.c.l.b16 %v669
        %v937 = vunpack.c.h.b16 %v669
        %v938 = vunpack.c.l.b16 %v670
        %v939 = vunpack.c.h.b16 %v670
        %v940 = vunpack.c.l.b16 %v671
        %v941 = vunpack.c.h.b16 %v671
        %v942 = vunpack.c.l.b16 %v672
        %v943 = vunpack.c.h.b16 %v672
        %v944 = vunpack.c.l.b16 %v673
        %v945 = vunpack.c.h.b16 %v673
        %v946 = vunpack.c.l.b16 %v674
        %v947 = vunpack.c.h.b16 %v674
        %v948 = vunpack.c.l.b16 %v675
        %v949 = vunpack.c.h.b16 %v675
        %v950 = vunpack.c.l.b16 %v676
        %v951 = vunpack.c.h.b16 %v676
        %v952 = vunpack.c.l.b16 %v677
        %v953 = vunpack.c.h.b16 %v677
        %v954 = vunpack.c.l.b16 %v678
        %v955 = vunpack.c.h.b16 %v678
        %v956 = vunpack.c.l.b16 %v679
        %v957 = vunpack.c.h.b16 %v679
        %v958 = vunpack.c.l.b16 %v680
        %v959 = vunpack.c.h.b16 %v680
        %v960 = vunpack.c.l.b16 %v681
        %v961 = vunpack.c.h.b16 %v681
        %v962 = vunpack.c.l.b16 %v682
        %v963 = vunpack.c.h.b16 %v682
        %v964 = vunpack.c.l.b16 %v683
        %v965 = vunpack.c.h.b16 %v683
        %v966 = vunpack.c.l.b16 %v684
        %v967 = vunpack.c.h.b16 %v684
        %v968 = vunpack.c.l.b16 %v685
        %v969 = vunpack.c.h.b16 %v685
        %v970 = vunpack.c.l.b16 %v686
        %v971 = vunpack.c.h.b16 %v686
        %v972 = vunpack.c.l.b16 %v687
        %v973 = vunpack.c.h.b16 %v687
        %v974 = vunpack.c.l.b16 %v688
        %v975 = vunpack.c.h.b16 %v688
        %v976 = vunpack.c.l.b16 %v689
        %v977 = vunpack.c.h.b16 %v689
        %v978 = vpack.c.b16 %v792, %v786
        %v979 = vpack.c.b16 %v793, %v787
        %v980 = vpack.c.b16 %v794, %v788
        %v981 = vpack.c.b16 %v795, %v789
        %v982 = vpack.c.b16 %v796, %v790
        %v983 = vpack.c.b16 %v797, %v791
        %v984 = vpack.c.b16 %v804, %v798
        %v985 = vpack.c.b16 %v805, %v799
        %v986 = vpack.c.b16 %v806, %v800
        %v987 = vpack.c.b16 %v807, %v801
        %v988 = vpack.c.b16 %v808, %v802
        %v989 = vpack.c.b16 %v809, %v803
        %v990 = vpack.c.b16 %v816, %v810
        %v991 = vpack.c.b16 %v817, %v811
        %v992 = vpack.c.b16 %v818, %v812
        %v993 = vpack.c.b16 %v819, %v813
        %v994 = vpack.c.b16 %v820, %v814
        %v995 = vpack.c.b16 %v821, %v815
        %v996 = vpack.c.b16 %v828, %v822
        %v997 = vpack.c.b16 %v829, %v823
        %v998 = vpack.c.b16 %v830, %v824
        %v999 = vpack.c.b16 %v831, %v825
        %v1000 = vpack.c.b16 %v832, %v826
        %v1001 = vpack.c.b16 %v833, %v827
        %v1002 = vpack.c.b16 %v840, %v834
        %v1003 = vpack.c.b16 %v841, %v835
        %v1004 = vpack.c.b16 %v842, %v836
        %v1005 = vpack.c.b16 %v843, %v837
        %v1006 = vpack.c.b16 %v844, %v838
        %v1007 = vpack.c.b16 %v845, %v839
        %v1008 = vpack.c.b16 %v852, %v846
        %v1009 = vpack.c.b16 %v853, %v847
        %v1010 = vpack.c.b16 %v854, %v848
        %v1011 = vpack.c.b16 %v855, %v849
        %v1012 = vpack.c.b16 %v856, %v850
        %v1013 = vpack.c.b16 %v857, %v851
        %v1014 = vpack.c.b16 %v864, %v858
        %v1015 = vpack.c.b16 %v865, %v859
        %v1016 = vpack.c.b16 %v866, %v860
        %v1017 = vpack.c.b16 %v867, %v861
        %v1018 = vpack.c.b16 %v868, %v862
        %v1019 = vpack.c.b16 %v869, %v863
        %v1020 = vpack.c.b16 %v876, %v870
        %v1021 = vpack.c.b16 %v877, %v871
        %v1022 = vpack.c.b16 %v878, %v872
        %v1023 = vpack.c.b16 %v879, %v873
        %v1024 = vpack.c.b16 %v880, %v874
        %v1025 = vpack.c.b16 %v881, %v875
        %v1026 = vpack.c.b16 %v888, %v882
        %v1027 = vpack.c.b16 %v889, %v883
        %v1028 = vpack.c.b16 %v890, %v884
        %v1029 = vpack.c.b16 %v891, %v885
        %v1030 = vpack.c.b16 %v892, %v886
        %v1031 = vpack.c.b16 %v893, %v887
        %v1032 = vpack.c.b16 %v900, %v894
        %v1033 = vpack.c.b16 %v901, %v895
        %v1034 = vpack.c.b16 %v902, %v896
        %v1035 = vpack.c.b16 %v903, %v897
        %v1036 = vpack.c.b16 %v904, %v898
        %v1037 = vpack.c.b16 %v905, %v899
        %v1038 = vpack.c.b16 %v912, %v906
        %v1039 = vpack.c.b16 %v913, %v907
        %v1040 = vpack.c.b16 %v914, %v908
        %v1041 = vpack.c.b16 %v915, %v909
        %v1042 = vpack.c.b16 %v916, %v910
        %v1043 = vpack.c.b16 %v917, %v911
        %v1044 = vpack.c.b16 %v924, %v918
        %v1045 = vpack.c.b16 %v925, %v919
        %v1046 = vpack.c.b16 %v926, %v920
        %v1047 = vpack.c.b16 %v927, %v921
        %v1048 = vpack.c.b16 %v928, %v922
        %v1049 = vpack.c.b16 %v929, %v923
        %v1050 = vpack.c.b16 %v936, %v930
        %v1051 = vpack.c.b16 %v937, %v931
        %v1052 = vpack.c.b16 %v938, %v932
        %v1053 = vpack.c.b16 %v939, %v933
        %v1054 = vpack.c.b16 %v940, %v934
        %v1055 = vpack.c.b16 %v941, %v935
        %v1056 = vpack.c.b16 %v948, %v942
        %v1057 = vpack.c.b16 %v949, %v943
        %v1058 = vpack.c.b16 %v950, %v944
        %v1059 = vpack.c.b16 %v951, %v945
        %v1060 = vpack.c.b16 %v952, %v946
        %v1061 = vpack.c.b16 %v953, %v947
        %v1062 = vpack.c.b16 %v960, %v954
        %v1063 = vpack.c.b16 %v961, %v955
        %v1064 = vpack.c.b16 %v962, %v956
        %v1065 = vpack.c.b16 %v963, %v957
        %v1066 = vpack.c.b16 %v964, %v958
        %v1067 = vpack.c.b16 %v965, %v959
        %v1068 = vpack.c.b16 %v972, %v966
        %v1069 = vpack.c.b16 %v973, %v967
        %v1070 = vpack.c.b16 %v974, %v968
        %v1071 = vpack.c.b16 %v975, %v969
        %v1072 = vpack.c.b16 %v976, %v970
        %v1073 = vpack.c.b16 %v977, %v971
        %1170 = vmatprep.subr.bf16.mxu0 %v979
        %1171 = vmatpush1.bf16.msra.mxu0 %v978
        %1172 = vmatprep.subr.bf16.mxu0 %v985
        %1173 = vmatpush1.bf16.msra.mxu0 %v984
        %1174 = vmatprep.subr.bf16.mxu0 %v991
        %1175 = vmatpush1.bf16.msra.mxu0 %v990
        %1176 = vmatprep.subr.bf16.mxu0 %v997
        %1177 = vmatpush1.bf16.msra.mxu0 %v996
        %1178 = vmatprep.subr.bf16.mxu0 %v1003
        %1179 = vmatpush1.bf16.msra.mxu0 %v1002
        %1180 = vmatprep.subr.bf16.mxu0 %v1009
        %1181 = vmatpush1.bf16.msra.mxu0 %v1008
        %1182 = vmatprep.subr.bf16.mxu0 %v1015
        %1183 = vmatpush1.bf16.msra.mxu0 %v1014
        %1184 = vmatprep.subr.bf16.mxu0 %v1021
        %1185 = vmatpush1.bf16.msra.mxu0 %v1020
        %1186 = vmatprep.subr.bf16.mxu0 %v1027
        %1187 = vmatpush1.bf16.msra.mxu0 %v1026
        %1188 = vmatprep.subr.bf16.mxu0 %v1033
        %1189 = vmatpush1.bf16.msra.mxu0 %v1032
        %1190 = vmatprep.subr.bf16.mxu0 %v1039
        %1191 = vmatpush1.bf16.msra.mxu0 %v1038
        %1192 = vmatprep.subr.bf16.mxu0 %v1045
        %1193 = vmatpush1.bf16.msra.mxu0 %v1044
        %1194 = vmatprep.subr.bf16.mxu0 %v1051
        %1195 = vmatpush1.bf16.msra.mxu0 %v1050
        %1196 = vmatprep.subr.bf16.mxu0 %v1057
        %1197 = vmatpush1.bf16.msra.mxu0 %v1056
        %1198 = vmatprep.subr.bf16.mxu0 %v1063
        %1199 = vmatpush1.bf16.msra.mxu0 %v1062
        %1200 = vmatprep.subr.bf16.mxu0 %v1069
        %1201 = vmatpush1.bf16.msra.mxu0 %v1068
        %1202 = vmatprep.mubr.bf16.mxu0 %v579
        %1203 = vmatmul.mubr.bf16.gmra.mrb[0].mxu0 %v578
        %v1204 = vpop.f32.mrb[0].mxu0
        %v1205 = vadd.f32 0.0, %v1204
        %v1206 = vpop.f32.mrb[0].mxu0
        %v1207 = vadd.f32 0.0, %v1206
        %v1208 = vpop.f32.mrb[0].mxu0
        %v1209 = vadd.f32 0.0, %v1208
        %v1210 = vpop.f32.mrb[0].mxu0
        %v1211 = vadd.f32 0.0, %v1210
        %1212 = vmatprep.mubr.bf16.mxu0 %v581
        %1213 = vmatmul.mubr.bf16.gmra.mrb[0].mxu0 %v580
        %v1214 = vpop.f32.mrb[0].mxu0
        %v1215 = vadd.f32 0.0, %v1214
        %v1216 = vpop.f32.mrb[0].mxu0
        %v1217 = vadd.f32 0.0, %v1216
        %v1218 = vpop.f32.mrb[0].mxu0
        %v1219 = vadd.f32 0.0, %v1218
        %v1220 = vpop.f32.mrb[0].mxu0
        %v1221 = vadd.f32 0.0, %v1220
        %1222 = vmatprep.mubr.bf16.mxu0 %v583
        %1223 = vmatmul.mubr.bf16.gmra.mrb[0].mxu0 %v582
        %v1224 = vpop.f32.mrb[0].mxu0
        %v1225 = vadd.f32 0.0, %v1224
        %v1226 = vpop.f32.mrb[0].mxu0
        %v1227 = vadd.f32 0.0, %v1226
        %v1228 = vpop.f32.mrb[0].mxu0
        %v1229 = vadd.f32 0.0, %v1228
        %v1230 = vpop.f32.mrb[0].mxu0
        %v1231 = vadd.f32 0.0, %v1230
        %1232 = vmatprep.mubr.bf16.mxu0 %v585
        %1233 = vmatmul.mubr.bf16.gmra.mrb[0].mxu0 %v584
        %v1234 = vpop.f32.mrb[0].mxu0
        %v1235 = vadd.f32 0.0, %v1234
        %v1236 = vpop.f32.mrb[0].mxu0
        %v1237 = vadd.f32 0.0, %v1236
        %v1238 = vpop.f32.mrb[0].mxu0
        %v1239 = vadd.f32 0.0, %v1238
        %v1240 = vpop.f32.mrb[0].mxu0
        %v1241 = vadd.f32 0.0, %v1240
        %1242 = vmatprep.mubr.bf16.mxu0 %v587
        %1243 = vmatmul.mubr.bf16.gmra.mrb[0].mxu0 %v586
        %v1244 = vpop.f32.mrb[0].mxu0
        %v1245 = vadd.f32 0.0, %v1244
        %v1246 = vpop.f32.mrb[0].mxu0
        %v1247 = vadd.f32 0.0, %v1246
        %v1248 = vpop.f32.mrb[0].mxu0
        %v1249 = vadd.f32 0.0, %v1248
        %v1250 = vpop.f32.mrb[0].mxu0
        %v1251 = vadd.f32 0.0, %v1250
        %1252 = vmatprep.mubr.bf16.mxu0 %v589
        %1253 = vmatmul.mubr.bf16.gmra.mrb[0].mxu0 %v588
        %v1254 = vpop.f32.mrb[0].mxu0
        %v1255 = vadd.f32 0.0, %v1254
        %v1256 = vpop.f32.mrb[0].mxu0
        %v1257 = vadd.f32 0.0, %v1256
        %v1258 = vpop.f32.mrb[0].mxu0
        %v1259 = vadd.f32 0.0, %v1258
        %v1260 = vpop.f32.mrb[0].mxu0
        %v1261 = vadd.f32 0.0, %v1260
        %1262 = vmatprep.mubr.bf16.mxu0 %v591
        %1263 = vmatmul.mubr.bf16.gmra.mrb[0].mxu0 %v590
        %v1264 = vpop.f32.mrb[0].mxu0
        %v1265 = vadd.f32 0.0, %v1264
        %v1266 = vpop.f32.mrb[0].mxu0
        %v1267 = vadd.f32 0.0, %v1266
        %v1268 = vpop.f32.mrb[0].mxu0
        %v1269 = vadd.f32 0.0, %v1268
        %v1270 = vpop.f32.mrb[0].mxu0
        %v1271 = vadd.f32 0.0, %v1270
        %1272 = vmatprep.mubr.bf16.mxu0 %v593
        %1273 = vmatmul.mubr.bf16.gmra.mrb[0].mxu0 %v592
        %v1274 = vpop.f32.mrb[0].mxu0
        %v1275 = vadd.f32 0.0, %v1274
        %v1276 = vpop.f32.mrb[0].mxu0
        %v1277 = vadd.f32 0.0, %v1276
        %v1278 = vpop.f32.mrb[0].mxu0
        %v1279 = vadd.f32 0.0, %v1278
        %v1280 = vpop.f32.mrb[0].mxu0
        %v1281 = vadd.f32 0.0, %v1280
        %1282 = vdwg.mxu0
        %1283 = vmatprep.subr.bf16.mxu0 %v981
        %1284 = vmatpush1.bf16.msra.mxu0 %v980
        %1285 = vmatprep.subr.bf16.mxu0 %v987
        %1286 = vmatpush1.bf16.msra.mxu0 %v986
        %1287 = vmatprep.subr.bf16.mxu0 %v993
        %1288 = vmatpush1.bf16.msra.mxu0 %v992
        %1289 = vmatprep.subr.bf16.mxu0 %v999
        %1290 = vmatpush1.bf16.msra.mxu0 %v998
        %1291 = vmatprep.subr.bf16.mxu0 %v1005
        %1292 = vmatpush1.bf16.msra.mxu0 %v1004
        %1293 = vmatprep.subr.bf16.mxu0 %v1011
        %1294 = vmatpush1.bf16.msra.mxu0 %v1010
        %1295 = vmatprep.subr.bf16.mxu0 %v1017
        %1296 = vmatpush1.bf16.msra.mxu0 %v1016
        %1297 = vmatprep.subr.bf16.mxu0 %v1023
        %1298 = vmatpush1.bf16.msra.mxu0 %v1022
        %1299 = vmatprep.subr.bf16.mxu0 %v1029
        %1300 = vmatpush1.bf16.msra.mxu0 %v1028
        %1301 = vmatprep.subr.bf16.mxu0 %v1035
        %1302 = vmatpush1.bf16.msra.mxu0 %v1034
        %1303 = vmatprep.subr.bf16.mxu0 %v1041
        %1304 = vmatpush1.bf16.msra.mxu0 %v1040
        %1305 = vmatprep.subr.bf16.mxu0 %v1047
        %1306 = vmatpush1.bf16.msra.mxu0 %v1046
        %1307 = vmatprep.subr.bf16.mxu0 %v1053
        %1308 = vmatpush1.bf16.msra.mxu0 %v1052
        %1309 = vmatprep.subr.bf16.mxu0 %v1059
        %1310 = vmatpush1.bf16.msra.mxu0 %v1058
        %1311 = vmatprep.subr.bf16.mxu0 %v1065
        %1312 = vmatpush1.bf16.msra.mxu0 %v1064
        %1313 = vmatprep.subr.bf16.mxu0 %v1071
        %1314 = vmatpush1.bf16.msra.mxu0 %v1070
        %1315 = vmatprep.mubr.bf16.mxu0 %v579
        %1316 = vmatmul.mubr.bf16.gmra.mrb[0].mxu0 %v578
        %v1317 = vpop.f32.mrb[0].mxu0
        %v1318 = vadd.f32 0.0, %v1317
        %v1319 = vpop.f32.mrb[0].mxu0
        %v1320 = vadd.f32 0.0, %v1319
        %v1321 = vpop.f32.mrb[0].mxu0
        %v1322 = vadd.f32 0.0, %v1321
        %v1323 = vpop.f32.mrb[0].mxu0
        %v1324 = vadd.f32 0.0, %v1323
        %1325 = vmatprep.mubr.bf16.mxu0 %v581
        %1326 = vmatmul.mubr.bf16.gmra.mrb[0].mxu0 %v580
        %v1327 = vpop.f32.mrb[0].mxu0
        %v1328 = vadd.f32 0.0, %v1327
        %v1329 = vpop.f32.mrb[0].mxu0
        %v1330 = vadd.f32 0.0, %v1329
        %v1331 = vpop.f32.mrb[0].mxu0
        %v1332 = vadd.f32 0.0, %v1331
        %v1333 = vpop.f32.mrb[0].mxu0
        %v1334 = vadd.f32 0.0, %v1333
        %1335 = vmatprep.mubr.bf16.mxu0 %v583
        %1336 = vmatmul.mubr.bf16.gmra.mrb[0].mxu0 %v582
        %v1337 = vpop.f32.mrb[0].mxu0
        %v1338 = vadd.f32 0.0, %v1337
        %v1339 = vpop.f32.mrb[0].mxu0
        %v1340 = vadd.f32 0.0, %v1339
        %v1341 = vpop.f32.mrb[0].mxu0
        %v1342 = vadd.f32 0.0, %v1341
        %v1343 = vpop.f32.mrb[0].mxu0
        %v1344 = vadd.f32 0.0, %v1343
        %1345 = vmatprep.mubr.bf16.mxu0 %v585
        %1346 = vmatmul.mubr.bf16.gmra.mrb[0].mxu0 %v584
        %v1347 = vpop.f32.mrb[0].mxu0
        %v1348 = vadd.f32 0.0, %v1347
        %v1349 = vpop.f32.mrb[0].mxu0
        %v1350 = vadd.f32 0.0, %v1349
        %v1351 = vpop.f32.mrb[0].mxu0
        %v1352 = vadd.f32 0.0, %v1351
        %v1353 = vpop.f32.mrb[0].mxu0
        %v1354 = vadd.f32 0.0, %v1353
        %1355 = vmatprep.mubr.bf16.mxu0 %v587
        %1356 = vmatmul.mubr.bf16.gmra.mrb[0].mxu0 %v586
        %v1357 = vpop.f32.mrb[0].mxu0
        %v1358 = vadd.f32 0.0, %v1357
        %v1359 = vpop.f32.mrb[0].mxu0
        %v1360 = vadd.f32 0.0, %v1359
        %v1361 = vpop.f32.mrb[0].mxu0
        %v1362 = vadd.f32 0.0, %v1361
        %v1363 = vpop.f32.mrb[0].mxu0
        %v1364 = vadd.f32 0.0, %v1363
        %1365 = vmatprep.mubr.bf16.mxu0 %v589
        %1366 = vmatmul.mubr.bf16.gmra.mrb[0].mxu0 %v588
        %v1367 = vpop.f32.mrb[0].mxu0
        %v1368 = vadd.f32 0.0, %v1367
        %v1369 = vpop.f32.mrb[0].mxu0
        %v1370 = vadd.f32 0.0, %v1369
        %v1371 = vpop.f32.mrb[0].mxu0
        %v1372 = vadd.f32 0.0, %v1371
        %v1373 = vpop.f32.mrb[0].mxu0
        %v1374 = vadd.f32 0.0, %v1373
        %1375 = vmatprep.mubr.bf16.mxu0 %v591
        %1376 = vmatmul.mubr.bf16.gmra.mrb[0].mxu0 %v590
        %v1377 = vpop.f32.mrb[0].mxu0
        %v1378 = vadd.f32 0.0, %v1377
        %v1379 = vpop.f32.mrb[0].mxu0
        %v1380 = vadd.f32 0.0, %v1379
        %v1381 = vpop.f32.mrb[0].mxu0
        %v1382 = vadd.f32 0.0, %v1381
        %v1383 = vpop.f32.mrb[0].mxu0
        %v1384 = vadd.f32 0.0, %v1383
        %1385 = vmatprep.mubr.bf16.mxu0 %v593
        %1386 = vmatmul.mubr.bf16.gmra.mrb[0].mxu0 %v592
        %v1387 = vpop.f32.mrb[0].mxu0
        %v1388 = vadd.f32 0.0, %v1387
        %v1389 = vpop.f32.mrb[0].mxu0
        %v1390 = vadd.f32 0.0, %v1389
        %v1391 = vpop.f32.mrb[0].mxu0
        %v1392 = vadd.f32 0.0, %v1391
        %v1393 = vpop.f32.mrb[0].mxu0
        %v1394 = vadd.f32 0.0, %v1393
        %1395 = vdwg.mxu0
        %1396 = vmatprep.subr.bf16.mxu0 %v983
        %1397 = vmatpush1.bf16.msra.mxu0 %v982
        %1398 = vmatprep.subr.bf16.mxu0 %v989
        %1399 = vmatpush1.bf16.msra.mxu0 %v988
        %1400 = vmatprep.subr.bf16.mxu0 %v995
        %1401 = vmatpush1.bf16.msra.mxu0 %v994
        %1402 = vmatprep.subr.bf16.mxu0 %v1001
        %1403 = vmatpush1.bf16.msra.mxu0 %v1000
        %1404 = vmatprep.subr.bf16.mxu0 %v1007
        %1405 = vmatpush1.bf16.msra.mxu0 %v1006
        %1406 = vmatprep.subr.bf16.mxu0 %v1013
        %1407 = vmatpush1.bf16.msra.mxu0 %v1012
        %1408 = vmatprep.subr.bf16.mxu0 %v1019
        %1409 = vmatpush1.bf16.msra.mxu0 %v1018
        %1410 = vmatprep.subr.bf16.mxu0 %v1025
        %1411 = vmatpush1.bf16.msra.mxu0 %v1024
        %1412 = vmatprep.subr.bf16.mxu0 %v1031
        %1413 = vmatpush1.bf16.msra.mxu0 %v1030
        %1414 = vmatprep.subr.bf16.mxu0 %v1037
        %1415 = vmatpush1.bf16.msra.mxu0 %v1036
        %1416 = vmatprep.subr.bf16.mxu0 %v1043
        %1417 = vmatpush1.bf16.msra.mxu0 %v1042
        %1418 = vmatprep.subr.bf16.mxu0 %v1049
        %1419 = vmatpush1.bf16.msra.mxu0 %v1048
        %1420 = vmatprep.subr.bf16.mxu0 %v1055
        %1421 = vmatpush1.bf16.msra.mxu0 %v1054
        %1422 = vmatprep.subr.bf16.mxu0 %v1061
        %1423 = vmatpush1.bf16.msra.mxu0 %v1060
        %1424 = vmatprep.subr.bf16.mxu0 %v1067
        %1425 = vmatpush1.bf16.msra.mxu0 %v1066
        %1426 = vmatprep.subr.bf16.mxu0 %v1073
        %1427 = vmatpush1.bf16.msra.mxu0 %v1072
        %1428 = vmatprep.mubr.bf16.mxu0 %v579
        %1429 = vmatmul.mubr.bf16.gmra.mrb[0].mxu0 %v578
        %v1430 = vpop.f32.mrb[0].mxu0
        %v1431 = vadd.f32 0.0, %v1430
        %v1432 = vpop.f32.mrb[0].mxu0
        %v1433 = vadd.f32 0.0, %v1432
        %v1434 = vpop.f32.mrb[0].mxu0
        %v1435 = vadd.f32 0.0, %v1434
        %v1436 = vpop.f32.mrb[0].mxu0
        %v1437 = vadd.f32 0.0, %v1436
        %1438 = vmatprep.mubr.bf16.mxu0 %v581
        %1439 = vmatmul.mubr.bf16.gmra.mrb[0].mxu0 %v580
        %v1440 = vpop.f32.mrb[0].mxu0
        %v1441 = vadd.f32 0.0, %v1440
        %v1442 = vpop.f32.mrb[0].mxu0
        %v1443 = vadd.f32 0.0, %v1442
        %v1444 = vpop.f32.mrb[0].mxu0
        %v1445 = vadd.f32 0.0, %v1444
        %v1446 = vpop.f32.mrb[0].mxu0
        %v1447 = vadd.f32 0.0, %v1446
        %1448 = vmatprep.mubr.bf16.mxu0 %v583
        %1449 = vmatmul.mubr.bf16.gmra.mrb[0].mxu0 %v582
        %v1450 = vpop.f32.mrb[0].mxu0
        %v1451 = vadd.f32 0.0, %v1450
        %v1452 = vpop.f32.mrb[0].mxu0
        %v1453 = vadd.f32 0.0, %v1452
        %v1454 = vpop.f32.mrb[0].mxu0
        %v1455 = vadd.f32 0.0, %v1454
        %v1456 = vpop.f32.mrb[0].mxu0
        %v1457 = vadd.f32 0.0, %v1456
        %1458 = vmatprep.mubr.bf16.mxu0 %v585
        %1459 = vmatmul.mubr.bf16.gmra.mrb[0].mxu0 %v584
        %v1460 = vpop.f32.mrb[0].mxu0
        %v1461 = vadd.f32 0.0, %v1460
        %v1462 = vpop.f32.mrb[0].mxu0
        %v1463 = vadd.f32 0.0, %v1462
        %v1464 = vpop.f32.mrb[0].mxu0
        %v1465 = vadd.f32 0.0, %v1464
        %v1466 = vpop.f32.mrb[0].mxu0
        %v1467 = vadd.f32 0.0, %v1466
        %1468 = vmatprep.mubr.bf16.mxu0 %v587
        %1469 = vmatmul.mubr.bf16.gmra.mrb[0].mxu0 %v586
        %v1470 = vpop.f32.mrb[0].mxu0
        %v1471 = vadd.f32 0.0, %v1470
        %v1472 = vpop.f32.mrb[0].mxu0
        %v1473 = vadd.f32 0.0, %v1472
        %v1474 = vpop.f32.mrb[0].mxu0
        %v1475 = vadd.f32 0.0, %v1474
        %v1476 = vpop.f32.mrb[0].mxu0
        %v1477 = vadd.f32 0.0, %v1476
        %1478 = vmatprep.mubr.bf16.mxu0 %v589
        %1479 = vmatmul.mubr.bf16.gmra.mrb[0].mxu0 %v588
        %v1480 = vpop.f32.mrb[0].mxu0
        %v1481 = vadd.f32 0.0, %v1480
        %v1482 = vpop.f32.mrb[0].mxu0
        %v1483 = vadd.f32 0.0, %v1482
        %v1484 = vpop.f32.mrb[0].mxu0
        %v1485 = vadd.f32 0.0, %v1484
        %v1486 = vpop.f32.mrb[0].mxu0
        %v1487 = vadd.f32 0.0, %v1486
        %1488 = vmatprep.mubr.bf16.mxu0 %v591
        %1489 = vmatmul.mubr.bf16.gmra.mrb[0].mxu0 %v590
        %v1490 = vpop.f32.mrb[0].mxu0
        %v1491 = vadd.f32 0.0, %v1490
        %v1492 = vpop.f32.mrb[0].mxu0
        %v1493 = vadd.f32 0.0, %v1492
        %v1494 = vpop.f32.mrb[0].mxu0
        %v1495 = vadd.f32 0.0, %v1494
        %v1496 = vpop.f32.mrb[0].mxu0
        %v1497 = vadd.f32 0.0, %v1496
        %1498 = vmatprep.mubr.bf16.mxu0 %v593
        %1499 = vmatmul.mubr.bf16.gmra.mrb[0].mxu0 %v592
        %v1500 = vpop.f32.mrb[0].mxu0
        %v1501 = vadd.f32 0.0, %v1500
        %v1502 = vpop.f32.mrb[0].mxu0
        %v1503 = vadd.f32 0.0, %v1502
        %v1504 = vpop.f32.mrb[0].mxu0
        %v1505 = vadd.f32 0.0, %v1504
        %v1506 = vpop.f32.mrb[0].mxu0
        %v1507 = vadd.f32 0.0, %v1506
        %1508 = vdwg.mxu0
        %1509 = vst [vmem:[#allocation2] sm:$0xff] %v1205
        %1510 = vst [vmem:[#allocation2 + $0x8] sm:$0xff] %v1207
        %1511 = vst [vmem:[#allocation2 + $0x10] sm:$0xff] %v1318
        %1512 = vst [vmem:[#allocation2 + $0x18] sm:$0xff] %v1320
        %1513 = vst [vmem:[#allocation2 + $0x20] sm:$0xff] %v1431
        %1514 = vst [vmem:[#allocation2 + $0x28] sm:$0xff] %v1433
        %1515 = vst [vmem:[#allocation2 + $0x30] sm:$0xff] %v1209
        %1516 = vst [vmem:[#allocation2 + $0x38] sm:$0xff] %v1211
        %1517 = vst [vmem:[#allocation2 + $0x40] sm:$0xff] %v1322
        %1518 = vst [vmem:[#allocation2 + $0x48] sm:$0xff] %v1324
        %1519 = vst [vmem:[#allocation2 + $0x50] sm:$0xff] %v1435
        %1520 = vst [vmem:[#allocation2 + $0x58] sm:$0xff] %v1437
        %1521 = vst [vmem:[#allocation2 + $0x60] sm:$0xff] %v1215
        %1522 = vst [vmem:[#allocation2 + $0x68] sm:$0xff] %v1217
        %1523 = vst [vmem:[#allocation2 + $0x70] sm:$0xff] %v1328
        %1524 = vst [vmem:[#allocation2 + $0x78] sm:$0xff] %v1330
        %1525 = vst [vmem:[#allocation2 + $0x80] sm:$0xff] %v1441
        %1526 = vst [vmem:[#allocation2 + $0x88] sm:$0xff] %v1443
        %1527 = vst [vmem:[#allocation2 + $0x90] sm:$0xff] %v1219
        %1528 = vst [vmem:[#allocation2 + $0x98] sm:$0xff] %v1221
        %1529 = vst [vmem:[#allocation2 + $0xa0] sm:$0xff] %v1332
        %1530 = vst [vmem:[#allocation2 + $0xa8] sm:$0xff] %v1334
        %1531 = vst [vmem:[#allocation2 + $0xb0] sm:$0xff] %v1445
        %1532 = vst [vmem:[#allocation2 + $0xb8] sm:$0xff] %v1447
        %1533 = vst [vmem:[#allocation2 + $0xc0] sm:$0xff] %v1225
        %1534 = vst [vmem:[#allocation2 + $0xc8] sm:$0xff] %v1227
        %1535 = vst [vmem:[#allocation2 + $0xd0] sm:$0xff] %v1338
        %1536 = vst [vmem:[#allocation2 + $0xd8] sm:$0xff] %v1340
        %1537 = vst [vmem:[#allocation2 + $0xe0] sm:$0xff] %v1451
        %1538 = vst [vmem:[#allocation2 + $0xe8] sm:$0xff] %v1453
        %1539 = vst [vmem:[#allocation2 + $0xf0] sm:$0xff] %v1229
        %1540 = vst [vmem:[#allocation2 + $0xf8] sm:$0xff] %v1231
        %1541 = vst [vmem:[#allocation2 + $0x100] sm:$0xff] %v1342
        %1542 = vst [vmem:[#allocation2 + $0x108] sm:$0xff] %v1344
        %1543 = vst [vmem:[#allocation2 + $0x110] sm:$0xff] %v1455
        %1544 = vst [vmem:[#allocation2 + $0x118] sm:$0xff] %v1457
        %1545 = vst [vmem:[#allocation2 + $0x120] sm:$0xff] %v1235
        %1546 = vst [vmem:[#allocation2 + $0x128] sm:$0xff] %v1237
        %1547 = vst [vmem:[#allocation2 + $0x130] sm:$0xff] %v1348
        %1548 = vst [vmem:[#allocation2 + $0x138] sm:$0xff] %v1350
        %1549 = vst [vmem:[#allocation2 + $0x140] sm:$0xff] %v1461
        %1550 = vst [vmem:[#allocation2 + $0x148] sm:$0xff] %v1463
        %1551 = vst [vmem:[#allocation2 + $0x150] sm:$0xff] %v1239
        %1552 = vst [vmem:[#allocation2 + $0x158] sm:$0xff] %v1241
        %1553 = vst [vmem:[#allocation2 + $0x160] sm:$0xff] %v1352
        %1554 = vst [vmem:[#allocation2 + $0x168] sm:$0xff] %v1354
        %1555 = vst [vmem:[#allocation2 + $0x170] sm:$0xff] %v1465
        %1556 = vst [vmem:[#allocation2 + $0x178] sm:$0xff] %v1467
        %1557 = vst [vmem:[#allocation2 + $0x180] sm:$0xff] %v1245
        %1558 = vst [vmem:[#allocation2 + $0x188] sm:$0xff] %v1247
        %1559 = vst [vmem:[#allocation2 + $0x190] sm:$0xff] %v1358
        %1560 = vst [vmem:[#allocation2 + $0x198] sm:$0xff] %v1360
        %1561 = vst [vmem:[#allocation2 + $0x1a0] sm:$0xff] %v1471
        %1562 = vst [vmem:[#allocation2 + $0x1a8] sm:$0xff] %v1473
        %1563 = vst [vmem:[#allocation2 + $0x1b0] sm:$0xff] %v1249
        %1564 = vst [vmem:[#allocation2 + $0x1b8] sm:$0xff] %v1251
        %1565 = vst [vmem:[#allocation2 + $0x1c0] sm:$0xff] %v1362
        %1566 = vst [vmem:[#allocation2 + $0x1c8] sm:$0xff] %v1364
        %1567 = vst [vmem:[#allocation2 + $0x1d0] sm:$0xff] %v1475
        %1568 = vst [vmem:[#allocation2 + $0x1d8] sm:$0xff] %v1477
        %1569 = vst [vmem:[#allocation2 + $0x1e0] sm:$0xff] %v1255
        %1570 = vst [vmem:[#allocation2 + $0x1e8] sm:$0xff] %v1257
        %1571 = vst [vmem:[#allocation2 + $0x1f0] sm:$0xff] %v1368
        %1572 = vst [vmem:[#allocation2 + $0x1f8] sm:$0xff] %v1370
        %1573 = vst [vmem:[#allocation2 + $0x200] sm:$0xff] %v1481
        %1574 = vst [vmem:[#allocation2 + $0x208] sm:$0xff] %v1483
        %1575 = vst [vmem:[#allocation2 + $0x210] sm:$0xff] %v1259
        %1576 = vst [vmem:[#allocation2 + $0x218] sm:$0xff] %v1261
        %1577 = vst [vmem:[#allocation2 + $0x220] sm:$0xff] %v1372
        %1578 = vst [vmem:[#allocation2 + $0x228] sm:$0xff] %v1374
        %1579 = vst [vmem:[#allocation2 + $0x230] sm:$0xff] %v1485
        %1580 = vst [vmem:[#allocation2 + $0x238] sm:$0xff] %v1487
        %1581 = vst [vmem:[#allocation2 + $0x240] sm:$0xff] %v1265
        %1582 = vst [vmem:[#allocation2 + $0x248] sm:$0xff] %v1267
        %1583 = vst [vmem:[#allocation2 + $0x250] sm:$0xff] %v1378
        %1584 = vst [vmem:[#allocation2 + $0x258] sm:$0xff] %v1380
        %1585 = vst [vmem:[#allocation2 + $0x260] sm:$0xff] %v1491
        %1586 = vst [vmem:[#allocation2 + $0x268] sm:$0xff] %v1493
        %1587 = vst [vmem:[#allocation2 + $0x270] sm:$0xff] %v1269
        %1588 = vst [vmem:[#allocation2 + $0x278] sm:$0xff] %v1271
        %1589 = vst [vmem:[#allocation2 + $0x280] sm:$0xff] %v1382
        %1590 = vst [vmem:[#allocation2 + $0x288] sm:$0xff] %v1384
        %1591 = vst [vmem:[#allocation2 + $0x290] sm:$0xff] %v1495
        %1592 = vst [vmem:[#allocation2 + $0x298] sm:$0xff] %v1497
        %1593 = vst [vmem:[#allocation2 + $0x2a0] sm:$0xff] %v1275
        %1594 = vst [vmem:[#allocation2 + $0x2a8] sm:$0xff] %v1277
        %1595 = vst [vmem:[#allocation2 + $0x2b0] sm:$0xff] %v1388
        %1596 = vst [vmem:[#allocation2 + $0x2b8] sm:$0xff] %v1390
        %1597 = vst [vmem:[#allocation2 + $0x2c0] sm:$0xff] %v1501
        %1598 = vst [vmem:[#allocation2 + $0x2c8] sm:$0xff] %v1503
        %1599 = vst [vmem:[#allocation2 + $0x2d0] sm:$0xff] %v1279
        %1600 = vst [vmem:[#allocation2 + $0x2d8] sm:$0xff] %v1281
        %1601 = vst [vmem:[#allocation2 + $0x2e0] sm:$0xff] %v1392
        %1602 = vst [vmem:[#allocation2 + $0x2e8] sm:$0xff] %v1394
        %1603 = vst [vmem:[#allocation2 + $0x2f0] sm:$0xff] %v1505
        %1604 = vst [vmem:[#allocation2 + $0x2f8] sm:$0xff] %v1507
        %1605 = vst [vmem:[#allocation3] sm:$0xff] 0.0
        %1606 = vst [vmem:[#allocation3 + $0x8] sm:$0xff] 0.0
        %1607 = vst [vmem:[#allocation3 + $0x10] sm:$0xff] 0.0
        %1608 = vst [vmem:[#allocation3 + $0x18] sm:$0xff] 0.0
        %1609 = vst [vmem:[#allocation3 + $0x20] sm:$0xff] 0.0
        %1610 = vst [vmem:[#allocation3 + $0x28] sm:$0xff] 0.0
        %1611 = vst [vmem:[#allocation3 + $0x30] sm:$0xff] 0.0
        %1612 = vst [vmem:[#allocation3 + $0x38] sm:$0xff] 0.0
        %1613 = vst [vmem:[#allocation3 + $0x40] sm:$0xff] 0.0
        %1614 = vst [vmem:[#allocation3 + $0x48] sm:$0xff] 0.0
        %1615 = vst [vmem:[#allocation3 + $0x50] sm:$0xff] 0.0
        %1616 = vst [vmem:[#allocation3 + $0x58] sm:$0xff] 0.0
        %1617 = vst [vmem:[#allocation3 + $0x60] sm:$0xff] 0.0
        %1618 = vst [vmem:[#allocation3 + $0x68] sm:$0xff] 0.0
        %1619 = vst [vmem:[#allocation3 + $0x70] sm:$0xff] 0.0
        %1620 = vst [vmem:[#allocation3 + $0x78] sm:$0xff] 0.0
        %1621 = vst [vmem:[#allocation3 + $0x80] sm:$0xff] 0.0
        %1622 = vst [vmem:[#allocation3 + $0x88] sm:$0xff] 0.0
        %1623 = vst [vmem:[#allocation3 + $0x90] sm:$0xff] 0.0
        %1624 = vst [vmem:[#allocation3 + $0x98] sm:$0xff] 0.0
        %1625 = vst [vmem:[#allocation3 + $0xa0] sm:$0xff] 0.0
        %1626 = vst [vmem:[#allocation3 + $0xa8] sm:$0xff] 0.0
        %1627 = vst [vmem:[#allocation3 + $0xb0] sm:$0xff] 0.0
        %1628 = vst [vmem:[#allocation3 + $0xb8] sm:$0xff] 0.0
        %1629 = vst [vmem:[#allocation3 + $0xc0] sm:$0xff] 0.0
        %1630 = vst [vmem:[#allocation3 + $0xc8] sm:$0xff] 0.0
        %1631 = vst [vmem:[#allocation3 + $0xd0] sm:$0xff] 0.0
        %1632 = vst [vmem:[#allocation3 + $0xd8] sm:$0xff] 0.0
        %1633 = vst [vmem:[#allocation3 + $0xe0] sm:$0xff] 0.0
        %1634 = vst [vmem:[#allocation3 + $0xe8] sm:$0xff] 0.0
        %1635 = vst [vmem:[#allocation3 + $0xf0] sm:$0xff] 0.0
        %1636 = vst [vmem:[#allocation3 + $0xf8] sm:$0xff] 0.0
        loop: start=0, step=1, limit=2
        $region77: #{block_forward.1} parent=47 // loop_pre_header
          _
        $region78: #{block_forward.1} parent=47 // loop_header
          %s1638 = sphi 0, %s1642
          %p1639 = scmp.ge.s32.totalorder %s1638, 2
        $region79: #{block_forward.1} parent=47 // loop_header_branch
          %1641 = sbr.rel (%p1639) target = $region83
        $region80: #{block_forward.1} parent=47 // loop_body
          %s1643 = smul.u32 %s1638, 128
          %s1644 = sadd.s32 %s1643, 256
          %s1645 = sadd.s32 %s1643, 512
          %s1646 = sshra.s32 %s1643, 7
          %s1647 = sand.u32 %s1643, 127
          %s1648 = smul.addr %s1646, 8
          %s1649 = scalar_lea.vmem [#allocation2], %s1648
          %v1650 = vld [vmem:[%s1649] sm:$0xff]
          %v1651 = vld [vmem:[%s1649 + $0x30] sm:$0xff]
          %v1652 = vld [vmem:[%s1649 + $0x60] sm:$0xff]
          %v1653 = vld [vmem:[%s1649 + $0x90] sm:$0xff]
          %v1654 = vld [vmem:[%s1649 + $0xc0] sm:$0xff]
          %v1655 = vld [vmem:[%s1649 + $0xf0] sm:$0xff]
          %v1656 = vld [vmem:[%s1649 + $0x120] sm:$0xff]
          %v1657 = vld [vmem:[%s1649 + $0x150] sm:$0xff]
          %v1658 = vld [vmem:[%s1649 + $0x180] sm:$0xff]
          %v1659 = vld [vmem:[%s1649 + $0x1b0] sm:$0xff]
          %v1660 = vld [vmem:[%s1649 + $0x1e0] sm:$0xff]
          %v1661 = vld [vmem:[%s1649 + $0x210] sm:$0xff]
          %v1662 = vld [vmem:[%s1649 + $0x240] sm:$0xff]
          %v1663 = vld [vmem:[%s1649 + $0x270] sm:$0xff]
          %v1664 = vld [vmem:[%s1649 + $0x2a0] sm:$0xff]
          %v1665 = vld [vmem:[%s1649 + $0x2d0] sm:$0xff]
          %v1666 = vmul.f32 %v1650, %v1650
          %v1667 = vmul.f32 %v1651, %v1651
          %v1668 = vmul.f32 %v1652, %v1652
          %v1669 = vmul.f32 %v1653, %v1653
          %v1670 = vmul.f32 %v1654, %v1654
          %v1671 = vmul.f32 %v1655, %v1655
          %v1672 = vmul.f32 %v1656, %v1656
          %v1673 = vmul.f32 %v1657, %v1657
          %v1674 = vmul.f32 %v1658, %v1658
          %v1675 = vmul.f32 %v1659, %v1659
          %v1676 = vmul.f32 %v1660, %v1660
          %v1677 = vmul.f32 %v1661, %v1661
          %v1678 = vmul.f32 %v1662, %v1662
          %v1679 = vmul.f32 %v1663, %v1663
          %v1680 = vmul.f32 %v1664, %v1664
          %v1681 = vmul.f32 %v1665, %v1665
          %1682 = vadd.xlane.f32.xlu0 %v1666
          %v1683 = vpop.xlane.xlu0 %1682
          %1684 = vadd.xlane.f32.xlu0 %v1667
          %v1685 = vpop.xlane.xlu0 %1684
          %1686 = vadd.xlane.f32.xlu0 %v1668
          %v1687 = vpop.xlane.xlu0 %1686
          %1688 = vadd.xlane.f32.xlu0 %v1669
          %v1689 = vpop.xlane.xlu0 %1688
          %1690 = vadd.xlane.f32.xlu0 %v1670
          %v1691 = vpop.xlane.xlu0 %1690
          %1692 = vadd.xlane.f32.xlu0 %v1671
          %v1693 = vpop.xlane.xlu0 %1692
          %1694 = vadd.xlane.f32.xlu0 %v1672
          %v1695 = vpop.xlane.xlu0 %1694
          %1696 = vadd.xlane.f32.xlu0 %v1673
          %v1697 = vpop.xlane.xlu0 %1696
          %1698 = vadd.xlane.f32.xlu0 %v1674
          %v1699 = vpop.xlane.xlu0 %1698
          %1700 = vadd.xlane.f32.xlu0 %v1675
          %v1701 = vpop.xlane.xlu0 %1700
          %1702 = vadd.xlane.f32.xlu0 %v1676
          %v1703 = vpop.xlane.xlu0 %1702
          %1704 = vadd.xlane.f32.xlu0 %v1677
          %v1705 = vpop.xlane.xlu0 %1704
          %1706 = vadd.xlane.f32.xlu0 %v1678
          %v1707 = vpop.xlane.xlu0 %1706
          %1708 = vadd.xlane.f32.xlu0 %v1679
          %v1709 = vpop.xlane.xlu0 %1708
          %1710 = vadd.xlane.f32.xlu0 %v1680
          %v1711 = vpop.xlane.xlu0 %1710
          %1712 = vadd.xlane.f32.xlu0 %v1681
          %v1713 = vpop.xlane.xlu0 %1712
          %v1714 = vrcp.pop 128.0
          %v1715 = vmul.f32 %v1683, %v1714
          %v1716 = vmul.f32 %v1685, %v1714
          %v1717 = vmul.f32 %v1687, %v1714
          %v1718 = vmul.f32 %v1689, %v1714
          %v1719 = vmul.f32 %v1691, %v1714
          %v1720 = vmul.f32 %v1693, %v1714
          %v1721 = vmul.f32 %v1695, %v1714
          %v1722 = vmul.f32 %v1697, %v1714
          %v1723 = vmul.f32 %v1699, %v1714
          %v1724 = vmul.f32 %v1701, %v1714
          %v1725 = vmul.f32 %v1703, %v1714
          %v1726 = vmul.f32 %v1705, %v1714
          %v1727 = vmul.f32 %v1707, %v1714
          %v1728 = vmul.f32 %v1709, %v1714
          %v1729 = vmul.f32 %v1711, %v1714
          %v1730 = vmul.f32 %v1713, %v1714
          %v1731 = vadd.f32 %v1715, 1.1920929e-07
          %v1732 = vadd.f32 %v1716, 1.1920929e-07
          %v1733 = vadd.f32 %v1717, 1.1920929e-07
          %v1734 = vadd.f32 %v1718, 1.1920929e-07
          %v1735 = vadd.f32 %v1719, 1.1920929e-07
          %v1736 = vadd.f32 %v1720, 1.1920929e-07
          %v1737 = vadd.f32 %v1721, 1.1920929e-07
          %v1738 = vadd.f32 %v1722, 1.1920929e-07
          %v1739 = vadd.f32 %v1723, 1.1920929e-07
          %v1740 = vadd.f32 %v1724, 1.1920929e-07
          %v1741 = vadd.f32 %v1725, 1.1920929e-07
          %v1742 = vadd.f32 %v1726, 1.1920929e-07
          %v1743 = vadd.f32 %v1727, 1.1920929e-07
          %v1744 = vadd.f32 %v1728, 1.1920929e-07
          %v1745 = vadd.f32 %v1729, 1.1920929e-07
          %v1746 = vadd.f32 %v1730, 1.1920929e-07
          %v1747 = vrsqrt.pop %v1731
          %v1748 = vrsqrt.pop %v1732
          %v1749 = vrsqrt.pop %v1733
          %v1750 = vrsqrt.pop %v1734
          %v1751 = vrsqrt.pop %v1735
          %v1752 = vrsqrt.pop %v1736
          %v1753 = vrsqrt.pop %v1737
          %v1754 = vrsqrt.pop %v1738
          %v1755 = vrsqrt.pop %v1739
          %v1756 = vrsqrt.pop %v1740
          %v1757 = vrsqrt.pop %v1741
          %v1758 = vrsqrt.pop %v1742
          %v1759 = vrsqrt.pop %v1743
          %v1760 = vrsqrt.pop %v1744
          %v1761 = vrsqrt.pop %v1745
          %v1762 = vrsqrt.pop %v1746
          %v1763 = vmul.f32 %v1650, %v1747
          %v1764 = vmul.f32 %v1651, %v1748
          %v1765 = vmul.f32 %v1652, %v1749
          %v1766 = vmul.f32 %v1653, %v1750
          %v1767 = vmul.f32 %v1654, %v1751
          %v1768 = vmul.f32 %v1655, %v1752
          %v1769 = vmul.f32 %v1656, %v1753
          %v1770 = vmul.f32 %v1657, %v1754
          %v1771 = vmul.f32 %v1658, %v1755
          %v1772 = vmul.f32 %v1659, %v1756
          %v1773 = vmul.f32 %v1660, %v1757
          %v1774 = vmul.f32 %v1661, %v1758
          %v1775 = vmul.f32 %v1662, %v1759
          %v1776 = vmul.f32 %v1663, %v1760
          %v1777 = vmul.f32 %v1664, %v1761
          %v1778 = vmul.f32 %v1665, %v1762
          %s1779 = sshra.s32 %s1644, 7
          %s1780 = sand.u32 %s1644, 127
          %s1781 = smul.addr %s1779, 8
          %s1782 = scalar_lea.vmem [#allocation2], %s1781
          %v1783 = vld [vmem:[%s1782] sm:$0xff]
          %v1784 = vld [vmem:[%s1782 + $0x30] sm:$0xff]
          %v1785 = vld [vmem:[%s1782 + $0x60] sm:$0xff]
          %v1786 = vld [vmem:[%s1782 + $0x90] sm:$0xff]
          %v1787 = vld [vmem:[%s1782 + $0xc0] sm:$0xff]
          %v1788 = vld [vmem:[%s1782 + $0xf0] sm:$0xff]
          %v1789 = vld [vmem:[%s1782 + $0x120] sm:$0xff]
          %v1790 = vld [vmem:[%s1782 + $0x150] sm:$0xff]
          %v1791 = vld [vmem:[%s1782 + $0x180] sm:$0xff]
          %v1792 = vld [vmem:[%s1782 + $0x1b0] sm:$0xff]
          %v1793 = vld [vmem:[%s1782 + $0x1e0] sm:$0xff]
          %v1794 = vld [vmem:[%s1782 + $0x210] sm:$0xff]
          %v1795 = vld [vmem:[%s1782 + $0x240] sm:$0xff]
          %v1796 = vld [vmem:[%s1782 + $0x270] sm:$0xff]
          %v1797 = vld [vmem:[%s1782 + $0x2a0] sm:$0xff]
          %v1798 = vld [vmem:[%s1782 + $0x2d0] sm:$0xff]
          %v1799 = vmul.f32 %v1783, %v1783
          %v1800 = vmul.f32 %v1784, %v1784
          %v1801 = vmul.f32 %v1785, %v1785
          %v1802 = vmul.f32 %v1786, %v1786
          %v1803 = vmul.f32 %v1787, %v1787
          %v1804 = vmul.f32 %v1788, %v1788
          %v1805 = vmul.f32 %v1789, %v1789
          %v1806 = vmul.f32 %v1790, %v1790
          %v1807 = vmul.f32 %v1791, %v1791
          %v1808 = vmul.f32 %v1792, %v1792
          %v1809 = vmul.f32 %v1793, %v1793
          %v1810 = vmul.f32 %v1794, %v1794
          %v1811 = vmul.f32 %v1795, %v1795
          %v1812 = vmul.f32 %v1796, %v1796
          %v1813 = vmul.f32 %v1797, %v1797
          %v1814 = vmul.f32 %v1798, %v1798
          %1815 = vadd.xlane.f32.xlu0 %v1799
          %v1816 = vpop.xlane.xlu0 %1815
          %1817 = vadd.xlane.f32.xlu0 %v1800
          %v1818 = vpop.xlane.xlu0 %1817
          %1819 = vadd.xlane.f32.xlu0 %v1801
          %v1820 = vpop.xlane.xlu0 %1819
          %1821 = vadd.xlane.f32.xlu0 %v1802
          %v1822 = vpop.xlane.xlu0 %1821
          %1823 = vadd.xlane.f32.xlu0 %v1803
          %v1824 = vpop.xlane.xlu0 %1823
          %1825 = vadd.xlane.f32.xlu0 %v1804
          %v1826 = vpop.xlane.xlu0 %1825
          %1827 = vadd.xlane.f32.xlu0 %v1805
          %v1828 = vpop.xlane.xlu0 %1827
          %1829 = vadd.xlane.f32.xlu0 %v1806
          %v1830 = vpop.xlane.xlu0 %1829
          %1831 = vadd.xlane.f32.xlu0 %v1807
          %v1832 = vpop.xlane.xlu0 %1831
          %1833 = vadd.xlane.f32.xlu0 %v1808
          %v1834 = vpop.xlane.xlu0 %1833
          %1835 = vadd.xlane.f32.xlu0 %v1809
          %v1836 = vpop.xlane.xlu0 %1835
          %1837 = vadd.xlane.f32.xlu0 %v1810
          %v1838 = vpop.xlane.xlu0 %1837
          %1839 = vadd.xlane.f32.xlu0 %v1811
          %v1840 = vpop.xlane.xlu0 %1839
          %1841 = vadd.xlane.f32.xlu0 %v1812
          %v1842 = vpop.xlane.xlu0 %1841
          %1843 = vadd.xlane.f32.xlu0 %v1813
          %v1844 = vpop.xlane.xlu0 %1843
          %1845 = vadd.xlane.f32.xlu0 %v1814
          %v1846 = vpop.xlane.xlu0 %1845
          %v1847 = vmul.f32 %v1816, %v1714
          %v1848 = vmul.f32 %v1818, %v1714
          %v1849 = vmul.f32 %v1820, %v1714
          %v1850 = vmul.f32 %v1822, %v1714
          %v1851 = vmul.f32 %v1824, %v1714
          %v1852 = vmul.f32 %v1826, %v1714
          %v1853 = vmul.f32 %v1828, %v1714
          %v1854 = vmul.f32 %v1830, %v1714
          %v1855 = vmul.f32 %v1832, %v1714
          %v1856 = vmul.f32 %v1834, %v1714
          %v1857 = vmul.f32 %v1836, %v1714
          %v1858 = vmul.f32 %v1838, %v1714
          %v1859 = vmul.f32 %v1840, %v1714
          %v1860 = vmul.f32 %v1842, %v1714
          %v1861 = vmul.f32 %v1844, %v1714
          %v1862 = vmul.f32 %v1846, %v1714
          %v1863 = vadd.f32 %v1847, 1.1920929e-07
          %v1864 = vadd.f32 %v1848, 1.1920929e-07
          %v1865 = vadd.f32 %v1849, 1.1920929e-07
          %v1866 = vadd.f32 %v1850, 1.1920929e-07
          %v1867 = vadd.f32 %v1851, 1.1920929e-07
          %v1868 = vadd.f32 %v1852, 1.1920929e-07
          %v1869 = vadd.f32 %v1853, 1.1920929e-07
          %v1870 = vadd.f32 %v1854, 1.1920929e-07
          %v1871 = vadd.f32 %v1855, 1.1920929e-07
          %v1872 = vadd.f32 %v1856, 1.1920929e-07
          %v1873 = vadd.f32 %v1857, 1.1920929e-07
          %v1874 = vadd.f32 %v1858, 1.1920929e-07
          %v1875 = vadd.f32 %v1859, 1.1920929e-07
          %v1876 = vadd.f32 %v1860, 1.1920929e-07
          %v1877 = vadd.f32 %v1861, 1.1920929e-07
          %v1878 = vadd.f32 %v1862, 1.1920929e-07
          %v1879 = vrsqrt.pop %v1863
          %v1880 = vrsqrt.pop %v1864
          %v1881 = vrsqrt.pop %v1865
          %v1882 = vrsqrt.pop %v1866
          %v1883 = vrsqrt.pop %v1867
          %v1884 = vrsqrt.pop %v1868
          %v1885 = vrsqrt.pop %v1869
          %v1886 = vrsqrt.pop %v1870
          %v1887 = vrsqrt.pop %v1871
          %v1888 = vrsqrt.pop %v1872
          %v1889 = vrsqrt.pop %v1873
          %v1890 = vrsqrt.pop %v1874
          %v1891 = vrsqrt.pop %v1875
          %v1892 = vrsqrt.pop %v1876
          %v1893 = vrsqrt.pop %v1877
          %v1894 = vrsqrt.pop %v1878
          %v1895 = vmul.f32 %v1783, %v1879
          %v1896 = vmul.f32 %v1784, %v1880
          %v1897 = vmul.f32 %v1785, %v1881
          %v1898 = vmul.f32 %v1786, %v1882
          %v1899 = vmul.f32 %v1787, %v1883
          %v1900 = vmul.f32 %v1788, %v1884
          %v1901 = vmul.f32 %v1789, %v1885
          %v1902 = vmul.f32 %v1790, %v1886
          %v1903 = vmul.f32 %v1791, %v1887
          %v1904 = vmul.f32 %v1792, %v1888
          %v1905 = vmul.f32 %v1793, %v1889
          %v1906 = vmul.f32 %v1794, %v1890
          %v1907 = vmul.f32 %v1795, %v1891
          %v1908 = vmul.f32 %v1796, %v1892
          %v1909 = vmul.f32 %v1797, %v1893
          %v1910 = vmul.f32 %v1798, %v1894
          %s1911 = sshra.s32 %s1645, 7
          %s1912 = sand.u32 %s1645, 127
          %s1913 = smul.addr %s1911, 8
          %s1914 = scalar_lea.vmem [#allocation2], %s1913
          %v1915 = vld [vmem:[%s1914] sm:$0xff]
          %v1916 = vld [vmem:[%s1914 + $0x30] sm:$0xff]
          %v1917 = vld [vmem:[%s1914 + $0x60] sm:$0xff]
          %v1918 = vld [vmem:[%s1914 + $0x90] sm:$0xff]
          %v1919 = vld [vmem:[%s1914 + $0xc0] sm:$0xff]
          %v1920 = vld [vmem:[%s1914 + $0xf0] sm:$0xff]
          %v1921 = vld [vmem:[%s1914 + $0x120] sm:$0xff]
          %v1922 = vld [vmem:[%s1914 + $0x150] sm:$0xff]
          %v1923 = vld [vmem:[%s1914 + $0x180] sm:$0xff]
          %v1924 = vld [vmem:[%s1914 + $0x1b0] sm:$0xff]
          %v1925 = vld [vmem:[%s1914 + $0x1e0] sm:$0xff]
          %v1926 = vld [vmem:[%s1914 + $0x210] sm:$0xff]
          %v1927 = vld [vmem:[%s1914 + $0x240] sm:$0xff]
          %v1928 = vld [vmem:[%s1914 + $0x270] sm:$0xff]
          %v1929 = vld [vmem:[%s1914 + $0x2a0] sm:$0xff]
          %v1930 = vld [vmem:[%s1914 + $0x2d0] sm:$0xff]
          %v1931 = vld [vmem:[#allocation13] sm:$0xff]
          %v1932 = vld [vmem:[#allocation13 + $0x8] sm:$0xff]
          %v1933 = vld [vmem:[#allocation13 + $0x10] sm:$0xff]
          %v1934 = vld [vmem:[#allocation13 + $0x18] sm:$0xff]
          %v1935 = vld [vmem:[#allocation13 + $0x20] sm:$0xff]
          %v1936 = vld [vmem:[#allocation13 + $0x28] sm:$0xff]
          %v1937 = vld [vmem:[#allocation13 + $0x30] sm:$0xff]
          %v1938 = vld [vmem:[#allocation13 + $0x38] sm:$0xff]
          %v1939 = vld [vmem:[#allocation13 + $0x40] sm:$0xff]
          %v1940 = vld [vmem:[#allocation13 + $0x48] sm:$0xff]
          %v1941 = vld [vmem:[#allocation13 + $0x50] sm:$0xff]
          %v1942 = vld [vmem:[#allocation13 + $0x58] sm:$0xff]
          %v1943 = vld [vmem:[#allocation13 + $0x60] sm:$0xff]
          %v1944 = vld [vmem:[#allocation13 + $0x68] sm:$0xff]
          %v1945 = vld [vmem:[#allocation13 + $0x70] sm:$0xff]
          %v1946 = vld [vmem:[#allocation13 + $0x78] sm:$0xff]
          %v1947 = vld [vmem:[#allocation15] sm:$0xff]
          %v1948 = vld [vmem:[#allocation15 + $0x8] sm:$0xff]
          %v1949 = vld [vmem:[#allocation15 + $0x10] sm:$0xff]
          %v1950 = vld [vmem:[#allocation15 + $0x18] sm:$0xff]
          %v1951 = vld [vmem:[#allocation15 + $0x20] sm:$0xff]
          %v1952 = vld [vmem:[#allocation15 + $0x28] sm:$0xff]
          %v1953 = vld [vmem:[#allocation15 + $0x30] sm:$0xff]
          %v1954 = vld [vmem:[#allocation15 + $0x38] sm:$0xff]
          %v1955 = vld [vmem:[#allocation15 + $0x40] sm:$0xff]
          %v1956 = vld [vmem:[#allocation15 + $0x48] sm:$0xff]
          %v1957 = vld [vmem:[#allocation15 + $0x50] sm:$0xff]
          %v1958 = vld [vmem:[#allocation15 + $0x58] sm:$0xff]
          %v1959 = vld [vmem:[#allocation15 + $0x60] sm:$0xff]
          %v1960 = vld [vmem:[#allocation15 + $0x68] sm:$0xff]
          %v1961 = vld [vmem:[#allocation15 + $0x70] sm:$0xff]
          %v1962 = vld [vmem:[#allocation15 + $0x78] sm:$0xff]
          %v1963 = vmul.f32 %v1763, %v1931
          %v1964 = vmul.f32 %v1764, %v1932
          %v1965 = vmul.f32 %v1765, %v1933
          %v1966 = vmul.f32 %v1766, %v1934
          %v1967 = vmul.f32 %v1767, %v1935
          %v1968 = vmul.f32 %v1768, %v1936
          %v1969 = vmul.f32 %v1769, %v1937
          %v1970 = vmul.f32 %v1770, %v1938
          %v1971 = vmul.f32 %v1771, %v1939
          %v1972 = vmul.f32 %v1772, %v1940
          %v1973 = vmul.f32 %v1773, %v1941
          %v1974 = vmul.f32 %v1774, %v1942
          %v1975 = vmul.f32 %v1775, %v1943
          %v1976 = vmul.f32 %v1776, %v1944
          %v1977 = vmul.f32 %v1777, %v1945
          %v1978 = vmul.f32 %v1778, %v1946
          %1979 = vrot.lane.b32.xlu0 %v1763, 64
          %v1980 = vpop.permute.xlu0 %1979
          %1981 = vrot.lane.b32.xlu0 %v1764, 64
          %v1982 = vpop.permute.xlu0 %1981
          %1983 = vrot.lane.b32.xlu0 %v1765, 64
          %v1984 = vpop.permute.xlu0 %1983
          %1985 = vrot.lane.b32.xlu0 %v1766, 64
          %v1986 = vpop.permute.xlu0 %1985
          %1987 = vrot.lane.b32.xlu0 %v1767, 64
          %v1988 = vpop.permute.xlu0 %1987
          %1989 = vrot.lane.b32.xlu0 %v1768, 64
          %v1990 = vpop.permute.xlu0 %1989
          %1991 = vrot.lane.b32.xlu0 %v1769, 64
          %v1992 = vpop.permute.xlu0 %1991
          %1993 = vrot.lane.b32.xlu0 %v1770, 64
          %v1994 = vpop.permute.xlu0 %1993
          %1995 = vrot.lane.b32.xlu0 %v1771, 64
          %v1996 = vpop.permute.xlu0 %1995
          %1997 = vrot.lane.b32.xlu0 %v1772, 64
          %v1998 = vpop.permute.xlu0 %1997
          %1999 = vrot.lane.b32.xlu0 %v1773, 64
          %v2000 = vpop.permute.xlu0 %1999
          %2001 = vrot.lane.b32.xlu0 %v1774, 64
          %v2002 = vpop.permute.xlu0 %2001
          %2003 = vrot.lane.b32.xlu0 %v1775, 64
          %v2004 = vpop.permute.xlu0 %2003
          %2005 = vrot.lane.b32.xlu0 %v1776, 64
          %v2006 = vpop.permute.xlu0 %2005
          %2007 = vrot.lane.b32.xlu0 %v1777, 64
          %v2008 = vpop.permute.xlu0 %2007
          %2009 = vrot.lane.b32.xlu0 %v1778, 64
          %v2010 = vpop.permute.xlu0 %2009
          %v2011 = vmul.f32 %v1980, %v1947
          %v2012 = vmul.f32 %v1982, %v1948
          %v2013 = vmul.f32 %v1984, %v1949
          %v2014 = vmul.f32 %v1986, %v1950
          %v2015 = vmul.f32 %v1988, %v1951
          %v2016 = vmul.f32 %v1990, %v1952
          %v2017 = vmul.f32 %v1992, %v1953
          %v2018 = vmul.f32 %v1994, %v1954
          %v2019 = vmul.f32 %v1996, %v1955
          %v2020 = vmul.f32 %v1998, %v1956
          %v2021 = vmul.f32 %v2000, %v1957
          %v2022 = vmul.f32 %v2002, %v1958
          %v2023 = vmul.f32 %v2004, %v1959
          %v2024 = vmul.f32 %v2006, %v1960
          %v2025 = vmul.f32 %v2008, %v1961
          %v2026 = vmul.f32 %v2010, %v1962
          %v2027 = vadd.f32 %v1963, %v2011
          %v2028 = vadd.f32 %v1964, %v2012
          %v2029 = vadd.f32 %v1965, %v2013
          %v2030 = vadd.f32 %v1966, %v2014
          %v2031 = vadd.f32 %v1967, %v2015
          %v2032 = vadd.f32 %v1968, %v2016
          %v2033 = vadd.f32 %v1969, %v2017
          %v2034 = vadd.f32 %v1970, %v2018
          %v2035 = vadd.f32 %v1971, %v2019
          %v2036 = vadd.f32 %v1972, %v2020
          %v2037 = vadd.f32 %v1973, %v2021
          %v2038 = vadd.f32 %v1974, %v2022
          %v2039 = vadd.f32 %v1975, %v2023
          %v2040 = vadd.f32 %v1976, %v2024
          %v2041 = vadd.f32 %v1977, %v2025
          %v2042 = vadd.f32 %v1978, %v2026
          %v2043 = vmul.f32 %v1895, %v1931
          %v2044 = vmul.f32 %v1896, %v1932
          %v2045 = vmul.f32 %v1897, %v1933
          %v2046 = vmul.f32 %v1898, %v1934
          %v2047 = vmul.f32 %v1899, %v1935
          %v2048 = vmul.f32 %v1900, %v1936
          %v2049 = vmul.f32 %v1901, %v1937
          %v2050 = vmul.f32 %v1902, %v1938
          %v2051 = vmul.f32 %v1903, %v1939
          %v2052 = vmul.f32 %v1904, %v1940
          %v2053 = vmul.f32 %v1905, %v1941
          %v2054 = vmul.f32 %v1906, %v1942
          %v2055 = vmul.f32 %v1907, %v1943
          %v2056 = vmul.f32 %v1908, %v1944
          %v2057 = vmul.f32 %v1909, %v1945
          %v2058 = vmul.f32 %v1910, %v1946
          %2059 = vrot.lane.b32.xlu0 %v1895, 64
          %v2060 = vpop.permute.xlu0 %2059
          %2061 = vrot.lane.b32.xlu0 %v1896, 64
          %v2062 = vpop.permute.xlu0 %2061
          %2063 = vrot.lane.b32.xlu0 %v1897, 64
          %v2064 = vpop.permute.xlu0 %2063
          %2065 = vrot.lane.b32.xlu0 %v1898, 64
          %v2066 = vpop.permute.xlu0 %2065
          %2067 = vrot.lane.b32.xlu0 %v1899, 64
          %v2068 = vpop.permute.xlu0 %2067
          %2069 = vrot.lane.b32.xlu0 %v1900, 64
          %v2070 = vpop.permute.xlu0 %2069
          %2071 = vrot.lane.b32.xlu0 %v1901, 64
          %v2072 = vpop.permute.xlu0 %2071
          %2073 = vrot.lane.b32.xlu0 %v1902, 64
          %v2074 = vpop.permute.xlu0 %2073
          %2075 = vrot.lane.b32.xlu0 %v1903, 64
          %v2076 = vpop.permute.xlu0 %2075
          %2077 = vrot.lane.b32.xlu0 %v1904, 64
          %v2078 = vpop.permute.xlu0 %2077
          %2079 = vrot.lane.b32.xlu0 %v1905, 64
          %v2080 = vpop.permute.xlu0 %2079
          %2081 = vrot.lane.b32.xlu0 %v1906, 64
          %v2082 = vpop.permute.xlu0 %2081
          %2083 = vrot.lane.b32.xlu0 %v1907, 64
          %v2084 = vpop.permute.xlu0 %2083
          %2085 = vrot.lane.b32.xlu0 %v1908, 64
          %v2086 = vpop.permute.xlu0 %2085
          %2087 = vrot.lane.b32.xlu0 %v1909, 64
          %v2088 = vpop.permute.xlu0 %2087
          %2089 = vrot.lane.b32.xlu0 %v1910, 64
          %v2090 = vpop.permute.xlu0 %2089
          %v2091 = vmul.f32 %v2060, %v1947
          %v2092 = vmul.f32 %v2062, %v1948
          %v2093 = vmul.f32 %v2064, %v1949
          %v2094 = vmul.f32 %v2066, %v1950
          %v2095 = vmul.f32 %v2068, %v1951
          %v2096 = vmul.f32 %v2070, %v1952
          %v2097 = vmul.f32 %v2072, %v1953
          %v2098 = vmul.f32 %v2074, %v1954
          %v2099 = vmul.f32 %v2076, %v1955
          %v2100 = vmul.f32 %v2078, %v1956
          %v2101 = vmul.f32 %v2080, %v1957
          %v2102 = vmul.f32 %v2082, %v1958
          %v2103 = vmul.f32 %v2084, %v1959
          %v2104 = vmul.f32 %v2086, %v1960
          %v2105 = vmul.f32 %v2088, %v1961
          %v2106 = vmul.f32 %v2090, %v1962
          %v2107 = vadd.f32 %v2043, %v2091
          %v2108 = vadd.f32 %v2044, %v2092
          %v2109 = vadd.f32 %v2045, %v2093
          %v2110 = vadd.f32 %v2046, %v2094
          %v2111 = vadd.f32 %v2047, %v2095
          %v2112 = vadd.f32 %v2048, %v2096
          %v2113 = vadd.f32 %v2049, %v2097
          %v2114 = vadd.f32 %v2050, %v2098
          %v2115 = vadd.f32 %v2051, %v2099
          %v2116 = vadd.f32 %v2052, %v2100
          %v2117 = vadd.f32 %v2053, %v2101
          %v2118 = vadd.f32 %v2054, %v2102
          %v2119 = vadd.f32 %v2055, %v2103
          %v2120 = vadd.f32 %v2056, %v2104
          %v2121 = vadd.f32 %v2057, %v2105
          %v2122 = vadd.f32 %v2058, %v2106
          %v2123 = vmul.f32 %v2027, 0.088388346
          %v2124 = vmul.f32 %v2028, 0.088388346
          %v2125 = vmul.f32 %v2029, 0.088388346
          %v2126 = vmul.f32 %v2030, 0.088388346
          %v2127 = vmul.f32 %v2031, 0.088388346
          %v2128 = vmul.f32 %v2032, 0.088388346
          %v2129 = vmul.f32 %v2033, 0.088388346
          %v2130 = vmul.f32 %v2034, 0.088388346
          %v2131 = vmul.f32 %v2035, 0.088388346
          %v2132 = vmul.f32 %v2036, 0.088388346
          %v2133 = vmul.f32 %v2037, 0.088388346
          %v2134 = vmul.f32 %v2038, 0.088388346
          %v2135 = vmul.f32 %v2039, 0.088388346
          %v2136 = vmul.f32 %v2040, 0.088388346
          %v2137 = vmul.f32 %v2041, 0.088388346
          %v2138 = vmul.f32 %v2042, 0.088388346
          %v2139 = vpack.c.bf16 %v2124, %v2123
          %v2140 = vpack.c.bf16 %v2126, %v2125
          %v2141 = vpack.c.bf16 %v2128, %v2127
          %v2142 = vpack.c.bf16 %v2130, %v2129
          %v2143 = vpack.c.bf16 %v2132, %v2131
          %v2144 = vpack.c.bf16 %v2134, %v2133
          %v2145 = vpack.c.bf16 %v2136, %v2135
          %v2146 = vpack.c.bf16 %v2138, %v2137
          %v2147 = vpack.c.bf16 %v2108, %v2107
          %v2148 = vpack.c.bf16 %v2110, %v2109
          %v2149 = vpack.c.bf16 %v2112, %v2111
          %v2150 = vpack.c.bf16 %v2114, %v2113
          %v2151 = vpack.c.bf16 %v2116, %v2115
          %v2152 = vpack.c.bf16 %v2118, %v2117
          %v2153 = vpack.c.bf16 %v2120, %v2119
          %v2154 = vpack.c.bf16 %v2122, %v2121
          %2155 = vmatprep.subr.bf16.mxu0 0
          %2156 = vmatpush1.bf16.xpose.msra.mxu0 %v2147
          %2157 = vmatprep.subr.bf16.mxu0 0
          %2158 = vmatpush1.bf16.xpose.msra.mxu0 %v2148
          %2159 = vmatprep.subr.bf16.mxu0 0
          %2160 = vmatpush1.bf16.xpose.msra.mxu0 %v2149
          %2161 = vmatprep.subr.bf16.mxu0 0
          %2162 = vmatpush1.bf16.xpose.msra.mxu0 %v2150
          %2163 = vmatprep.subr.bf16.mxu0 0
          %2164 = vmatpush1.bf16.xpose.msra.mxu0 %v2151
          %2165 = vmatprep.subr.bf16.mxu0 0
          %2166 = vmatpush1.bf16.xpose.msra.mxu0 %v2152
          %2167 = vmatprep.subr.bf16.mxu0 0
          %2168 = vmatpush1.bf16.xpose.msra.mxu0 %v2153
          %2169 = vmatprep.subr.bf16.mxu0 0
          %2170 = vmatpush1.bf16.xpose.msra.mxu0 %v2154
          %2171 = vmatprep.subr.bf16.mxu0 0
          %2172 = vmatpush1.bf16.xpose.msra.mxu0 0
          %2173 = vmatprep.subr.bf16.mxu0 0
          %2174 = vmatpush1.bf16.xpose.msra.mxu0 0
          %2175 = vmatprep.subr.bf16.mxu0 0
          %2176 = vmatpush1.bf16.xpose.msra.mxu0 0
          %2177 = vmatprep.subr.bf16.mxu0 0
          %2178 = vmatpush1.bf16.xpose.msra.mxu0 0
          %2179 = vmatprep.subr.bf16.mxu0 0
          %2180 = vmatpush1.bf16.xpose.msra.mxu0 0
          %2181 = vmatprep.subr.bf16.mxu0 0
          %2182 = vmatpush1.bf16.xpose.msra.mxu0 0
          %2183 = vmatprep.subr.bf16.mxu0 0
          %2184 = vmatpush1.bf16.xpose.msra.mxu0 0
          %2185 = vmatprep.subr.bf16.mxu0 0
          %2186 = vmatpush1.bf16.xpose.msra.mxu0 0
          %2187 = vmatprep.mubr.bf16.mxu0 0
          %2188 = vmatmul.mubr.bf16.gmra.mrb[0].mxu0 %v2139
          %v2189 = vpop.f32.mrb[0].mxu0
          %v2190 = vadd.f32 0.0, %v2189
          %v2191 = vpop.f32.mrb[0].mxu0
          %v2192 = vpop.f32.mrb[0].mxu0
          %v2193 = vadd.f32 0.0, %v2192
          %v2194 = vpop.f32.mrb[0].mxu0
          %2195 = vmatprep.mubr.bf16.mxu0 0
          %2196 = vmatmul.mubr.bf16.gmra.mrb[0].mxu0 %v2140
          %v2197 = vpop.f32.mrb[0].mxu0
          %v2198 = vadd.f32 0.0, %v2197
          %v2199 = vpop.f32.mrb[0].mxu0
          %v2200 = vpop.f32.mrb[0].mxu0
          %v2201 = vadd.f32 0.0, %v2200
          %v2202 = vpop.f32.mrb[0].mxu0
          %2203 = vmatprep.mubr.bf16.mxu0 0
          %2204 = vmatmul.mubr.bf16.gmra.mrb[0].mxu0 %v2141
          %v2205 = vpop.f32.mrb[0].mxu0
          %v2206 = vadd.f32 0.0, %v2205
          %v2207 = vpop.f32.mrb[0].mxu0
          %v2208 = vpop.f32.mrb[0].mxu0
          %v2209 = vadd.f32 0.0, %v2208
          %v2210 = vpop.f32.mrb[0].mxu0
          %2211 = vmatprep.mubr.bf16.mxu0 0
          %2212 = vmatmul.mubr.bf16.gmra.mrb[0].mxu0 %v2142
          %v2213 = vpop.f32.mrb[0].mxu0
          %v2214 = vadd.f32 0.0, %v2213
          %v2215 = vpop.f32.mrb[0].mxu0
          %v2216 = vpop.f32.mrb[0].mxu0
          %v2217 = vadd.f32 0.0, %v2216
          %v2218 = vpop.f32.mrb[0].mxu0
          %2219 = vmatprep.mubr.bf16.mxu0 0
          %2220 = vmatmul.mubr.bf16.gmra.mrb[0].mxu0 %v2143
          %v2221 = vpop.f32.mrb[0].mxu0
          %v2222 = vadd.f32 0.0, %v2221
          %v2223 = vpop.f32.mrb[0].mxu0
          %v2224 = vpop.f32.mrb[0].mxu0
          %v2225 = vadd.f32 0.0, %v2224
          %v2226 = vpop.f32.mrb[0].mxu0
          %2227 = vmatprep.mubr.bf16.mxu0 0
          %2228 = vmatmul.mubr.bf16.gmra.mrb[0].mxu0 %v2144
          %v2229 = vpop.f32.mrb[0].mxu0
          %v2230 = vadd.f32 0.0, %v2229
          %v2231 = vpop.f32.mrb[0].mxu0
          %v2232 = vpop.f32.mrb[0].mxu0
          %v2233 = vadd.f32 0.0, %v2232
          %v2234 = vpop.f32.mrb[0].mxu0
          %2235 = vmatprep.mubr.bf16.mxu0 0
          %2236 = vmatmul.mubr.bf16.gmra.mrb[0].mxu0 %v2145
          %v2237 = vpop.f32.mrb[0].mxu0
          %v2238 = vadd.f32 0.0, %v2237
          %v2239 = vpop.f32.mrb[0].mxu0
          %v2240 = vpop.f32.mrb[0].mxu0
          %v2241 = vadd.f32 0.0, %v2240
          %v2242 = vpop.f32.mrb[0].mxu0
          %2243 = vmatprep.mubr.bf16.mxu0 0
          %2244 = vmatmul.mubr.bf16.gmra.mrb[0].mxu0 %v2146
          %v2245 = vpop.f32.mrb[0].mxu0
          %v2246 = vadd.f32 0.0, %v2245
          %v2247 = vpop.f32.mrb[0].mxu0
          %v2248 = vpop.f32.mrb[0].mxu0
          %v2249 = vadd.f32 0.0, %v2248
          %v2250 = vpop.f32.mrb[0].mxu0
          %2251 = vdwg.mxu0
          %v2252 = vlaneseq
          %v2253 = vshrl.u32 %v2252, 7
          %v2254 = vadd.s32 %v2253, 8
          %v2255 = vadd.s32 %v2253, 16
          %v2256 = vadd.s32 %v2253, 24
          %v2257 = vadd.s32 %v2253, 32
          %v2258 = vadd.s32 %v2253, 40
          %v2259 = vadd.s32 %v2253, 48
          %v2260 = vadd.s32 %v2253, 56
          %v2261 = vadd.s32 %v2253, 64
          %v2262 = vadd.s32 %v2253, 72
          %v2263 = vadd.s32 %v2253, 80
          %v2264 = vadd.s32 %v2253, 88
          %v2265 = vadd.s32 %v2253, 96
          %v2266 = vadd.s32 %v2253, 104
          %v2267 = vadd.s32 %v2253, 112
          %v2268 = vadd.s32 %v2253, 120
          %v2269 = vlaneseq
          %v2270 = vand.u32 %v2269, 127
          %vm2271 = vcmp.ge.s32.totalorder %v2253, %v2270
          %vm2272 = vcmp.ge.s32.totalorder %v2254, %v2270
          %vm2273 = vcmp.ge.s32.totalorder %v2255, %v2270
          %vm2274 = vcmp.ge.s32.totalorder %v2256, %v2270
          %vm2275 = vcmp.ge.s32.totalorder %v2257, %v2270
          %vm2276 = vcmp.ge.s32.totalorder %v2258, %v2270
          %vm2277 = vcmp.ge.s32.totalorder %v2259, %v2270
          %vm2278 = vcmp.ge.s32.totalorder %v2260, %v2270
          %vm2279 = vcmp.ge.s32.totalorder %v2261, %v2270
          %vm2280 = vcmp.ge.s32.totalorder %v2262, %v2270
          %vm2281 = vcmp.ge.s32.totalorder %v2263, %v2270
          %vm2282 = vcmp.ge.s32.totalorder %v2264, %v2270
          %vm2283 = vcmp.ge.s32.totalorder %v2265, %v2270
          %vm2284 = vcmp.ge.s32.totalorder %v2266, %v2270
          %vm2285 = vcmp.ge.s32.totalorder %v2267, %v2270
          %vm2286 = vcmp.ge.s32.totalorder %v2268, %v2270
          %v2287 = vsel %vm2271, %v2190, -1e+30
          %v2288 = vsel %vm2272, %v2193, -1e+30
          %v2289 = vsel %vm2273, %v2198, -1e+30
          %v2290 = vsel %vm2274, %v2201, -1e+30
          %v2291 = vsel %vm2275, %v2206, -1e+30
          %v2292 = vsel %vm2276, %v2209, -1e+30
          %v2293 = vsel %vm2277, %v2214, -1e+30
          %v2294 = vsel %vm2278, %v2217, -1e+30
          %v2295 = vsel %vm2279, %v2222, -1e+30
          %v2296 = vsel %vm2280, %v2225, -1e+30
          %v2297 = vsel %vm2281, %v2230, -1e+30
          %v2298 = vsel %vm2282, %v2233, -1e+30
          %v2299 = vsel %vm2283, %v2238, -1e+30
          %v2300 = vsel %vm2284, %v2241, -1e+30
          %v2301 = vsel %vm2285, %v2246, -1e+30
          %v2302 = vsel %vm2286, %v2249, -1e+30
          %2303 = vmax.xlane.f32.xlu0 %v2287
          %v2304 = vpop.xlane.xlu0 %2303
          %2305 = vmax.xlane.f32.xlu0 %v2288
          %v2306 = vpop.xlane.xlu0 %2305
          %2307 = vmax.xlane.f32.xlu0 %v2289
          %v2308 = vpop.xlane.xlu0 %2307
          %2309 = vmax.xlane.f32.xlu0 %v2290
          %v2310 = vpop.xlane.xlu0 %2309
          %2311 = vmax.xlane.f32.xlu0 %v2291
          %v2312 = vpop.xlane.xlu0 %2311
          %2313 = vmax.xlane.f32.xlu0 %v2292
          %v2314 = vpop.xlane.xlu0 %2313
          %2315 = vmax.xlane.f32.xlu0 %v2293
          %v2316 = vpop.xlane.xlu0 %2315
          %2317 = vmax.xlane.f32.xlu0 %v2294
          %v2318 = vpop.xlane.xlu0 %2317
          %2319 = vmax.xlane.f32.xlu0 %v2295
          %v2320 = vpop.xlane.xlu0 %2319
          %2321 = vmax.xlane.f32.xlu0 %v2296
          %v2322 = vpop.xlane.xlu0 %2321
          %2323 = vmax.xlane.f32.xlu0 %v2297
          %v2324 = vpop.xlane.xlu0 %2323
          %2325 = vmax.xlane.f32.xlu0 %v2298
          %v2326 = vpop.xlane.xlu0 %2325
          %2327 = vmax.xlane.f32.xlu0 %v2299
          %v2328 = vpop.xlane.xlu0 %2327
          %2329 = vmax.xlane.f32.xlu0 %v2300
          %v2330 = vpop.xlane.xlu0 %2329
          %2331 = vmax.xlane.f32.xlu0 %v2301
          %v2332 = vpop.xlane.xlu0 %2331
          %2333 = vmax.xlane.f32.xlu0 %v2302
          %v2334 = vpop.xlane.xlu0 %2333
          %v2335 = vsub.f32 %v2287, %v2304
          %v2336 = vsub.f32 %v2288, %v2306
          %v2337 = vsub.f32 %v2289, %v2308
          %v2338 = vsub.f32 %v2290, %v2310
          %v2339 = vsub.f32 %v2291, %v2312
          %v2340 = vsub.f32 %v2292, %v2314
          %v2341 = vsub.f32 %v2293, %v2316
          %v2342 = vsub.f32 %v2294, %v2318
          %v2343 = vsub.f32 %v2295, %v2320
          %v2344 = vsub.f32 %v2296, %v2322
          %v2345 = vsub.f32 %v2297, %v2324
          %v2346 = vsub.f32 %v2298, %v2326
          %v2347 = vsub.f32 %v2299, %v2328
          %v2348 = vsub.f32 %v2300, %v2330
          %v2349 = vsub.f32 %v2301, %v2332
          %v2350 = vsub.f32 %v2302, %v2334
          %v2351 = vmul.f32 %v2335, 1.442695
          %v2352 = vpow.pop %v2351
          %v2353 = vmul.f32 %v2336, 1.442695
          %v2354 = vpow.pop %v2353
          %v2355 = vmul.f32 %v2337, 1.442695
          %v2356 = vpow.pop %v2355
          %v2357 = vmul.f32 %v2338, 1.442695
          %v2358 = vpow.pop %v2357
          %v2359 = vmul.f32 %v2339, 1.442695
          %v2360 = vpow.pop %v2359
          %v2361 = vmul.f32 %v2340, 1.442695
          %v2362 = vpow.pop %v2361
          %v2363 = vmul.f32 %v2341, 1.442695
          %v2364 = vpow.pop %v2363
          %v2365 = vmul.f32 %v2342, 1.442695
          %v2366 = vpow.pop %v2365
          %v2367 = vmul.f32 %v2343, 1.442695
          %v2368 = vpow.pop %v2367
          %v2369 = vmul.f32 %v2344, 1.442695
          %v2370 = vpow.pop %v2369
          %v2371 = vmul.f32 %v2345, 1.442695
          %v2372 = vpow.pop %v2371
          %v2373 = vmul.f32 %v2346, 1.442695
          %v2374 = vpow.pop %v2373
          %v2375 = vmul.f32 %v2347, 1.442695
          %v2376 = vpow.pop %v2375
          %v2377 = vmul.f32 %v2348, 1.442695
          %v2378 = vpow.pop %v2377
          %v2379 = vmul.f32 %v2349, 1.442695
          %v2380 = vpow.pop %v2379
          %v2381 = vmul.f32 %v2350, 1.442695
          %v2382 = vpow.pop %v2381
          %2383 = vadd.xlane.f32.xlu0 %v2352
          %v2384 = vpop.xlane.xlu0 %2383
          %2385 = vadd.xlane.f32.xlu0 %v2354
          %v2386 = vpop.xlane.xlu0 %2385
          %2387 = vadd.xlane.f32.xlu0 %v2356
          %v2388 = vpop.xlane.xlu0 %2387
          %2389 = vadd.xlane.f32.xlu0 %v2358
          %v2390 = vpop.xlane.xlu0 %2389
          %2391 = vadd.xlane.f32.xlu0 %v2360
          %v2392 = vpop.xlane.xlu0 %2391
          %2393 = vadd.xlane.f32.xlu0 %v2362
          %v2394 = vpop.xlane.xlu0 %2393
          %2395 = vadd.xlane.f32.xlu0 %v2364
          %v2396 = vpop.xlane.xlu0 %2395
          %2397 = vadd.xlane.f32.xlu0 %v2366
          %v2398 = vpop.xlane.xlu0 %2397
          %2399 = vadd.xlane.f32.xlu0 %v2368
          %v2400 = vpop.xlane.xlu0 %2399
          %2401 = vadd.xlane.f32.xlu0 %v2370
          %v2402 = vpop.xlane.xlu0 %2401
          %2403 = vadd.xlane.f32.xlu0 %v2372
          %v2404 = vpop.xlane.xlu0 %2403
          %2405 = vadd.xlane.f32.xlu0 %v2374
          %v2406 = vpop.xlane.xlu0 %2405
          %2407 = vadd.xlane.f32.xlu0 %v2376
          %v2408 = vpop.xlane.xlu0 %2407
          %2409 = vadd.xlane.f32.xlu0 %v2378
          %v2410 = vpop.xlane.xlu0 %2409
          %2411 = vadd.xlane.f32.xlu0 %v2380
          %v2412 = vpop.xlane.xlu0 %2411
          %2413 = vadd.xlane.f32.xlu0 %v2382
          %v2414 = vpop.xlane.xlu0 %2413
          %v2415 = vrcp.pop %v2384
          %v2416 = vrcp.pop %v2386
          %v2417 = vrcp.pop %v2388
          %v2418 = vrcp.pop %v2390
          %v2419 = vrcp.pop %v2392
          %v2420 = vrcp.pop %v2394
          %v2421 = vrcp.pop %v2396
          %v2422 = vrcp.pop %v2398
          %v2423 = vrcp.pop %v2400
          %v2424 = vrcp.pop %v2402
          %v2425 = vrcp.pop %v2404
          %v2426 = vrcp.pop %v2406
          %v2427 = vrcp.pop %v2408
          %v2428 = vrcp.pop %v2410
          %v2429 = vrcp.pop %v2412
          %v2430 = vrcp.pop %v2414
          %v2431 = vmul.f32 %v2352, %v2415
          %v2432 = vmul.f32 %v2354, %v2416
          %v2433 = vmul.f32 %v2356, %v2417
          %v2434 = vmul.f32 %v2358, %v2418
          %v2435 = vmul.f32 %v2360, %v2419
          %v2436 = vmul.f32 %v2362, %v2420
          %v2437 = vmul.f32 %v2364, %v2421
          %v2438 = vmul.f32 %v2366, %v2422
          %v2439 = vmul.f32 %v2368, %v2423
          %v2440 = vmul.f32 %v2370, %v2424
          %v2441 = vmul.f32 %v2372, %v2425
          %v2442 = vmul.f32 %v2374, %v2426
          %v2443 = vmul.f32 %v2376, %v2427
          %v2444 = vmul.f32 %v2378, %v2428
          %v2445 = vmul.f32 %v2380, %v2429
          %v2446 = vmul.f32 %v2382, %v2430
          %v2447 = vpack.c.bf16 %v2432, %v2431
          %v2448 = vpack.c.bf16 %v2434, %v2433
          %v2449 = vpack.c.bf16 %v2436, %v2435
          %v2450 = vpack.c.bf16 %v2438, %v2437
          %v2451 = vpack.c.bf16 %v2440, %v2439
          %v2452 = vpack.c.bf16 %v2442, %v2441
          %v2453 = vpack.c.bf16 %v2444, %v2443
          %v2454 = vpack.c.bf16 %v2446, %v2445
          %v2455 = vpack.c.bf16 %v1916, %v1915
          %v2456 = vpack.c.bf16 %v1918, %v1917
          %v2457 = vpack.c.bf16 %v1920, %v1919
          %v2458 = vpack.c.bf16 %v1922, %v1921
          %v2459 = vpack.c.bf16 %v1924, %v1923
          %v2460 = vpack.c.bf16 %v1926, %v1925
          %v2461 = vpack.c.bf16 %v1928, %v1927
          %v2462 = vpack.c.bf16 %v1930, %v1929
          %2463 = vmatprep.subr.bf16.mxu0 0
          %2464 = vmatpush1.bf16.msra.mxu0 %v2455
          %2465 = vmatprep.subr.bf16.mxu0 0
          %2466 = vmatpush1.bf16.msra.mxu0 %v2456
          %2467 = vmatprep.subr.bf16.mxu0 0
          %2468 = vmatpush1.bf16.msra.mxu0 %v2457
          %2469 = vmatprep.subr.bf16.mxu0 0
          %2470 = vmatpush1.bf16.msra.mxu0 %v2458
          %2471 = vmatprep.subr.bf16.mxu0 0
          %2472 = vmatpush1.bf16.msra.mxu0 %v2459
          %2473 = vmatprep.subr.bf16.mxu0 0
          %2474 = vmatpush1.bf16.msra.mxu0 %v2460
          %2475 = vmatprep.subr.bf16.mxu0 0
          %2476 = vmatpush1.bf16.msra.mxu0 %v2461
          %2477 = vmatprep.subr.bf16.mxu0 0
          %2478 = vmatpush1.bf16.msra.mxu0 %v2462
          %2479 = vmatprep.subr.bf16.mxu0 0
          %2480 = vmatpush1.bf16.msra.mxu0 0
          %2481 = vmatprep.subr.bf16.mxu0 0
          %2482 = vmatpush1.bf16.msra.mxu0 0
          %2483 = vmatprep.subr.bf16.mxu0 0
          %2484 = vmatpush1.bf16.msra.mxu0 0
          %2485 = vmatprep.subr.bf16.mxu0 0
          %2486 = vmatpush1.bf16.msra.mxu0 0
          %2487 = vmatprep.subr.bf16.mxu0 0
          %2488 = vmatpush1.bf16.msra.mxu0 0
          %2489 = vmatprep.subr.bf16.mxu0 0
          %2490 = vmatpush1.bf16.msra.mxu0 0
          %2491 = vmatprep.subr.bf16.mxu0 0
          %2492 = vmatpush1.bf16.msra.mxu0 0
          %2493 = vmatprep.subr.bf16.mxu0 0
          %2494 = vmatpush1.bf16.msra.mxu0 0
          %2495 = vmatprep.mubr.bf16.mxu0 0
          %2496 = vmatmul.mubr.bf16.gmra.mrb[0].mxu0 %v2447
          %v2497 = vpop.f32.mrb[0].mxu0
          %v2498 = vadd.f32 0.0, %v2497
          %v2499 = vpop.f32.mrb[0].mxu0
          %v2500 = vpop.f32.mrb[0].mxu0
          %v2501 = vadd.f32 0.0, %v2500
          %v2502 = vpop.f32.mrb[0].mxu0
          %2503 = vmatprep.mubr.bf16.mxu0 0
          %2504 = vmatmul.mubr.bf16.gmra.mrb[0].mxu0 %v2448
          %v2505 = vpop.f32.mrb[0].mxu0
          %v2506 = vadd.f32 0.0, %v2505
          %v2507 = vpop.f32.mrb[0].mxu0
          %v2508 = vpop.f32.mrb[0].mxu0
          %v2509 = vadd.f32 0.0, %v2508
          %v2510 = vpop.f32.mrb[0].mxu0
          %2511 = vmatprep.mubr.bf16.mxu0 0
          %2512 = vmatmul.mubr.bf16.gmra.mrb[0].mxu0 %v2449
          %v2513 = vpop.f32.mrb[0].mxu0
          %v2514 = vadd.f32 0.0, %v2513
          %v2515 = vpop.f32.mrb[0].mxu0
          %v2516 = vpop.f32.mrb[0].mxu0
          %v2517 = vadd.f32 0.0, %v2516
          %v2518 = vpop.f32.mrb[0].mxu0
          %2519 = vmatprep.mubr.bf16.mxu0 0
          %2520 = vmatmul.mubr.bf16.gmra.mrb[0].mxu0 %v2450
          %v2521 = vpop.f32.mrb[0].mxu0
          %v2522 = vadd.f32 0.0, %v2521
          %v2523 = vpop.f32.mrb[0].mxu0
          %v2524 = vpop.f32.mrb[0].mxu0
          %v2525 = vadd.f32 0.0, %v2524
          %v2526 = vpop.f32.mrb[0].mxu0
          %2527 = vmatprep.mubr.bf16.mxu0 0
          %2528 = vmatmul.mubr.bf16.gmra.mrb[0].mxu0 %v2451
          %v2529 = vpop.f32.mrb[0].mxu0
          %v2530 = vadd.f32 0.0, %v2529
          %v2531 = vpop.f32.mrb[0].mxu0
          %v2532 = vpop.f32.mrb[0].mxu0
          %v2533 = vadd.f32 0.0, %v2532
          %v2534 = vpop.f32.mrb[0].mxu0
          %2535 = vmatprep.mubr.bf16.mxu0 0
          %2536 = vmatmul.mubr.bf16.gmra.mrb[0].mxu0 %v2452
          %v2537 = vpop.f32.mrb[0].mxu0
          %v2538 = vadd.f32 0.0, %v2537
          %v2539 = vpop.f32.mrb[0].mxu0
          %v2540 = vpop.f32.mrb[0].mxu0
          %v2541 = vadd.f32 0.0, %v2540
          %v2542 = vpop.f32.mrb[0].mxu0
          %2543 = vmatprep.mubr.bf16.mxu0 0
          %2544 = vmatmul.mubr.bf16.gmra.mrb[0].mxu0 %v2453
          %v2545 = vpop.f32.mrb[0].mxu0
          %v2546 = vadd.f32 0.0, %v2545
          %v2547 = vpop.f32.mrb[0].mxu0
          %v2548 = vpop.f32.mrb[0].mxu0
          %v2549 = vadd.f32 0.0, %v2548
          %v2550 = vpop.f32.mrb[0].mxu0
          %2551 = vmatprep.mubr.bf16.mxu0 0
          %2552 = vmatmul.mubr.bf16.gmra.mrb[0].mxu0 %v2454
          %v2553 = vpop.f32.mrb[0].mxu0
          %v2554 = vadd.f32 0.0, %v2553
          %v2555 = vpop.f32.mrb[0].mxu0
          %v2556 = vpop.f32.mrb[0].mxu0
          %v2557 = vadd.f32 0.0, %v2556
          %v2558 = vpop.f32.mrb[0].mxu0
          %2559 = vdwg.mxu0
          %v2560 = vld [vmem:[#allocation3] sm:$0xff]
          %v2561 = vld [vmem:[#allocation3 + $0x8] sm:$0xff]
          %v2562 = vld [vmem:[#allocation3 + $0x10] sm:$0xff]
          %v2563 = vld [vmem:[#allocation3 + $0x18] sm:$0xff]
          %v2564 = vld [vmem:[#allocation3 + $0x20] sm:$0xff]
          %v2565 = vld [vmem:[#allocation3 + $0x28] sm:$0xff]
          %v2566 = vld [vmem:[#allocation3 + $0x30] sm:$0xff]
          %v2567 = vld [vmem:[#allocation3 + $0x38] sm:$0xff]
          %v2568 = vld [vmem:[#allocation3 + $0x40] sm:$0xff]
          %v2569 = vld [vmem:[#allocation3 + $0x48] sm:$0xff]
          %v2570 = vld [vmem:[#allocation3 + $0x50] sm:$0xff]
          %v2571 = vld [vmem:[#allocation3 + $0x58] sm:$0xff]
          %v2572 = vld [vmem:[#allocation3 + $0x60] sm:$0xff]
          %v2573 = vld [vmem:[#allocation3 + $0x68] sm:$0xff]
          %v2574 = vld [vmem:[#allocation3 + $0x70] sm:$0xff]
          %v2575 = vld [vmem:[#allocation3 + $0x78] sm:$0xff]
          %v2576 = vld [vmem:[#allocation3 + $0x80] sm:$0xff]
          %v2577 = vld [vmem:[#allocation3 + $0x88] sm:$0xff]
          %v2578 = vld [vmem:[#allocation3 + $0x90] sm:$0xff]
          %v2579 = vld [vmem:[#allocation3 + $0x98] sm:$0xff]
          %v2580 = vld [vmem:[#allocation3 + $0xa0] sm:$0xff]
          %v2581 = vld [vmem:[#allocation3 + $0xa8] sm:$0xff]
          %v2582 = vld [vmem:[#allocation3 + $0xb0] sm:$0xff]
          %v2583 = vld [vmem:[#allocation3 + $0xb8] sm:$0xff]
          %v2584 = vld [vmem:[#allocation3 + $0xc0] sm:$0xff]
          %v2585 = vld [vmem:[#allocation3 + $0xc8] sm:$0xff]
          %v2586 = vld [vmem:[#allocation3 + $0xd0] sm:$0xff]
          %v2587 = vld [vmem:[#allocation3 + $0xd8] sm:$0xff]
          %v2588 = vld [vmem:[#allocation3 + $0xe0] sm:$0xff]
          %v2589 = vld [vmem:[#allocation3 + $0xe8] sm:$0xff]
          %v2590 = vld [vmem:[#allocation3 + $0xf0] sm:$0xff]
          %v2591 = vld [vmem:[#allocation3 + $0xf8] sm:$0xff]
          %v2592 = vpack.c.bf16 %v2501, %v2498
          %v2593 = vpack.c.bf16 %v2509, %v2506
          %v2594 = vpack.c.bf16 %v2517, %v2514
          %v2595 = vpack.c.bf16 %v2525, %v2522
          %v2596 = vpack.c.bf16 %v2533, %v2530
          %v2597 = vpack.c.bf16 %v2541, %v2538
          %v2598 = vpack.c.bf16 %v2549, %v2546
          %v2599 = vpack.c.bf16 %v2557, %v2554
          %s2600 = sshra.s32 %s1643, 3
          %s2601 = sand.u32 %s1643, 7
          %s2602 = smul.u32 %s2600, 2
          %s2603 = smul.addr %s2602, 4
          %s2604 = scalar_lea.vmem [#allocation9], %s2603
          %v2605 = vld [vmem:[%s2604] sm:$0xff]
          %v2606 = vld [vmem:[%s2604 + $0x8] sm:$0xff]
          %v2607 = vld [vmem:[%s2604 + $0x10] sm:$0xff]
          %v2608 = vld [vmem:[%s2604 + $0x18] sm:$0xff]
          %v2609 = vld [vmem:[%s2604 + $0x20] sm:$0xff]
          %v2610 = vld [vmem:[%s2604 + $0x28] sm:$0xff]
          %v2611 = vld [vmem:[%s2604 + $0x30] sm:$0xff]
          %v2612 = vld [vmem:[%s2604 + $0x38] sm:$0xff]
          %v2613 = vld [vmem:[%s2604 + $0x40] sm:$0xff]
          %v2614 = vld [vmem:[%s2604 + $0x48] sm:$0xff]
          %v2615 = vld [vmem:[%s2604 + $0x50] sm:$0xff]
          %v2616 = vld [vmem:[%s2604 + $0x58] sm:$0xff]
          %v2617 = vld [vmem:[%s2604 + $0x60] sm:$0xff]
          %v2618 = vld [vmem:[%s2604 + $0x68] sm:$0xff]
          %v2619 = vld [vmem:[%s2604 + $0x70] sm:$0xff]
          %v2620 = vld [vmem:[%s2604 + $0x78] sm:$0xff]
          %v2637 = vunpack.c.l.b16 %v2605
          %v2638 = vunpack.c.h.b16 %v2605
          %v2639 = vunpack.c.l.b16 %v2606
          %v2640 = vunpack.c.h.b16 %v2606
          %v2641 = vunpack.c.l.b16 %v2607
          %v2642 = vunpack.c.h.b16 %v2607
          %v2643 = vunpack.c.l.b16 %v2608
          %v2644 = vunpack.c.h.b16 %v2608
          %v2645 = vunpack.c.l.b16 %v2609
          %v2646 = vunpack.c.h.b16 %v2609
          %v2647 = vunpack.c.l.b16 %v2610
          %v2648 = vunpack.c.h.b16 %v2610
          %v2649 = vunpack.c.l.b16 %v2611
          %v2650 = vunpack.c.h.b16 %v2611
          %v2651 = vunpack.c.l.b16 %v2612
          %v2652 = vunpack.c.h.b16 %v2612
          %v2653 = vunpack.c.l.b16 %v2613
          %v2654 = vunpack.c.h.b16 %v2613
          %v2655 = vunpack.c.l.b16 %v2614
          %v2656 = vunpack.c.h.b16 %v2614
          %v2657 = vunpack.c.l.b16 %v2615
          %v2658 = vunpack.c.h.b16 %v2615
          %v2659 = vunpack.c.l.b16 %v2616
          %v2660 = vunpack.c.h.b16 %v2616
          %v2661 = vunpack.c.l.b16 %v2617
          %v2662 = vunpack.c.h.b16 %v2617
          %v2663 = vunpack.c.l.b16 %v2618
          %v2664 = vunpack.c.h.b16 %v2618
          %v2665 = vunpack.c.l.b16 %v2619
          %v2666 = vunpack.c.h.b16 %v2619
          %v2667 = vunpack.c.l.b16 %v2620
          %v2668 = vunpack.c.h.b16 %v2620
          %v2669 = vpack.c.b16 %v2639, %v2637
          %v2670 = vpack.c.b16 %v2640, %v2638
          %v2671 = vpack.c.b16 %v2643, %v2641
          %v2672 = vpack.c.b16 %v2644, %v2642
          %v2673 = vpack.c.b16 %v2647, %v2645
          %v2674 = vpack.c.b16 %v2648, %v2646
          %v2675 = vpack.c.b16 %v2651, %v2649
          %v2676 = vpack.c.b16 %v2652, %v2650
          %v2677 = vpack.c.b16 %v2655, %v2653
          %v2678 = vpack.c.b16 %v2656, %v2654
          %v2679 = vpack.c.b16 %v2659, %v2657
          %v2680 = vpack.c.b16 %v2660, %v2658
          %v2681 = vpack.c.b16 %v2663, %v2661
          %v2682 = vpack.c.b16 %v2664, %v2662
          %v2683 = vpack.c.b16 %v2667, %v2665
          %v2684 = vpack.c.b16 %v2668, %v2666
          %2701 = vmatprep.subr.bf16.mxu0 %v2670
          %2702 = vmatpush1.bf16.msra.mxu0 %v2669
          %2703 = vmatprep.subr.bf16.mxu0 %v2672
          %2704 = vmatpush1.bf16.msra.mxu0 %v2671
          %2705 = vmatprep.subr.bf16.mxu0 %v2674
          %2706 = vmatpush1.bf16.msra.mxu0 %v2673
          %2707 = vmatprep.subr.bf16.mxu0 %v2676
          %2708 = vmatpush1.bf16.msra.mxu0 %v2675
          %2709 = vmatprep.subr.bf16.mxu0 %v2678
          %2710 = vmatpush1.bf16.msra.mxu0 %v2677
          %2711 = vmatprep.subr.bf16.mxu0 %v2680
          %2712 = vmatpush1.bf16.msra.mxu0 %v2679
          %2713 = vmatprep.subr.bf16.mxu0 %v2682
          %2714 = vmatpush1.bf16.msra.mxu0 %v2681
          %2715 = vmatprep.subr.bf16.mxu0 %v2684
          %2716 = vmatpush1.bf16.msra.mxu0 %v2683
          %2717 = vmatprep.subr.bf16.mxu0 0
          %2718 = vmatpush1.bf16.msra.mxu0 0
          %2719 = vmatprep.subr.bf16.mxu0 0
          %2720 = vmatpush1.bf16.msra.mxu0 0
          %2721 = vmatprep.subr.bf16.mxu0 0
          %2722 = vmatpush1.bf16.msra.mxu0 0
          %2723 = vmatprep.subr.bf16.mxu0 0
          %2724 = vmatpush1.bf16.msra.mxu0 0
          %2725 = vmatprep.subr.bf16.mxu0 0
          %2726 = vmatpush1.bf16.msra.mxu0 0
          %2727 = vmatprep.subr.bf16.mxu0 0
          %2728 = vmatpush1.bf16.msra.mxu0 0
          %2729 = vmatprep.subr.bf16.mxu0 0
          %2730 = vmatpush1.bf16.msra.mxu0 0
          %2731 = vmatprep.subr.bf16.mxu0 0
          %2732 = vmatpush1.bf16.msra.mxu0 0
          %2733 = vmatprep.mubr.bf16.mxu0 0
          %2734 = vmatmul.mubr.bf16.gmra.mrb[0].mxu0 %v2592
          %v2735 = vpop.f32.mrb[0].mxu0
          %v2736 = vadd.f32 0.0, %v2735
          %v2737 = vpop.f32.mrb[0].mxu0
          %v2738 = vadd.f32 0.0, %v2737
          %v2739 = vpop.f32.mrb[0].mxu0
          %v2740 = vadd.f32 0.0, %v2739
          %v2741 = vpop.f32.mrb[0].mxu0
          %v2742 = vadd.f32 0.0, %v2741
          %2743 = vmatprep.mubr.bf16.mxu0 0
          %2744 = vmatmul.mubr.bf16.gmra.mrb[0].mxu0 %v2593
          %v2745 = vpop.f32.mrb[0].mxu0
          %v2746 = vadd.f32 0.0, %v2745
          %v2747 = vpop.f32.mrb[0].mxu0
          %v2748 = vadd.f32 0.0, %v2747
          %v2749 = vpop.f32.mrb[0].mxu0
          %v2750 = vadd.f32 0.0, %v2749
          %v2751 = vpop.f32.mrb[0].mxu0
          %v2752 = vadd.f32 0.0, %v2751
          %2753 = vmatprep.mubr.bf16.mxu0 0
          %2754 = vmatmul.mubr.bf16.gmra.mrb[0].mxu0 %v2594
          %v2755 = vpop.f32.mrb[0].mxu0
          %v2756 = vadd.f32 0.0, %v2755
          %v2757 = vpop.f32.mrb[0].mxu0
          %v2758 = vadd.f32 0.0, %v2757
          %v2759 = vpop.f32.mrb[0].mxu0
          %v2760 = vadd.f32 0.0, %v2759
          %v2761 = vpop.f32.mrb[0].mxu0
          %v2762 = vadd.f32 0.0, %v2761
          %2763 = vmatprep.mubr.bf16.mxu0 0
          %2764 = vmatmul.mubr.bf16.gmra.mrb[0].mxu0 %v2595
          %v2765 = vpop.f32.mrb[0].mxu0
          %v2766 = vadd.f32 0.0, %v2765
          %v2767 = vpop.f32.mrb[0].mxu0
          %v2768 = vadd.f32 0.0, %v2767
          %v2769 = vpop.f32.mrb[0].mxu0
          %v2770 = vadd.f32 0.0, %v2769
          %v2771 = vpop.f32.mrb[0].mxu0
          %v2772 = vadd.f32 0.0, %v2771
          %2773 = vmatprep.mubr.bf16.mxu0 0
          %2774 = vmatmul.mubr.bf16.gmra.mrb[0].mxu0 %v2596
          %v2775 = vpop.f32.mrb[0].mxu0
          %v2776 = vadd.f32 0.0, %v2775
          %v2777 = vpop.f32.mrb[0].mxu0
          %v2778 = vadd.f32 0.0, %v2777
          %v2779 = vpop.f32.mrb[0].mxu0
          %v2780 = vadd.f32 0.0, %v2779
          %v2781 = vpop.f32.mrb[0].mxu0
          %v2782 = vadd.f32 0.0, %v2781
          %2783 = vmatprep.mubr.bf16.mxu0 0
          %2784 = vmatmul.mubr.bf16.gmra.mrb[0].mxu0 %v2597
          %v2785 = vpop.f32.mrb[0].mxu0
          %v2786 = vadd.f32 0.0, %v2785
          %v2787 = vpop.f32.mrb[0].mxu0
          %v2788 = vadd.f32 0.0, %v2787
          %v2789 = vpop.f32.mrb[0].mxu0
          %v2790 = vadd.f32 0.0, %v2789
          %v2791 = vpop.f32.mrb[0].mxu0
          %v2792 = vadd.f32 0.0, %v2791
          %2793 = vmatprep.mubr.bf16.mxu0 0
          %2794 = vmatmul.mubr.bf16.gmra.mrb[0].mxu0 %v2598
          %v2795 = vpop.f32.mrb[0].mxu0
          %v2796 = vadd.f32 0.0, %v2795
          %v2797 = vpop.f32.mrb[0].mxu0
          %v2798 = vadd.f32 0.0, %v2797
          %v2799 = vpop.f32.mrb[0].mxu0
          %v2800 = vadd.f32 0.0, %v2799
          %v2801 = vpop.f32.mrb[0].mxu0
          %v2802 = vadd.f32 0.0, %v2801
          %2803 = vmatprep.mubr.bf16.mxu0 0
          %2804 = vmatmul.mubr.bf16.gmra.mrb[0].mxu0 %v2599
          %v2805 = vpop.f32.mrb[0].mxu0
          %v2806 = vadd.f32 0.0, %v2805
          %v2807 = vpop.f32.mrb[0].mxu0
          %v2808 = vadd.f32 0.0, %v2807
          %v2809 = vpop.f32.mrb[0].mxu0
          %v2810 = vadd.f32 0.0, %v2809
          %v2811 = vpop.f32.mrb[0].mxu0
          %v2812 = vadd.f32 0.0, %v2811
          %2813 = vdwg.mxu0
          %v2814 = vadd.f32 %v2560, %v2736
          %v2815 = vadd.f32 %v2561, %v2738
          %v2816 = vadd.f32 %v2562, %v2740
          %v2817 = vadd.f32 %v2563, %v2742
          %v2818 = vadd.f32 %v2564, %v2746
          %v2819 = vadd.f32 %v2565, %v2748
          %v2820 = vadd.f32 %v2566, %v2750
          %v2821 = vadd.f32 %v2567, %v2752
          %v2822 = vadd.f32 %v2568, %v2756
          %v2823 = vadd.f32 %v2569, %v2758
          %v2824 = vadd.f32 %v2570, %v2760
          %v2825 = vadd.f32 %v2571, %v2762
          %v2826 = vadd.f32 %v2572, %v2766
          %v2827 = vadd.f32 %v2573, %v2768
          %v2828 = vadd.f32 %v2574, %v2770
          %v2829 = vadd.f32 %v2575, %v2772
          %v2830 = vadd.f32 %v2576, %v2776
          %v2831 = vadd.f32 %v2577, %v2778
          %v2832 = vadd.f32 %v2578, %v2780
          %v2833 = vadd.f32 %v2579, %v2782
          %v2834 = vadd.f32 %v2580, %v2786
          %v2835 = vadd.f32 %v2581, %v2788
          %v2836 = vadd.f32 %v2582, %v2790
          %v2837 = vadd.f32 %v2583, %v2792
          %v2838 = vadd.f32 %v2584, %v2796
          %v2839 = vadd.f32 %v2585, %v2798
          %v2840 = vadd.f32 %v2586, %v2800
          %v2841 = vadd.f32 %v2587, %v2802
          %v2842 = vadd.f32 %v2588, %v2806
          %v2843 = vadd.f32 %v2589, %v2808
          %v2844 = vadd.f32 %v2590, %v2810
          %v2845 = vadd.f32 %v2591, %v2812
          %2846 = vst [vmem:[#allocation3] sm:$0xff] %v2814
          %2847 = vst [vmem:[#allocation3 + $0x8] sm:$0xff] %v2815
          %2848 = vst [vmem:[#allocation3 + $0x10] sm:$0xff] %v2816
          %2849 = vst [vmem:[#allocation3 + $0x18] sm:$0xff] %v2817
          %2850 = vst [vmem:[#allocation3 + $0x20] sm:$0xff] %v2818
          %2851 = vst [vmem:[#allocation3 + $0x28] sm:$0xff] %v2819
          %2852 = vst [vmem:[#allocation3 + $0x30] sm:$0xff] %v2820
          %2853 = vst [vmem:[#allocation3 + $0x38] sm:$0xff] %v2821
          %2854 = vst [vmem:[#allocation3 + $0x40] sm:$0xff] %v2822
          %2855 = vst [vmem:[#allocation3 + $0x48] sm:$0xff] %v2823
          %2856 = vst [vmem:[#allocation3 + $0x50] sm:$0xff] %v2824
          %2857 = vst [vmem:[#allocation3 + $0x58] sm:$0xff] %v2825
          %2858 = vst [vmem:[#allocation3 + $0x60] sm:$0xff] %v2826
          %2859 = vst [vmem:[#allocation3 + $0x68] sm:$0xff] %v2827
          %2860 = vst [vmem:[#allocation3 + $0x70] sm:$0xff] %v2828
          %2861 = vst [vmem:[#allocation3 + $0x78] sm:$0xff] %v2829
          %2862 = vst [vmem:[#allocation3 + $0x80] sm:$0xff] %v2830
          %2863 = vst [vmem:[#allocation3 + $0x88] sm:$0xff] %v2831
          %2864 = vst [vmem:[#allocation3 + $0x90] sm:$0xff] %v2832
          %2865 = vst [vmem:[#allocation3 + $0x98] sm:$0xff] %v2833
          %2866 = vst [vmem:[#allocation3 + $0xa0] sm:$0xff] %v2834
          %2867 = vst [vmem:[#allocation3 + $0xa8] sm:$0xff] %v2835
          %2868 = vst [vmem:[#allocation3 + $0xb0] sm:$0xff] %v2836
          %2869 = vst [vmem:[#allocation3 + $0xb8] sm:$0xff] %v2837
          %2870 = vst [vmem:[#allocation3 + $0xc0] sm:$0xff] %v2838
          %2871 = vst [vmem:[#allocation3 + $0xc8] sm:$0xff] %v2839
          %2872 = vst [vmem:[#allocation3 + $0xd0] sm:$0xff] %v2840
          %2873 = vst [vmem:[#allocation3 + $0xd8] sm:$0xff] %v2841
          %2874 = vst [vmem:[#allocation3 + $0xe0] sm:$0xff] %v2842
          %2875 = vst [vmem:[#allocation3 + $0xe8] sm:$0xff] %v2843
          %2876 = vst [vmem:[#allocation3 + $0xf0] sm:$0xff] %v2844
          %2877 = vst [vmem:[#allocation3 + $0xf8] sm:$0xff] %v2845
        $region81: #{block_forward.1} parent=47 // loop_footer
          %s1642 = sadd.s32 1, %s1638
        $region82: #{block_forward.1} parent=47 // loop_footer_branch
          %1637 = sbr.rel target = $region78
        $region83: #{block_forward.1} parent=47 // loop_exit
          _
        %v2878 = vld [vmem:[#allocation3] sm:$0xff]
        %v2879 = vld [vmem:[#allocation3 + $0x8] sm:$0xff]
        %v2880 = vld [vmem:[#allocation3 + $0x10] sm:$0xff]
        %v2881 = vld [vmem:[#allocation3 + $0x18] sm:$0xff]
        %v2882 = vld [vmem:[#allocation3 + $0x20] sm:$0xff]
        %v2883 = vld [vmem:[#allocation3 + $0x28] sm:$0xff]
        %v2884 = vld [vmem:[#allocation3 + $0x30] sm:$0xff]
        %v2885 = vld [vmem:[#allocation3 + $0x38] sm:$0xff]
        %v2886 = vld [vmem:[#allocation3 + $0x40] sm:$0xff]
        %v2887 = vld [vmem:[#allocation3 + $0x48] sm:$0xff]
        %v2888 = vld [vmem:[#allocation3 + $0x50] sm:$0xff]
        %v2889 = vld [vmem:[#allocation3 + $0x58] sm:$0xff]
        %v2890 = vld [vmem:[#allocation3 + $0x60] sm:$0xff]
        %v2891 = vld [vmem:[#allocation3 + $0x68] sm:$0xff]
        %v2892 = vld [vmem:[#allocation3 + $0x70] sm:$0xff]
        %v2893 = vld [vmem:[#allocation3 + $0x78] sm:$0xff]
        %v2894 = vld [vmem:[#allocation3 + $0x80] sm:$0xff]
        %v2895 = vld [vmem:[#allocation3 + $0x88] sm:$0xff]
        %v2896 = vld [vmem:[#allocation3 + $0x90] sm:$0xff]
        %v2897 = vld [vmem:[#allocation3 + $0x98] sm:$0xff]
        %v2898 = vld [vmem:[#allocation3 + $0xa0] sm:$0xff]
        %v2899 = vld [vmem:[#allocation3 + $0xa8] sm:$0xff]
        %v2900 = vld [vmem:[#allocation3 + $0xb0] sm:$0xff]
        %v2901 = vld [vmem:[#allocation3 + $0xb8] sm:$0xff]
        %v2902 = vld [vmem:[#allocation3 + $0xc0] sm:$0xff]
        %v2903 = vld [vmem:[#allocation3 + $0xc8] sm:$0xff]
        %v2904 = vld [vmem:[#allocation3 + $0xd0] sm:$0xff]
        %v2905 = vld [vmem:[#allocation3 + $0xd8] sm:$0xff]
        %v2906 = vld [vmem:[#allocation3 + $0xe0] sm:$0xff]
        %v2907 = vld [vmem:[#allocation3 + $0xe8] sm:$0xff]
        %v2908 = vld [vmem:[#allocation3 + $0xf0] sm:$0xff]
        %v2909 = vld [vmem:[#allocation3 + $0xf8] sm:$0xff]
        %v2910 = vadd.f32 %v385, %v2878
        %v2911 = vadd.f32 %v386, %v2879
        %v2912 = vadd.f32 %v387, %v2880
        %v2913 = vadd.f32 %v388, %v2881
        %v2914 = vadd.f32 %v389, %v2882
        %v2915 = vadd.f32 %v390, %v2883
        %v2916 = vadd.f32 %v391, %v2884
        %v2917 = vadd.f32 %v392, %v2885
        %v2918 = vadd.f32 %v393, %v2886
        %v2919 = vadd.f32 %v394, %v2887
        %v2920 = vadd.f32 %v395, %v2888
        %v2921 = vadd.f32 %v396, %v2889
        %v2922 = vadd.f32 %v397, %v2890
        %v2923 = vadd.f32 %v398, %v2891
        %v2924 = vadd.f32 %v399, %v2892
        %v2925 = vadd.f32 %v400, %v2893
        %v2926 = vadd.f32 %v401, %v2894
        %v2927 = vadd.f32 %v402, %v2895
        %v2928 = vadd.f32 %v403, %v2896
        %v2929 = vadd.f32 %v404, %v2897
        %v2930 = vadd.f32 %v405, %v2898
        %v2931 = vadd.f32 %v406, %v2899
        %v2932 = vadd.f32 %v407, %v2900
        %v2933 = vadd.f32 %v408, %v2901
        %v2934 = vadd.f32 %v409, %v2902
        %v2935 = vadd.f32 %v410, %v2903
        %v2936 = vadd.f32 %v411, %v2904
        %v2937 = vadd.f32 %v412, %v2905
        %v2938 = vadd.f32 %v413, %v2906
        %v2939 = vadd.f32 %v414, %v2907
        %v2940 = vadd.f32 %v415, %v2908
        %v2941 = vadd.f32 %v416, %v2909
        %v2942 = vmul.f32 %v2910, %v2910
        %v2943 = vmul.f32 %v2911, %v2911
        %v2944 = vmul.f32 %v2912, %v2912
        %v2945 = vmul.f32 %v2913, %v2913
        %v2946 = vmul.f32 %v2914, %v2914
        %v2947 = vmul.f32 %v2915, %v2915
        %v2948 = vmul.f32 %v2916, %v2916
        %v2949 = vmul.f32 %v2917, %v2917
        %v2950 = vmul.f32 %v2918, %v2918
        %v2951 = vmul.f32 %v2919, %v2919
        %v2952 = vmul.f32 %v2920, %v2920
        %v2953 = vmul.f32 %v2921, %v2921
        %v2954 = vmul.f32 %v2922, %v2922
        %v2955 = vmul.f32 %v2923, %v2923
        %v2956 = vmul.f32 %v2924, %v2924
        %v2957 = vmul.f32 %v2925, %v2925
        %v2958 = vmul.f32 %v2926, %v2926
        %v2959 = vmul.f32 %v2927, %v2927
        %v2960 = vmul.f32 %v2928, %v2928
        %v2961 = vmul.f32 %v2929, %v2929
        %v2962 = vmul.f32 %v2930, %v2930
        %v2963 = vmul.f32 %v2931, %v2931
        %v2964 = vmul.f32 %v2932, %v2932
        %v2965 = vmul.f32 %v2933, %v2933
        %v2966 = vmul.f32 %v2934, %v2934
        %v2967 = vmul.f32 %v2935, %v2935
        %v2968 = vmul.f32 %v2936, %v2936
        %v2969 = vmul.f32 %v2937, %v2937
        %v2970 = vmul.f32 %v2938, %v2938
        %v2971 = vmul.f32 %v2939, %v2939
        %v2972 = vmul.f32 %v2940, %v2940
        %v2973 = vmul.f32 %v2941, %v2941
        %v2974 = vadd.f32 %v2942, %v2943
        %2975 = vadd.xlane.f32.xlu0 %v2974
        %v2976 = vpop.xlane.xlu0 %2975
        %v2977 = vadd.f32 %v2944, %v2945
        %2978 = vadd.xlane.f32.xlu0 %v2977
        %v2979 = vpop.xlane.xlu0 %2978
        %v2980 = vadd.f32 %v2946, %v2947
        %2981 = vadd.xlane.f32.xlu0 %v2980
        %v2982 = vpop.xlane.xlu0 %2981
        %v2983 = vadd.f32 %v2948, %v2949
        %2984 = vadd.xlane.f32.xlu0 %v2983
        %v2985 = vpop.xlane.xlu0 %2984
        %v2986 = vadd.f32 %v2950, %v2951
        %2987 = vadd.xlane.f32.xlu0 %v2986
        %v2988 = vpop.xlane.xlu0 %2987
        %v2989 = vadd.f32 %v2952, %v2953
        %2990 = vadd.xlane.f32.xlu0 %v2989
        %v2991 = vpop.xlane.xlu0 %2990
        %v2992 = vadd.f32 %v2954, %v2955
        %2993 = vadd.xlane.f32.xlu0 %v2992
        %v2994 = vpop.xlane.xlu0 %2993
        %v2995 = vadd.f32 %v2956, %v2957
        %2996 = vadd.xlane.f32.xlu0 %v2995
        %v2997 = vpop.xlane.xlu0 %2996
        %v2998 = vadd.f32 %v2958, %v2959
        %2999 = vadd.xlane.f32.xlu0 %v2998
        %v3000 = vpop.xlane.xlu0 %2999
        %v3001 = vadd.f32 %v2960, %v2961
        %3002 = vadd.xlane.f32.xlu0 %v3001
        %v3003 = vpop.xlane.xlu0 %3002
        %v3004 = vadd.f32 %v2962, %v2963
        %3005 = vadd.xlane.f32.xlu0 %v3004
        %v3006 = vpop.xlane.xlu0 %3005
        %v3007 = vadd.f32 %v2964, %v2965
        %3008 = vadd.xlane.f32.xlu0 %v3007
        %v3009 = vpop.xlane.xlu0 %3008
        %v3010 = vadd.f32 %v2966, %v2967
        %3011 = vadd.xlane.f32.xlu0 %v3010
        %v3012 = vpop.xlane.xlu0 %3011
        %v3013 = vadd.f32 %v2968, %v2969
        %3014 = vadd.xlane.f32.xlu0 %v3013
        %v3015 = vpop.xlane.xlu0 %3014
        %v3016 = vadd.f32 %v2970, %v2971
        %3017 = vadd.xlane.f32.xlu0 %v3016
        %v3018 = vpop.xlane.xlu0 %3017
        %v3019 = vadd.f32 %v2972, %v2973
        %3020 = vadd.xlane.f32.xlu0 %v3019
        %v3021 = vpop.xlane.xlu0 %3020
        %v3022 = vmul.f32 %v2976, %v497
        %v3023 = vmul.f32 %v2979, %v497
        %v3024 = vmul.f32 %v2982, %v497
        %v3025 = vmul.f32 %v2985, %v497
        %v3026 = vmul.f32 %v2988, %v497
        %v3027 = vmul.f32 %v2991, %v497
        %v3028 = vmul.f32 %v2994, %v497
        %v3029 = vmul.f32 %v2997, %v497
        %v3030 = vmul.f32 %v3000, %v497
        %v3031 = vmul.f32 %v3003, %v497
        %v3032 = vmul.f32 %v3006, %v497
        %v3033 = vmul.f32 %v3009, %v497
        %v3034 = vmul.f32 %v3012, %v497
        %v3035 = vmul.f32 %v3015, %v497
        %v3036 = vmul.f32 %v3018, %v497
        %v3037 = vmul.f32 %v3021, %v497
        %v3038 = vadd.f32 %v3022, 1.1920929e-07
        %v3039 = vadd.f32 %v3023, 1.1920929e-07
        %v3040 = vadd.f32 %v3024, 1.1920929e-07
        %v3041 = vadd.f32 %v3025, 1.1920929e-07
        %v3042 = vadd.f32 %v3026, 1.1920929e-07
        %v3043 = vadd.f32 %v3027, 1.1920929e-07
        %v3044 = vadd.f32 %v3028, 1.1920929e-07
        %v3045 = vadd.f32 %v3029, 1.1920929e-07
        %v3046 = vadd.f32 %v3030, 1.1920929e-07
        %v3047 = vadd.f32 %v3031, 1.1920929e-07
        %v3048 = vadd.f32 %v3032, 1.1920929e-07
        %v3049 = vadd.f32 %v3033, 1.1920929e-07
        %v3050 = vadd.f32 %v3034, 1.1920929e-07
        %v3051 = vadd.f32 %v3035, 1.1920929e-07
        %v3052 = vadd.f32 %v3036, 1.1920929e-07
        %v3053 = vadd.f32 %v3037, 1.1920929e-07
        %v3054 = vrsqrt.pop %v3038
        %v3055 = vrsqrt.pop %v3039
        %v3056 = vrsqrt.pop %v3040
        %v3057 = vrsqrt.pop %v3041
        %v3058 = vrsqrt.pop %v3042
        %v3059 = vrsqrt.pop %v3043
        %v3060 = vrsqrt.pop %v3044
        %v3061 = vrsqrt.pop %v3045
        %v3062 = vrsqrt.pop %v3046
        %v3063 = vrsqrt.pop %v3047
        %v3064 = vrsqrt.pop %v3048
        %v3065 = vrsqrt.pop %v3049
        %v3066 = vrsqrt.pop %v3050
        %v3067 = vrsqrt.pop %v3051
        %v3068 = vrsqrt.pop %v3052
        %v3069 = vrsqrt.pop %v3053
        %v3070 = vmul.f32 %v2910, %v3054
        %v3071 = vmul.f32 %v2911, %v3054
        %v3072 = vmul.f32 %v2912, %v3055
        %v3073 = vmul.f32 %v2913, %v3055
        %v3074 = vmul.f32 %v2914, %v3056
        %v3075 = vmul.f32 %v2915, %v3056
        %v3076 = vmul.f32 %v2916, %v3057
        %v3077 = vmul.f32 %v2917, %v3057
        %v3078 = vmul.f32 %v2918, %v3058
        %v3079 = vmul.f32 %v2919, %v3058
        %v3080 = vmul.f32 %v2920, %v3059
        %v3081 = vmul.f32 %v2921, %v3059
        %v3082 = vmul.f32 %v2922, %v3060
        %v3083 = vmul.f32 %v2923, %v3060
        %v3084 = vmul.f32 %v2924, %v3061
        %v3085 = vmul.f32 %v2925, %v3061
        %v3086 = vmul.f32 %v2926, %v3062
        %v3087 = vmul.f32 %v2927, %v3062
        %v3088 = vmul.f32 %v2928, %v3063
        %v3089 = vmul.f32 %v2929, %v3063
        %v3090 = vmul.f32 %v2930, %v3064
        %v3091 = vmul.f32 %v2931, %v3064
        %v3092 = vmul.f32 %v2932, %v3065
        %v3093 = vmul.f32 %v2933, %v3065
        %v3094 = vmul.f32 %v2934, %v3066
        %v3095 = vmul.f32 %v2935, %v3066
        %v3096 = vmul.f32 %v2936, %v3067
        %v3097 = vmul.f32 %v2937, %v3067
        %v3098 = vmul.f32 %v2938, %v3068
        %v3099 = vmul.f32 %v2939, %v3068
        %v3100 = vmul.f32 %v2940, %v3069
        %v3101 = vmul.f32 %v2941, %v3069
        %v3102 = vpack.c.bf16 %v3072, %v3070
        %v3103 = vpack.c.bf16 %v3073, %v3071
        %v3104 = vpack.c.bf16 %v3076, %v3074
        %v3105 = vpack.c.bf16 %v3077, %v3075
        %v3106 = vpack.c.bf16 %v3080, %v3078
        %v3107 = vpack.c.bf16 %v3081, %v3079
        %v3108 = vpack.c.bf16 %v3084, %v3082
        %v3109 = vpack.c.bf16 %v3085, %v3083
        %v3110 = vpack.c.bf16 %v3088, %v3086
        %v3111 = vpack.c.bf16 %v3089, %v3087
        %v3112 = vpack.c.bf16 %v3092, %v3090
        %v3113 = vpack.c.bf16 %v3093, %v3091
        %v3114 = vpack.c.bf16 %v3096, %v3094
        %v3115 = vpack.c.bf16 %v3097, %v3095
        %v3116 = vpack.c.bf16 %v3100, %v3098
        %v3117 = vpack.c.bf16 %v3101, %v3099
        %v3118 = vld [vmem:[#allocation10] sm:$0xff]
        %v3119 = vld [vmem:[#allocation10 + $0x8] sm:$0xff]
        %v3120 = vld [vmem:[#allocation10 + $0x10] sm:$0xff]
        %v3121 = vld [vmem:[#allocation10 + $0x18] sm:$0xff]
        %v3122 = vld [vmem:[#allocation10 + $0x20] sm:$0xff]
        %v3123 = vld [vmem:[#allocation10 + $0x28] sm:$0xff]
        %v3124 = vld [vmem:[#allocation10 + $0x30] sm:$0xff]
        %v3125 = vld [vmem:[#allocation10 + $0x38] sm:$0xff]
        %v3126 = vld [vmem:[#allocation10 + $0x40] sm:$0xff]
        %v3127 = vld [vmem:[#allocation10 + $0x48] sm:$0xff]
        %v3128 = vld [vmem:[#allocation10 + $0x50] sm:$0xff]
        %v3129 = vld [vmem:[#allocation10 + $0x58] sm:$0xff]
        %v3130 = vld [vmem:[#allocation10 + $0x60] sm:$0xff]
        %v3131 = vld [vmem:[#allocation10 + $0x68] sm:$0xff]
        %v3132 = vld [vmem:[#allocation10 + $0x70] sm:$0xff]
        %v3133 = vld [vmem:[#allocation10 + $0x78] sm:$0xff]
        %v3134 = vld [vmem:[#allocation10 + $0x80] sm:$0xff]
        %v3135 = vld [vmem:[#allocation10 + $0x88] sm:$0xff]
        %v3136 = vld [vmem:[#allocation10 + $0x90] sm:$0xff]
        %v3137 = vld [vmem:[#allocation10 + $0x98] sm:$0xff]
        %v3138 = vld [vmem:[#allocation10 + $0xa0] sm:$0xff]
        %v3139 = vld [vmem:[#allocation10 + $0xa8] sm:$0xff]
        %v3140 = vld [vmem:[#allocation10 + $0xb0] sm:$0xff]
        %v3141 = vld [vmem:[#allocation10 + $0xb8] sm:$0xff]
        %v3142 = vld [vmem:[#allocation10 + $0xc0] sm:$0xff]
        %v3143 = vld [vmem:[#allocation10 + $0xc8] sm:$0xff]
        %v3144 = vld [vmem:[#allocation10 + $0xd0] sm:$0xff]
        %v3145 = vld [vmem:[#allocation10 + $0xd8] sm:$0xff]
        %v3146 = vld [vmem:[#allocation10 + $0xe0] sm:$0xff]
        %v3147 = vld [vmem:[#allocation10 + $0xe8] sm:$0xff]
        %v3148 = vld [vmem:[#allocation10 + $0xf0] sm:$0xff]
        %v3149 = vld [vmem:[#allocation10 + $0xf8] sm:$0xff]
        %v3150 = vld [vmem:[#allocation10 + $0x100] sm:$0xff]
        %v3151 = vld [vmem:[#allocation10 + $0x108] sm:$0xff]
        %v3152 = vld [vmem:[#allocation10 + $0x110] sm:$0xff]
        %v3153 = vld [vmem:[#allocation10 + $0x118] sm:$0xff]
        %v3154 = vld [vmem:[#allocation10 + $0x120] sm:$0xff]
        %v3155 = vld [vmem:[#allocation10 + $0x128] sm:$0xff]
        %v3156 = vld [vmem:[#allocation10 + $0x130] sm:$0xff]
        %v3157 = vld [vmem:[#allocation10 + $0x138] sm:$0xff]
        %v3158 = vld [vmem:[#allocation10 + $0x140] sm:$0xff]
        %v3159 = vld [vmem:[#allocation10 + $0x148] sm:$0xff]
        %v3160 = vld [vmem:[#allocation10 + $0x150] sm:$0xff]
        %v3161 = vld [vmem:[#allocation10 + $0x158] sm:$0xff]
        %v3162 = vld [vmem:[#allocation10 + $0x160] sm:$0xff]
        %v3163 = vld [vmem:[#allocation10 + $0x168] sm:$0xff]
        %v3164 = vld [vmem:[#allocation10 + $0x170] sm:$0xff]
        %v3165 = vld [vmem:[#allocation10 + $0x178] sm:$0xff]
        %v3166 = vld [vmem:[#allocation10 + $0x180] sm:$0xff]
        %v3167 = vld [vmem:[#allocation10 + $0x188] sm:$0xff]
        %v3168 = vld [vmem:[#allocation10 + $0x190] sm:$0xff]
        %v3169 = vld [vmem:[#allocation10 + $0x198] sm:$0xff]
        %v3170 = vld [vmem:[#allocation10 + $0x1a0] sm:$0xff]
        %v3171 = vld [vmem:[#allocation10 + $0x1a8] sm:$0xff]
        %v3172 = vld [vmem:[#allocation10 + $0x1b0] sm:$0xff]
        %v3173 = vld [vmem:[#allocation10 + $0x1b8] sm:$0xff]
        %v3174 = vld [vmem:[#allocation10 + $0x1c0] sm:$0xff]
        %v3175 = vld [vmem:[#allocation10 + $0x1c8] sm:$0xff]
        %v3176 = vld [vmem:[#allocation10 + $0x1d0] sm:$0xff]
        %v3177 = vld [vmem:[#allocation10 + $0x1d8] sm:$0xff]
        %v3178 = vld [vmem:[#allocation10 + $0x1e0] sm:$0xff]
        %v3179 = vld [vmem:[#allocation10 + $0x1e8] sm:$0xff]
        %v3180 = vld [vmem:[#allocation10 + $0x1f0] sm:$0xff]
        %v3181 = vld [vmem:[#allocation10 + $0x1f8] sm:$0xff]
        %v3182 = vld [vmem:[#allocation10 + $0x200] sm:$0xff]
        %v3183 = vld [vmem:[#allocation10 + $0x208] sm:$0xff]
        %v3184 = vld [vmem:[#allocation10 + $0x210] sm:$0xff]
        %v3185 = vld [vmem:[#allocation10 + $0x218] sm:$0xff]
        %v3186 = vld [vmem:[#allocation10 + $0x220] sm:$0xff]
        %v3187 = vld [vmem:[#allocation10 + $0x228] sm:$0xff]
        %v3188 = vld [vmem:[#allocation10 + $0x230] sm:$0xff]
        %v3189 = vld [vmem:[#allocation10 + $0x238] sm:$0xff]
        %v3190 = vld [vmem:[#allocation10 + $0x240] sm:$0xff]
        %v3191 = vld [vmem:[#allocation10 + $0x248] sm:$0xff]
        %v3192 = vld [vmem:[#allocation10 + $0x250] sm:$0xff]
        %v3193 = vld [vmem:[#allocation10 + $0x258] sm:$0xff]
        %v3194 = vld [vmem:[#allocation10 + $0x260] sm:$0xff]
        %v3195 = vld [vmem:[#allocation10 + $0x268] sm:$0xff]
        %v3196 = vld [vmem:[#allocation10 + $0x270] sm:$0xff]
        %v3197 = vld [vmem:[#allocation10 + $0x278] sm:$0xff]
        %v3198 = vld [vmem:[#allocation10 + $0x280] sm:$0xff]
        %v3199 = vld [vmem:[#allocation10 + $0x288] sm:$0xff]
        %v3200 = vld [vmem:[#allocation10 + $0x290] sm:$0xff]
        %v3201 = vld [vmem:[#allocation10 + $0x298] sm:$0xff]
        %v3202 = vld [vmem:[#allocation10 + $0x2a0] sm:$0xff]
        %v3203 = vld [vmem:[#allocation10 + $0x2a8] sm:$0xff]
        %v3204 = vld [vmem:[#allocation10 + $0x2b0] sm:$0xff]
        %v3205 = vld [vmem:[#allocation10 + $0x2b8] sm:$0xff]
        %v3206 = vld [vmem:[#allocation10 + $0x2c0] sm:$0xff]
        %v3207 = vld [vmem:[#allocation10 + $0x2c8] sm:$0xff]
        %v3208 = vld [vmem:[#allocation10 + $0x2d0] sm:$0xff]
        %v3209 = vld [vmem:[#allocation10 + $0x2d8] sm:$0xff]
        %v3210 = vld [vmem:[#allocation10 + $0x2e0] sm:$0xff]
        %v3211 = vld [vmem:[#allocation10 + $0x2e8] sm:$0xff]
        %v3212 = vld [vmem:[#allocation10 + $0x2f0] sm:$0xff]
        %v3213 = vld [vmem:[#allocation10 + $0x2f8] sm:$0xff]
        %v3214 = vld [vmem:[#allocation10 + $0x300] sm:$0xff]
        %v3215 = vld [vmem:[#allocation10 + $0x308] sm:$0xff]
        %v3216 = vld [vmem:[#allocation10 + $0x310] sm:$0xff]
        %v3217 = vld [vmem:[#allocation10 + $0x318] sm:$0xff]
        %v3218 = vld [vmem:[#allocation10 + $0x320] sm:$0xff]
        %v3219 = vld [vmem:[#allocation10 + $0x328] sm:$0xff]
        %v3220 = vld [vmem:[#allocation10 + $0x330] sm:$0xff]
        %v3221 = vld [vmem:[#allocation10 + $0x338] sm:$0xff]
        %v3222 = vld [vmem:[#allocation10 + $0x340] sm:$0xff]
        %v3223 = vld [vmem:[#allocation10 + $0x348] sm:$0xff]
        %v3224 = vld [vmem:[#allocation10 + $0x350] sm:$0xff]
        %v3225 = vld [vmem:[#allocation10 + $0x358] sm:$0xff]
        %v3226 = vld [vmem:[#allocation10 + $0x360] sm:$0xff]
        %v3227 = vld [vmem:[#allocation10 + $0x368] sm:$0xff]
        %v3228 = vld [vmem:[#allocation10 + $0x370] sm:$0xff]
        %v3229 = vld [vmem:[#allocation10 + $0x378] sm:$0xff]
        %v3230 = vld [vmem:[#allocation10 + $0x380] sm:$0xff]
        %v3231 = vld [vmem:[#allocation10 + $0x388] sm:$0xff]
        %v3232 = vld [vmem:[#allocation10 + $0x390] sm:$0xff]
        %v3233 = vld [vmem:[#allocation10 + $0x398] sm:$0xff]
        %v3234 = vld [vmem:[#allocation10 + $0x3a0] sm:$0xff]
        %v3235 = vld [vmem:[#allocation10 + $0x3a8] sm:$0xff]
        %v3236 = vld [vmem:[#allocation10 + $0x3b0] sm:$0xff]
        %v3237 = vld [vmem:[#allocation10 + $0x3b8] sm:$0xff]
        %v3238 = vld [vmem:[#allocation10 + $0x3c0] sm:$0xff]
        %v3239 = vld [vmem:[#allocation10 + $0x3c8] sm:$0xff]
        %v3240 = vld [vmem:[#allocation10 + $0x3d0] sm:$0xff]
        %v3241 = vld [vmem:[#allocation10 + $0x3d8] sm:$0xff]
        %v3242 = vld [vmem:[#allocation10 + $0x3e0] sm:$0xff]
        %v3243 = vld [vmem:[#allocation10 + $0x3e8] sm:$0xff]
        %v3244 = vld [vmem:[#allocation10 + $0x3f0] sm:$0xff]
        %v3245 = vld [vmem:[#allocation10 + $0x3f8] sm:$0xff]
        %v3374 = vunpack.c.l.b16 %v3118
        %v3375 = vunpack.c.h.b16 %v3118
        %v3376 = vunpack.c.l.b16 %v3119
        %v3377 = vunpack.c.h.b16 %v3119
        %v3378 = vunpack.c.l.b16 %v3120
        %v3379 = vunpack.c.h.b16 %v3120
        %v3380 = vunpack.c.l.b16 %v3121
        %v3381 = vunpack.c.h.b16 %v3121
        %v3382 = vunpack.c.l.b16 %v3122
        %v3383 = vunpack.c.h.b16 %v3122
        %v3384 = vunpack.c.l.b16 %v3123
        %v3385 = vunpack.c.h.b16 %v3123
        %v3386 = vunpack.c.l.b16 %v3124
        %v3387 = vunpack.c.h.b16 %v3124
        %v3388 = vunpack.c.l.b16 %v3125
        %v3389 = vunpack.c.h.b16 %v3125
        %v3390 = vunpack.c.l.b16 %v3126
        %v3391 = vunpack.c.h.b16 %v3126
        %v3392 = vunpack.c.l.b16 %v3127
        %v3393 = vunpack.c.h.b16 %v3127
        %v3394 = vunpack.c.l.b16 %v3128
        %v3395 = vunpack.c.h.b16 %v3128
        %v3396 = vunpack.c.l.b16 %v3129
        %v3397 = vunpack.c.h.b16 %v3129
        %v3398 = vunpack.c.l.b16 %v3130
        %v3399 = vunpack.c.h.b16 %v3130
        %v3400 = vunpack.c.l.b16 %v3131
        %v3401 = vunpack.c.h.b16 %v3131
        %v3402 = vunpack.c.l.b16 %v3132
        %v3403 = vunpack.c.h.b16 %v3132
        %v3404 = vunpack.c.l.b16 %v3133
        %v3405 = vunpack.c.h.b16 %v3133
        %v3406 = vunpack.c.l.b16 %v3134
        %v3407 = vunpack.c.h.b16 %v3134
        %v3408 = vunpack.c.l.b16 %v3135
        %v3409 = vunpack.c.h.b16 %v3135
        %v3410 = vunpack.c.l.b16 %v3136
        %v3411 = vunpack.c.h.b16 %v3136
        %v3412 = vunpack.c.l.b16 %v3137
        %v3413 = vunpack.c.h.b16 %v3137
        %v3414 = vunpack.c.l.b16 %v3138
        %v3415 = vunpack.c.h.b16 %v3138
        %v3416 = vunpack.c.l.b16 %v3139
        %v3417 = vunpack.c.h.b16 %v3139
        %v3418 = vunpack.c.l.b16 %v3140
        %v3419 = vunpack.c.h.b16 %v3140
        %v3420 = vunpack.c.l.b16 %v3141
        %v3421 = vunpack.c.h.b16 %v3141
        %v3422 = vunpack.c.l.b16 %v3142
        %v3423 = vunpack.c.h.b16 %v3142
        %v3424 = vunpack.c.l.b16 %v3143
        %v3425 = vunpack.c.h.b16 %v3143
        %v3426 = vunpack.c.l.b16 %v3144
        %v3427 = vunpack.c.h.b16 %v3144
        %v3428 = vunpack.c.l.b16 %v3145
        %v3429 = vunpack.c.h.b16 %v3145
        %v3430 = vunpack.c.l.b16 %v3146
        %v3431 = vunpack.c.h.b16 %v3146
        %v3432 = vunpack.c.l.b16 %v3147
        %v3433 = vunpack.c.h.b16 %v3147
        %v3434 = vunpack.c.l.b16 %v3148
        %v3435 = vunpack.c.h.b16 %v3148
        %v3436 = vunpack.c.l.b16 %v3149
        %v3437 = vunpack.c.h.b16 %v3149
        %v3438 = vunpack.c.l.b16 %v3150
        %v3439 = vunpack.c.h.b16 %v3150
        %v3440 = vunpack.c.l.b16 %v3151
        %v3441 = vunpack.c.h.b16 %v3151
        %v3442 = vunpack.c.l.b16 %v3152
        %v3443 = vunpack.c.h.b16 %v3152
        %v3444 = vunpack.c.l.b16 %v3153
        %v3445 = vunpack.c.h.b16 %v3153
        %v3446 = vunpack.c.l.b16 %v3154
        %v3447 = vunpack.c.h.b16 %v3154
        %v3448 = vunpack.c.l.b16 %v3155
        %v3449 = vunpack.c.h.b16 %v3155
        %v3450 = vunpack.c.l.b16 %v3156
        %v3451 = vunpack.c.h.b16 %v3156
        %v3452 = vunpack.c.l.b16 %v3157
        %v3453 = vunpack.c.h.b16 %v3157
        %v3454 = vunpack.c.l.b16 %v3158
        %v3455 = vunpack.c.h.b16 %v3158
        %v3456 = vunpack.c.l.b16 %v3159
        %v3457 = vunpack.c.h.b16 %v3159
        %v3458 = vunpack.c.l.b16 %v3160
        %v3459 = vunpack.c.h.b16 %v3160
        %v3460 = vunpack.c.l.b16 %v3161
        %v3461 = vunpack.c.h.b16 %v3161
        %v3462 = vunpack.c.l.b16 %v3162
        %v3463 = vunpack.c.h.b16 %v3162
        %v3464 = vunpack.c.l.b16 %v3163
        %v3465 = vunpack.c.h.b16 %v3163
        %v3466 = vunpack.c.l.b16 %v3164
        %v3467 = vunpack.c.h.b16 %v3164
        %v3468 = vunpack.c.l.b16 %v3165
        %v3469 = vunpack.c.h.b16 %v3165
        %v3470 = vunpack.c.l.b16 %v3166
        %v3471 = vunpack.c.h.b16 %v3166
        %v3472 = vunpack.c.l.b16 %v3167
        %v3473 = vunpack.c.h.b16 %v3167
        %v3474 = vunpack.c.l.b16 %v3168
        %v3475 = vunpack.c.h.b16 %v3168
        %v3476 = vunpack.c.l.b16 %v3169
        %v3477 = vunpack.c.h.b16 %v3169
        %v3478 = vunpack.c.l.b16 %v3170
        %v3479 = vunpack.c.h.b16 %v3170
        %v3480 = vunpack.c.l.b16 %v3171
        %v3481 = vunpack.c.h.b16 %v3171
        %v3482 = vunpack.c.l.b16 %v3172
        %v3483 = vunpack.c.h.b16 %v3172
        %v3484 = vunpack.c.l.b16 %v3173
        %v3485 = vunpack.c.h.b16 %v3173
        %v3486 = vunpack.c.l.b16 %v3174
        %v3487 = vunpack.c.h.b16 %v3174
        %v3488 = vunpack.c.l.b16 %v3175
        %v3489 = vunpack.c.h.b16 %v3175
        %v3490 = vunpack.c.l.b16 %v3176
        %v3491 = vunpack.c.h.b16 %v3176
        %v3492 = vunpack.c.l.b16 %v3177
        %v3493 = vunpack.c.h.b16 %v3177
        %v3494 = vunpack.c.l.b16 %v3178
        %v3495 = vunpack.c.h.b16 %v3178
        %v3496 = vunpack.c.l.b16 %v3179
        %v3497 = vunpack.c.h.b16 %v3179
        %v3498 = vunpack.c.l.b16 %v3180
        %v3499 = vunpack.c.h.b16 %v3180
        %v3500 = vunpack.c.l.b16 %v3181
        %v3501 = vunpack.c.h.b16 %v3181
        %v3502 = vunpack.c.l.b16 %v3182
        %v3503 = vunpack.c.h.b16 %v3182
        %v3504 = vunpack.c.l.b16 %v3183
        %v3505 = vunpack.c.h.b16 %v3183
        %v3506 = vunpack.c.l.b16 %v3184
        %v3507 = vunpack.c.h.b16 %v3184
        %v3508 = vunpack.c.l.b16 %v3185
        %v3509 = vunpack.c.h.b16 %v3185
        %v3510 = vunpack.c.l.b16 %v3186
        %v3511 = vunpack.c.h.b16 %v3186
        %v3512 = vunpack.c.l.b16 %v3187
        %v3513 = vunpack.c.h.b16 %v3187
        %v3514 = vunpack.c.l.b16 %v3188
        %v3515 = vunpack.c.h.b16 %v3188
        %v3516 = vunpack.c.l.b16 %v3189
        %v3517 = vunpack.c.h.b16 %v3189
        %v3518 = vunpack.c.l.b16 %v3190
        %v3519 = vunpack.c.h.b16 %v3190
        %v3520 = vunpack.c.l.b16 %v3191
        %v3521 = vunpack.c.h.b16 %v3191
        %v3522 = vunpack.c.l.b16 %v3192
        %v3523 = vunpack.c.h.b16 %v3192
        %v3524 = vunpack.c.l.b16 %v3193
        %v3525 = vunpack.c.h.b16 %v3193
        %v3526 = vunpack.c.l.b16 %v3194
        %v3527 = vunpack.c.h.b16 %v3194
        %v3528 = vunpack.c.l.b16 %v3195
        %v3529 = vunpack.c.h.b16 %v3195
        %v3530 = vunpack.c.l.b16 %v3196
        %v3531 = vunpack.c.h.b16 %v3196
        %v3532 = vunpack.c.l.b16 %v3197
        %v3533 = vunpack.c.h.b16 %v3197
        %v3534 = vunpack.c.l.b16 %v3198
        %v3535 = vunpack.c.h.b16 %v3198
        %v3536 = vunpack.c.l.b16 %v3199
        %v3537 = vunpack.c.h.b16 %v3199
        %v3538 = vunpack.c.l.b16 %v3200
        %v3539 = vunpack.c.h.b16 %v3200
        %v3540 = vunpack.c.l.b16 %v3201
        %v3541 = vunpack.c.h.b16 %v3201
        %v3542 = vunpack.c.l.b16 %v3202
        %v3543 = vunpack.c.h.b16 %v3202
        %v3544 = vunpack.c.l.b16 %v3203
        %v3545 = vunpack.c.h.b16 %v3203
        %v3546 = vunpack.c.l.b16 %v3204
        %v3547 = vunpack.c.h.b16 %v3204
        %v3548 = vunpack.c.l.b16 %v3205
        %v3549 = vunpack.c.h.b16 %v3205
        %v3550 = vunpack.c.l.b16 %v3206
        %v3551 = vunpack.c.h.b16 %v3206
        %v3552 = vunpack.c.l.b16 %v3207
        %v3553 = vunpack.c.h.b16 %v3207
        %v3554 = vunpack.c.l.b16 %v3208
        %v3555 = vunpack.c.h.b16 %v3208
        %v3556 = vunpack.c.l.b16 %v3209
        %v3557 = vunpack.c.h.b16 %v3209
        %v3558 = vunpack.c.l.b16 %v3210
        %v3559 = vunpack.c.h.b16 %v3210
        %v3560 = vunpack.c.l.b16 %v3211
        %v3561 = vunpack.c.h.b16 %v3211
        %v3562 = vunpack.c.l.b16 %v3212
        %v3563 = vunpack.c.h.b16 %v3212
        %v3564 = vunpack.c.l.b16 %v3213
        %v3565 = vunpack.c.h.b16 %v3213
        %v3566 = vunpack.c.l.b16 %v3214
        %v3567 = vunpack.c.h.b16 %v3214
        %v3568 = vunpack.c.l.b16 %v3215
        %v3569 = vunpack.c.h.b16 %v3215
        %v3570 = vunpack.c.l.b16 %v3216
        %v3571 = vunpack.c.h.b16 %v3216
        %v3572 = vunpack.c.l.b16 %v3217
        %v3573 = vunpack.c.h.b16 %v3217
        %v3574 = vunpack.c.l.b16 %v3218
        %v3575 = vunpack.c.h.b16 %v3218
        %v3576 = vunpack.c.l.b16 %v3219
        %v3577 = vunpack.c.h.b16 %v3219
        %v3578 = vunpack.c.l.b16 %v3220
        %v3579 = vunpack.c.h.b16 %v3220
        %v3580 = vunpack.c.l.b16 %v3221
        %v3581 = vunpack.c.h.b16 %v3221
        %v3582 = vunpack.c.l.b16 %v3222
        %v3583 = vunpack.c.h.b16 %v3222
        %v3584 = vunpack.c.l.b16 %v3223
        %v3585 = vunpack.c.h.b16 %v3223
        %v3586 = vunpack.c.l.b16 %v3224
        %v3587 = vunpack.c.h.b16 %v3224
        %v3588 = vunpack.c.l.b16 %v3225
        %v3589 = vunpack.c.h.b16 %v3225
        %v3590 = vunpack.c.l.b16 %v3226
        %v3591 = vunpack.c.h.b16 %v3226
        %v3592 = vunpack.c.l.b16 %v3227
        %v3593 = vunpack.c.h.b16 %v3227
        %v3594 = vunpack.c.l.b16 %v3228
        %v3595 = vunpack.c.h.b16 %v3228
        %v3596 = vunpack.c.l.b16 %v3229
        %v3597 = vunpack.c.h.b16 %v3229
        %v3598 = vunpack.c.l.b16 %v3230
        %v3599 = vunpack.c.h.b16 %v3230
        %v3600 = vunpack.c.l.b16 %v3231
        %v3601 = vunpack.c.h.b16 %v3231
        %v3602 = vunpack.c.l.b16 %v3232
        %v3603 = vunpack.c.h.b16 %v3232
        %v3604 = vunpack.c.l.b16 %v3233
        %v3605 = vunpack.c.h.b16 %v3233
        %v3606 = vunpack.c.l.b16 %v3234
        %v3607 = vunpack.c.h.b16 %v3234
        %v3608 = vunpack.c.l.b16 %v3235
        %v3609 = vunpack.c.h.b16 %v3235
        %v3610 = vunpack.c.l.b16 %v3236
        %v3611 = vunpack.c.h.b16 %v3236
        %v3612 = vunpack.c.l.b16 %v3237
        %v3613 = vunpack.c.h.b16 %v3237
        %v3614 = vunpack.c.l.b16 %v3238
        %v3615 = vunpack.c.h.b16 %v3238
        %v3616 = vunpack.c.l.b16 %v3239
        %v3617 = vunpack.c.h.b16 %v3239
        %v3618 = vunpack.c.l.b16 %v3240
        %v3619 = vunpack.c.h.b16 %v3240
        %v3620 = vunpack.c.l.b16 %v3241
        %v3621 = vunpack.c.h.b16 %v3241
        %v3622 = vunpack.c.l.b16 %v3242
        %v3623 = vunpack.c.h.b16 %v3242
        %v3624 = vunpack.c.l.b16 %v3243
        %v3625 = vunpack.c.h.b16 %v3243
        %v3626 = vunpack.c.l.b16 %v3244
        %v3627 = vunpack.c.h.b16 %v3244
        %v3628 = vunpack.c.l.b16 %v3245
        %v3629 = vunpack.c.h.b16 %v3245
        %v3630 = vpack.c.b16 %v3382, %v3374
        %v3631 = vpack.c.b16 %v3383, %v3375
        %v3632 = vpack.c.b16 %v3384, %v3376
        %v3633 = vpack.c.b16 %v3385, %v3377
        %v3634 = vpack.c.b16 %v3386, %v3378
        %v3635 = vpack.c.b16 %v3387, %v3379
        %v3636 = vpack.c.b16 %v3388, %v3380
        %v3637 = vpack.c.b16 %v3389, %v3381
        %v3638 = vpack.c.b16 %v3398, %v3390
        %v3639 = vpack.c.b16 %v3399, %v3391
        %v3640 = vpack.c.b16 %v3400, %v3392
        %v3641 = vpack.c.b16 %v3401, %v3393
        %v3642 = vpack.c.b16 %v3402, %v3394
        %v3643 = vpack.c.b16 %v3403, %v3395
        %v3644 = vpack.c.b16 %v3404, %v3396
        %v3645 = vpack.c.b16 %v3405, %v3397
        %v3646 = vpack.c.b16 %v3414, %v3406
        %v3647 = vpack.c.b16 %v3415, %v3407
        %v3648 = vpack.c.b16 %v3416, %v3408
        %v3649 = vpack.c.b16 %v3417, %v3409
        %v3650 = vpack.c.b16 %v3418, %v3410
        %v3651 = vpack.c.b16 %v3419, %v3411
        %v3652 = vpack.c.b16 %v3420, %v3412
        %v3653 = vpack.c.b16 %v3421, %v3413
        %v3654 = vpack.c.b16 %v3430, %v3422
        %v3655 = vpack.c.b16 %v3431, %v3423
        %v3656 = vpack.c.b16 %v3432, %v3424
        %v3657 = vpack.c.b16 %v3433, %v3425
        %v3658 = vpack.c.b16 %v3434, %v3426
        %v3659 = vpack.c.b16 %v3435, %v3427
        %v3660 = vpack.c.b16 %v3436, %v3428
        %v3661 = vpack.c.b16 %v3437, %v3429
        %v3662 = vpack.c.b16 %v3446, %v3438
        %v3663 = vpack.c.b16 %v3447, %v3439
        %v3664 = vpack.c.b16 %v3448, %v3440
        %v3665 = vpack.c.b16 %v3449, %v3441
        %v3666 = vpack.c.b16 %v3450, %v3442
        %v3667 = vpack.c.b16 %v3451, %v3443
        %v3668 = vpack.c.b16 %v3452, %v3444
        %v3669 = vpack.c.b16 %v3453, %v3445
        %v3670 = vpack.c.b16 %v3462, %v3454
        %v3671 = vpack.c.b16 %v3463, %v3455
        %v3672 = vpack.c.b16 %v3464, %v3456
        %v3673 = vpack.c.b16 %v3465, %v3457
        %v3674 = vpack.c.b16 %v3466, %v3458
        %v3675 = vpack.c.b16 %v3467, %v3459
        %v3676 = vpack.c.b16 %v3468, %v3460
        %v3677 = vpack.c.b16 %v3469, %v3461
        %v3678 = vpack.c.b16 %v3478, %v3470
        %v3679 = vpack.c.b16 %v3479, %v3471
        %v3680 = vpack.c.b16 %v3480, %v3472
        %v3681 = vpack.c.b16 %v3481, %v3473
        %v3682 = vpack.c.b16 %v3482, %v3474
        %v3683 = vpack.c.b16 %v3483, %v3475
        %v3684 = vpack.c.b16 %v3484, %v3476
        %v3685 = vpack.c.b16 %v3485, %v3477
        %v3686 = vpack.c.b16 %v3494, %v3486
        %v3687 = vpack.c.b16 %v3495, %v3487
        %v3688 = vpack.c.b16 %v3496, %v3488
        %v3689 = vpack.c.b16 %v3497, %v3489
        %v3690 = vpack.c.b16 %v3498, %v3490
        %v3691 = vpack.c.b16 %v3499, %v3491
        %v3692 = vpack.c.b16 %v3500, %v3492
        %v3693 = vpack.c.b16 %v3501, %v3493
        %v3694 = vpack.c.b16 %v3510, %v3502
        %v3695 = vpack.c.b16 %v3511, %v3503
        %v3696 = vpack.c.b16 %v3512, %v3504
        %v3697 = vpack.c.b16 %v3513, %v3505
        %v3698 = vpack.c.b16 %v3514, %v3506
        %v3699 = vpack.c.b16 %v3515, %v3507
        %v3700 = vpack.c.b16 %v3516, %v3508
        %v3701 = vpack.c.b16 %v3517, %v3509
        %v3702 = vpack.c.b16 %v3526, %v3518
        %v3703 = vpack.c.b16 %v3527, %v3519
        %v3704 = vpack.c.b16 %v3528, %v3520
        %v3705 = vpack.c.b16 %v3529, %v3521
        %v3706 = vpack.c.b16 %v3530, %v3522
        %v3707 = vpack.c.b16 %v3531, %v3523
        %v3708 = vpack.c.b16 %v3532, %v3524
        %v3709 = vpack.c.b16 %v3533, %v3525
        %v3710 = vpack.c.b16 %v3542, %v3534
        %v3711 = vpack.c.b16 %v3543, %v3535
        %v3712 = vpack.c.b16 %v3544, %v3536
        %v3713 = vpack.c.b16 %v3545, %v3537
        %v3714 = vpack.c.b16 %v3546, %v3538
        %v3715 = vpack.c.b16 %v3547, %v3539
        %v3716 = vpack.c.b16 %v3548, %v3540
        %v3717 = vpack.c.b16 %v3549, %v3541
        %v3718 = vpack.c.b16 %v3558, %v3550
        %v3719 = vpack.c.b16 %v3559, %v3551
        %v3720 = vpack.c.b16 %v3560, %v3552
        %v3721 = vpack.c.b16 %v3561, %v3553
        %v3722 = vpack.c.b16 %v3562, %v3554
        %v3723 = vpack.c.b16 %v3563, %v3555
        %v3724 = vpack.c.b16 %v3564, %v3556
        %v3725 = vpack.c.b16 %v3565, %v3557
        %v3726 = vpack.c.b16 %v3574, %v3566
        %v3727 = vpack.c.b16 %v3575, %v3567
        %v3728 = vpack.c.b16 %v3576, %v3568
        %v3729 = vpack.c.b16 %v3577, %v3569
        %v3730 = vpack.c.b16 %v3578, %v3570
        %v3731 = vpack.c.b16 %v3579, %v3571
        %v3732 = vpack.c.b16 %v3580, %v3572
        %v3733 = vpack.c.b16 %v3581, %v3573
        %v3734 = vpack.c.b16 %v3590, %v3582
        %v3735 = vpack.c.b16 %v3591, %v3583
        %v3736 = vpack.c.b16 %v3592, %v3584
        %v3737 = vpack.c.b16 %v3593, %v3585
        %v3738 = vpack.c.b16 %v3594, %v3586
        %v3739 = vpack.c.b16 %v3595, %v3587
        %v3740 = vpack.c.b16 %v3596, %v3588
        %v3741 = vpack.c.b16 %v3597, %v3589
        %v3742 = vpack.c.b16 %v3606, %v3598
        %v3743 = vpack.c.b16 %v3607, %v3599
        %v3744 = vpack.c.b16 %v3608, %v3600
        %v3745 = vpack.c.b16 %v3609, %v3601
        %v3746 = vpack.c.b16 %v3610, %v3602
        %v3747 = vpack.c.b16 %v3611, %v3603
        %v3748 = vpack.c.b16 %v3612, %v3604
        %v3749 = vpack.c.b16 %v3613, %v3605
        %v3750 = vpack.c.b16 %v3622, %v3614
        %v3751 = vpack.c.b16 %v3623, %v3615
        %v3752 = vpack.c.b16 %v3624, %v3616
        %v3753 = vpack.c.b16 %v3625, %v3617
        %v3754 = vpack.c.b16 %v3626, %v3618
        %v3755 = vpack.c.b16 %v3627, %v3619
        %v3756 = vpack.c.b16 %v3628, %v3620
        %v3757 = vpack.c.b16 %v3629, %v3621
        %3886 = vmatprep.subr.bf16.mxu0 %v3631
        %3887 = vmatpush1.bf16.msra.mxu0 %v3630
        %3888 = vmatprep.subr.bf16.mxu0 %v3639
        %3889 = vmatpush1.bf16.msra.mxu0 %v3638
        %3890 = vmatprep.subr.bf16.mxu0 %v3647
        %3891 = vmatpush1.bf16.msra.mxu0 %v3646
        %3892 = vmatprep.subr.bf16.mxu0 %v3655
        %3893 = vmatpush1.bf16.msra.mxu0 %v3654
        %3894 = vmatprep.subr.bf16.mxu0 %v3663
        %3895 = vmatpush1.bf16.msra.mxu0 %v3662
        %3896 = vmatprep.subr.bf16.mxu0 %v3671
        %3897 = vmatpush1.bf16.msra.mxu0 %v3670
        %3898 = vmatprep.subr.bf16.mxu0 %v3679
        %3899 = vmatpush1.bf16.msra.mxu0 %v3678
        %3900 = vmatprep.subr.bf16.mxu0 %v3687
        %3901 = vmatpush1.bf16.msra.mxu0 %v3686
        %3902 = vmatprep.subr.bf16.mxu0 %v3695
        %3903 = vmatpush1.bf16.msra.mxu0 %v3694
        %3904 = vmatprep.subr.bf16.mxu0 %v3703
        %3905 = vmatpush1.bf16.msra.mxu0 %v3702
        %3906 = vmatprep.subr.bf16.mxu0 %v3711
        %3907 = vmatpush1.bf16.msra.mxu0 %v3710
        %3908 = vmatprep.subr.bf16.mxu0 %v3719
        %3909 = vmatpush1.bf16.msra.mxu0 %v3718
        %3910 = vmatprep.subr.bf16.mxu0 %v3727
        %3911 = vmatpush1.bf16.msra.mxu0 %v3726
        %3912 = vmatprep.subr.bf16.mxu0 %v3735
        %3913 = vmatpush1.bf16.msra.mxu0 %v3734
        %3914 = vmatprep.subr.bf16.mxu0 %v3743
        %3915 = vmatpush1.bf16.msra.mxu0 %v3742
        %3916 = vmatprep.subr.bf16.mxu0 %v3751
        %3917 = vmatpush1.bf16.msra.mxu0 %v3750
        %3918 = vmatprep.mubr.bf16.mxu0 %v3103
        %3919 = vmatmul.mubr.bf16.gmra.mrb[0].mxu0 %v3102
        %v3920 = vpop.f32.mrb[0].mxu0
        %v3921 = vadd.f32 0.0, %v3920
        %v3922 = vpop.f32.mrb[0].mxu0
        %v3923 = vadd.f32 0.0, %v3922
        %v3924 = vpop.f32.mrb[0].mxu0
        %v3925 = vadd.f32 0.0, %v3924
        %v3926 = vpop.f32.mrb[0].mxu0
        %v3927 = vadd.f32 0.0, %v3926
        %3928 = vmatprep.mubr.bf16.mxu0 %v3105
        %3929 = vmatmul.mubr.bf16.gmra.mrb[0].mxu0 %v3104
        %v3930 = vpop.f32.mrb[0].mxu0
        %v3931 = vadd.f32 0.0, %v3930
        %v3932 = vpop.f32.mrb[0].mxu0
        %v3933 = vadd.f32 0.0, %v3932
        %v3934 = vpop.f32.mrb[0].mxu0
        %v3935 = vadd.f32 0.0, %v3934
        %v3936 = vpop.f32.mrb[0].mxu0
        %v3937 = vadd.f32 0.0, %v3936
        %3938 = vmatprep.mubr.bf16.mxu0 %v3107
        %3939 = vmatmul.mubr.bf16.gmra.mrb[0].mxu0 %v3106
        %v3940 = vpop.f32.mrb[0].mxu0
        %v3941 = vadd.f32 0.0, %v3940
        %v3942 = vpop.f32.mrb[0].mxu0
        %v3943 = vadd.f32 0.0, %v3942
        %v3944 = vpop.f32.mrb[0].mxu0
        %v3945 = vadd.f32 0.0, %v3944
        %v3946 = vpop.f32.mrb[0].mxu0
        %v3947 = vadd.f32 0.0, %v3946
        %3948 = vmatprep.mubr.bf16.mxu0 %v3109
        %3949 = vmatmul.mubr.bf16.gmra.mrb[0].mxu0 %v3108
        %v3950 = vpop.f32.mrb[0].mxu0
        %v3951 = vadd.f32 0.0, %v3950
        %v3952 = vpop.f32.mrb[0].mxu0
        %v3953 = vadd.f32 0.0, %v3952
        %v3954 = vpop.f32.mrb[0].mxu0
        %v3955 = vadd.f32 0.0, %v3954
        %v3956 = vpop.f32.mrb[0].mxu0
        %v3957 = vadd.f32 0.0, %v3956
        %3958 = vmatprep.mubr.bf16.mxu0 %v3111
        %3959 = vmatmul.mubr.bf16.gmra.mrb[0].mxu0 %v3110
        %v3960 = vpop.f32.mrb[0].mxu0
        %v3961 = vadd.f32 0.0, %v3960
        %v3962 = vpop.f32.mrb[0].mxu0
        %v3963 = vadd.f32 0.0, %v3962
        %v3964 = vpop.f32.mrb[0].mxu0
        %v3965 = vadd.f32 0.0, %v3964
        %v3966 = vpop.f32.mrb[0].mxu0
        %v3967 = vadd.f32 0.0, %v3966
        %3968 = vmatprep.mubr.bf16.mxu0 %v3113
        %3969 = vmatmul.mubr.bf16.gmra.mrb[0].mxu0 %v3112
        %v3970 = vpop.f32.mrb[0].mxu0
        %v3971 = vadd.f32 0.0, %v3970
        %v3972 = vpop.f32.mrb[0].mxu0
        %v3973 = vadd.f32 0.0, %v3972
        %v3974 = vpop.f32.mrb[0].mxu0
        %v3975 = vadd.f32 0.0, %v3974
        %v3976 = vpop.f32.mrb[0].mxu0
        %v3977 = vadd.f32 0.0, %v3976
        %3978 = vmatprep.mubr.bf16.mxu0 %v3115
        %3979 = vmatmul.mubr.bf16.gmra.mrb[0].mxu0 %v3114
        %v3980 = vpop.f32.mrb[0].mxu0
        %v3981 = vadd.f32 0.0, %v3980
        %v3982 = vpop.f32.mrb[0].mxu0
        %v3983 = vadd.f32 0.0, %v3982
        %v3984 = vpop.f32.mrb[0].mxu0
        %v3985 = vadd.f32 0.0, %v3984
        %v3986 = vpop.f32.mrb[0].mxu0
        %v3987 = vadd.f32 0.0, %v3986
        %3988 = vmatprep.mubr.bf16.mxu0 %v3117
        %3989 = vmatmul.mubr.bf16.gmra.mrb[0].mxu0 %v3116
        %v3990 = vpop.f32.mrb[0].mxu0
        %v3991 = vadd.f32 0.0, %v3990
        %v3992 = vpop.f32.mrb[0].mxu0
        %v3993 = vadd.f32 0.0, %v3992
        %v3994 = vpop.f32.mrb[0].mxu0
        %v3995 = vadd.f32 0.0, %v3994
        %v3996 = vpop.f32.mrb[0].mxu0
        %v3997 = vadd.f32 0.0, %v3996
        %3998 = vdwg.mxu0
        %3999 = vmatprep.subr.bf16.mxu0 %v3633
        %4000 = vmatpush1.bf16.msra.mxu0 %v3632
        %4001 = vmatprep.subr.bf16.mxu0 %v3641
        %4002 = vmatpush1.bf16.msra.mxu0 %v3640
        %4003 = vmatprep.subr.bf16.mxu0 %v3649
        %4004 = vmatpush1.bf16.msra.mxu0 %v3648
        %4005 = vmatprep.subr.bf16.mxu0 %v3657
        %4006 = vmatpush1.bf16.msra.mxu0 %v3656
        %4007 = vmatprep.subr.bf16.mxu0 %v3665
        %4008 = vmatpush1.bf16.msra.mxu0 %v3664
        %4009 = vmatprep.subr.bf16.mxu0 %v3673
        %4010 = vmatpush1.bf16.msra.mxu0 %v3672
        %4011 = vmatprep.subr.bf16.mxu0 %v3681
        %4012 = vmatpush1.bf16.msra.mxu0 %v3680
        %4013 = vmatprep.subr.bf16.mxu0 %v3689
        %4014 = vmatpush1.bf16.msra.mxu0 %v3688
        %4015 = vmatprep.subr.bf16.mxu0 %v3697
        %4016 = vmatpush1.bf16.msra.mxu0 %v3696
        %4017 = vmatprep.subr.bf16.mxu0 %v3705
        %4018 = vmatpush1.bf16.msra.mxu0 %v3704
        %4019 = vmatprep.subr.bf16.mxu0 %v3713
        %4020 = vmatpush1.bf16.msra.mxu0 %v3712
        %4021 = vmatprep.subr.bf16.mxu0 %v3721
        %4022 = vmatpush1.bf16.msra.mxu0 %v3720
        %4023 = vmatprep.subr.bf16.mxu0 %v3729
        %4024 = vmatpush1.bf16.msra.mxu0 %v3728
        %4025 = vmatprep.subr.bf16.mxu0 %v3737
        %4026 = vmatpush1.bf16.msra.mxu0 %v3736
        %4027 = vmatprep.subr.bf16.mxu0 %v3745
        %4028 = vmatpush1.bf16.msra.mxu0 %v3744
        %4029 = vmatprep.subr.bf16.mxu0 %v3753
        %4030 = vmatpush1.bf16.msra.mxu0 %v3752
        %4031 = vmatprep.mubr.bf16.mxu0 %v3103
        %4032 = vmatmul.mubr.bf16.gmra.mrb[0].mxu0 %v3102
        %v4033 = vpop.f32.mrb[0].mxu0
        %v4034 = vadd.f32 0.0, %v4033
        %v4035 = vpop.f32.mrb[0].mxu0
        %v4036 = vadd.f32 0.0, %v4035
        %v4037 = vpop.f32.mrb[0].mxu0
        %v4038 = vadd.f32 0.0, %v4037
        %v4039 = vpop.f32.mrb[0].mxu0
        %v4040 = vadd.f32 0.0, %v4039
        %4041 = vmatprep.mubr.bf16.mxu0 %v3105
        %4042 = vmatmul.mubr.bf16.gmra.mrb[0].mxu0 %v3104
        %v4043 = vpop.f32.mrb[0].mxu0
        %v4044 = vadd.f32 0.0, %v4043
        %v4045 = vpop.f32.mrb[0].mxu0
        %v4046 = vadd.f32 0.0, %v4045
        %v4047 = vpop.f32.mrb[0].mxu0
        %v4048 = vadd.f32 0.0, %v4047
        %v4049 = vpop.f32.mrb[0].mxu0
        %v4050 = vadd.f32 0.0, %v4049
        %4051 = vmatprep.mubr.bf16.mxu0 %v3107
        %4052 = vmatmul.mubr.bf16.gmra.mrb[0].mxu0 %v3106
        %v4053 = vpop.f32.mrb[0].mxu0
        %v4054 = vadd.f32 0.0, %v4053
        %v4055 = vpop.f32.mrb[0].mxu0
        %v4056 = vadd.f32 0.0, %v4055
        %v4057 = vpop.f32.mrb[0].mxu0
        %v4058 = vadd.f32 0.0, %v4057
        %v4059 = vpop.f32.mrb[0].mxu0
        %v4060 = vadd.f32 0.0, %v4059
        %4061 = vmatprep.mubr.bf16.mxu0 %v3109
        %4062 = vmatmul.mubr.bf16.gmra.mrb[0].mxu0 %v3108
        %v4063 = vpop.f32.mrb[0].mxu0
        %v4064 = vadd.f32 0.0, %v4063
        %v4065 = vpop.f32.mrb[0].mxu0
        %v4066 = vadd.f32 0.0, %v4065
        %v4067 = vpop.f32.mrb[0].mxu0
        %v4068 = vadd.f32 0.0, %v4067
        %v4069 = vpop.f32.mrb[0].mxu0
        %v4070 = vadd.f32 0.0, %v4069
        %4071 = vmatprep.mubr.bf16.mxu0 %v3111
        %4072 = vmatmul.mubr.bf16.gmra.mrb[0].mxu0 %v3110
        %v4073 = vpop.f32.mrb[0].mxu0
        %v4074 = vadd.f32 0.0, %v4073
        %v4075 = vpop.f32.mrb[0].mxu0
        %v4076 = vadd.f32 0.0, %v4075
        %v4077 = vpop.f32.mrb[0].mxu0
        %v4078 = vadd.f32 0.0, %v4077
        %v4079 = vpop.f32.mrb[0].mxu0
        %v4080 = vadd.f32 0.0, %v4079
        %4081 = vmatprep.mubr.bf16.mxu0 %v3113
        %4082 = vmatmul.mubr.bf16.gmra.mrb[0].mxu0 %v3112
        %v4083 = vpop.f32.mrb[0].mxu0
        %v4084 = vadd.f32 0.0, %v4083
        %v4085 = vpop.f32.mrb[0].mxu0
        %v4086 = vadd.f32 0.0, %v4085
        %v4087 = vpop.f32.mrb[0].mxu0
        %v4088 = vadd.f32 0.0, %v4087
        %v4089 = vpop.f32.mrb[0].mxu0
        %v4090 = vadd.f32 0.0, %v4089
        %4091 = vmatprep.mubr.bf16.mxu0 %v3115
        %4092 = vmatmul.mubr.bf16.gmra.mrb[0].mxu0 %v3114
        %v4093 = vpop.f32.mrb[0].mxu0
        %v4094 = vadd.f32 0.0, %v4093
        %v4095 = vpop.f32.mrb[0].mxu0
        %v4096 = vadd.f32 0.0, %v4095
        %v4097 = vpop.f32.mrb[0].mxu0
        %v4098 = vadd.f32 0.0, %v4097
        %v4099 = vpop.f32.mrb[0].mxu0
        %v4100 = vadd.f32 0.0, %v4099
        %4101 = vmatprep.mubr.bf16.mxu0 %v3117
        %4102 = vmatmul.mubr.bf16.gmra.mrb[0].mxu0 %v3116
        %v4103 = vpop.f32.mrb[0].mxu0
        %v4104 = vadd.f32 0.0, %v4103
        %v4105 = vpop.f32.mrb[0].mxu0
        %v4106 = vadd.f32 0.0, %v4105
        %v4107 = vpop.f32.mrb[0].mxu0
        %v4108 = vadd.f32 0.0, %v4107
        %v4109 = vpop.f32.mrb[0].mxu0
        %v4110 = vadd.f32 0.0, %v4109
        %4111 = vdwg.mxu0
        %4112 = vmatprep.subr.bf16.mxu0 %v3635
        %4113 = vmatpush1.bf16.msra.mxu0 %v3634
        %4114 = vmatprep.subr.bf16.mxu0 %v3643
        %4115 = vmatpush1.bf16.msra.mxu0 %v3642
        %4116 = vmatprep.subr.bf16.mxu0 %v3651
        %4117 = vmatpush1.bf16.msra.mxu0 %v3650
        %4118 = vmatprep.subr.bf16.mxu0 %v3659
        %4119 = vmatpush1.bf16.msra.mxu0 %v3658
        %4120 = vmatprep.subr.bf16.mxu0 %v3667
        %4121 = vmatpush1.bf16.msra.mxu0 %v3666
        %4122 = vmatprep.subr.bf16.mxu0 %v3675
        %4123 = vmatpush1.bf16.msra.mxu0 %v3674
        %4124 = vmatprep.subr.bf16.mxu0 %v3683
        %4125 = vmatpush1.bf16.msra.mxu0 %v3682
        %4126 = vmatprep.subr.bf16.mxu0 %v3691
        %4127 = vmatpush1.bf16.msra.mxu0 %v3690
        %4128 = vmatprep.subr.bf16.mxu0 %v3699
        %4129 = vmatpush1.bf16.msra.mxu0 %v3698
        %4130 = vmatprep.subr.bf16.mxu0 %v3707
        %4131 = vmatpush1.bf16.msra.mxu0 %v3706
        %4132 = vmatprep.subr.bf16.mxu0 %v3715
        %4133 = vmatpush1.bf16.msra.mxu0 %v3714
        %4134 = vmatprep.subr.bf16.mxu0 %v3723
        %4135 = vmatpush1.bf16.msra.mxu0 %v3722
        %4136 = vmatprep.subr.bf16.mxu0 %v3731
        %4137 = vmatpush1.bf16.msra.mxu0 %v3730
        %4138 = vmatprep.subr.bf16.mxu0 %v3739
        %4139 = vmatpush1.bf16.msra.mxu0 %v3738
        %4140 = vmatprep.subr.bf16.mxu0 %v3747
        %4141 = vmatpush1.bf16.msra.mxu0 %v3746
        %4142 = vmatprep.subr.bf16.mxu0 %v3755
        %4143 = vmatpush1.bf16.msra.mxu0 %v3754
        %4144 = vmatprep.mubr.bf16.mxu0 %v3103
        %4145 = vmatmul.mubr.bf16.gmra.mrb[0].mxu0 %v3102
        %v4146 = vpop.f32.mrb[0].mxu0
        %v4147 = vadd.f32 0.0, %v4146
        %v4148 = vpop.f32.mrb[0].mxu0
        %v4149 = vadd.f32 0.0, %v4148
        %v4150 = vpop.f32.mrb[0].mxu0
        %v4151 = vadd.f32 0.0, %v4150
        %v4152 = vpop.f32.mrb[0].mxu0
        %v4153 = vadd.f32 0.0, %v4152
        %4154 = vmatprep.mubr.bf16.mxu0 %v3105
        %4155 = vmatmul.mubr.bf16.gmra.mrb[0].mxu0 %v3104
        %v4156 = vpop.f32.mrb[0].mxu0
        %v4157 = vadd.f32 0.0, %v4156
        %v4158 = vpop.f32.mrb[0].mxu0
        %v4159 = vadd.f32 0.0, %v4158
        %v4160 = vpop.f32.mrb[0].mxu0
        %v4161 = vadd.f32 0.0, %v4160
        %v4162 = vpop.f32.mrb[0].mxu0
        %v4163 = vadd.f32 0.0, %v4162
        %4164 = vmatprep.mubr.bf16.mxu0 %v3107
        %4165 = vmatmul.mubr.bf16.gmra.mrb[0].mxu0 %v3106
        %v4166 = vpop.f32.mrb[0].mxu0
        %v4167 = vadd.f32 0.0, %v4166
        %v4168 = vpop.f32.mrb[0].mxu0
        %v4169 = vadd.f32 0.0, %v4168
        %v4170 = vpop.f32.mrb[0].mxu0
        %v4171 = vadd.f32 0.0, %v4170
        %v4172 = vpop.f32.mrb[0].mxu0
        %v4173 = vadd.f32 0.0, %v4172
        %4174 = vmatprep.mubr.bf16.mxu0 %v3109
        %4175 = vmatmul.mubr.bf16.gmra.mrb[0].mxu0 %v3108
        %v4176 = vpop.f32.mrb[0].mxu0
        %v4177 = vadd.f32 0.0, %v4176
        %v4178 = vpop.f32.mrb[0].mxu0
        %v4179 = vadd.f32 0.0, %v4178
        %v4180 = vpop.f32.mrb[0].mxu0
        %v4181 = vadd.f32 0.0, %v4180
        %v4182 = vpop.f32.mrb[0].mxu0
        %v4183 = vadd.f32 0.0, %v4182
        %4184 = vmatprep.mubr.bf16.mxu0 %v3111
        %4185 = vmatmul.mubr.bf16.gmra.mrb[0].mxu0 %v3110
        %v4186 = vpop.f32.mrb[0].mxu0
        %v4187 = vadd.f32 0.0, %v4186
        %v4188 = vpop.f32.mrb[0].mxu0
        %v4189 = vadd.f32 0.0, %v4188
        %v4190 = vpop.f32.mrb[0].mxu0
        %v4191 = vadd.f32 0.0, %v4190
        %v4192 = vpop.f32.mrb[0].mxu0
        %v4193 = vadd.f32 0.0, %v4192
        %4194 = vmatprep.mubr.bf16.mxu0 %v3113
        %4195 = vmatmul.mubr.bf16.gmra.mrb[0].mxu0 %v3112
        %v4196 = vpop.f32.mrb[0].mxu0
        %v4197 = vadd.f32 0.0, %v4196
        %v4198 = vpop.f32.mrb[0].mxu0
        %v4199 = vadd.f32 0.0, %v4198
        %v4200 = vpop.f32.mrb[0].mxu0
        %v4201 = vadd.f32 0.0, %v4200
        %v4202 = vpop.f32.mrb[0].mxu0
        %v4203 = vadd.f32 0.0, %v4202
        %4204 = vmatprep.mubr.bf16.mxu0 %v3115
        %4205 = vmatmul.mubr.bf16.gmra.mrb[0].mxu0 %v3114
        %v4206 = vpop.f32.mrb[0].mxu0
        %v4207 = vadd.f32 0.0, %v4206
        %v4208 = vpop.f32.mrb[0].mxu0
        %v4209 = vadd.f32 0.0, %v4208
        %v4210 = vpop.f32.mrb[0].mxu0
        %v4211 = vadd.f32 0.0, %v4210
        %v4212 = vpop.f32.mrb[0].mxu0
        %v4213 = vadd.f32 0.0, %v4212
        %4214 = vmatprep.mubr.bf16.mxu0 %v3117
        %4215 = vmatmul.mubr.bf16.gmra.mrb[0].mxu0 %v3116
        %v4216 = vpop.f32.mrb[0].mxu0
        %v4217 = vadd.f32 0.0, %v4216
        %v4218 = vpop.f32.mrb[0].mxu0
        %v4219 = vadd.f32 0.0, %v4218
        %v4220 = vpop.f32.mrb[0].mxu0
        %v4221 = vadd.f32 0.0, %v4220
        %v4222 = vpop.f32.mrb[0].mxu0
        %v4223 = vadd.f32 0.0, %v4222
        %4224 = vdwg.mxu0
        %4225 = vmatprep.subr.bf16.mxu0 %v3637
        %4226 = vmatpush1.bf16.msra.mxu0 %v3636
        %4227 = vmatprep.subr.bf16.mxu0 %v3645
        %4228 = vmatpush1.bf16.msra.mxu0 %v3644
        %4229 = vmatprep.subr.bf16.mxu0 %v3653
        %4230 = vmatpush1.bf16.msra.mxu0 %v3652
        %4231 = vmatprep.subr.bf16.mxu0 %v3661
        %4232 = vmatpush1.bf16.msra.mxu0 %v3660
        %4233 = vmatprep.subr.bf16.mxu0 %v3669
        %4234 = vmatpush1.bf16.msra.mxu0 %v3668
        %4235 = vmatprep.subr.bf16.mxu0 %v3677
        %4236 = vmatpush1.bf16.msra.mxu0 %v3676
        %4237 = vmatprep.subr.bf16.mxu0 %v3685
        %4238 = vmatpush1.bf16.msra.mxu0 %v3684
        %4239 = vmatprep.subr.bf16.mxu0 %v3693
        %4240 = vmatpush1.bf16.msra.mxu0 %v3692
        %4241 = vmatprep.subr.bf16.mxu0 %v3701
        %4242 = vmatpush1.bf16.msra.mxu0 %v3700
        %4243 = vmatprep.subr.bf16.mxu0 %v3709
        %4244 = vmatpush1.bf16.msra.mxu0 %v3708
        %4245 = vmatprep.subr.bf16.mxu0 %v3717
        %4246 = vmatpush1.bf16.msra.mxu0 %v3716
        %4247 = vmatprep.subr.bf16.mxu0 %v3725
        %4248 = vmatpush1.bf16.msra.mxu0 %v3724
        %4249 = vmatprep.subr.bf16.mxu0 %v3733
        %4250 = vmatpush1.bf16.msra.mxu0 %v3732
        %4251 = vmatprep.subr.bf16.mxu0 %v3741
        %4252 = vmatpush1.bf16.msra.mxu0 %v3740
        %4253 = vmatprep.subr.bf16.mxu0 %v3749
        %4254 = vmatpush1.bf16.msra.mxu0 %v3748
        %4255 = vmatprep.subr.bf16.mxu0 %v3757
        %4256 = vmatpush1.bf16.msra.mxu0 %v3756
        %4257 = vmatprep.mubr.bf16.mxu0 %v3103
        %4258 = vmatmul.mubr.bf16.gmra.mrb[0].mxu0 %v3102
        %v4259 = vpop.f32.mrb[0].mxu0
        %v4260 = vadd.f32 0.0, %v4259
        %v4261 = vpop.f32.mrb[0].mxu0
        %v4262 = vadd.f32 0.0, %v4261
        %v4263 = vpop.f32.mrb[0].mxu0
        %v4264 = vadd.f32 0.0, %v4263
        %v4265 = vpop.f32.mrb[0].mxu0
        %v4266 = vadd.f32 0.0, %v4265
        %4267 = vmatprep.mubr.bf16.mxu0 %v3105
        %4268 = vmatmul.mubr.bf16.gmra.mrb[0].mxu0 %v3104
        %v4269 = vpop.f32.mrb[0].mxu0
        %v4270 = vadd.f32 0.0, %v4269
        %v4271 = vpop.f32.mrb[0].mxu0
        %v4272 = vadd.f32 0.0, %v4271
        %v4273 = vpop.f32.mrb[0].mxu0
        %v4274 = vadd.f32 0.0, %v4273
        %v4275 = vpop.f32.mrb[0].mxu0
        %v4276 = vadd.f32 0.0, %v4275
        %4277 = vmatprep.mubr.bf16.mxu0 %v3107
        %4278 = vmatmul.mubr.bf16.gmra.mrb[0].mxu0 %v3106
        %v4279 = vpop.f32.mrb[0].mxu0
        %v4280 = vadd.f32 0.0, %v4279
        %v4281 = vpop.f32.mrb[0].mxu0
        %v4282 = vadd.f32 0.0, %v4281
        %v4283 = vpop.f32.mrb[0].mxu0
        %v4284 = vadd.f32 0.0, %v4283
        %v4285 = vpop.f32.mrb[0].mxu0
        %v4286 = vadd.f32 0.0, %v4285
        %4287 = vmatprep.mubr.bf16.mxu0 %v3109
        %4288 = vmatmul.mubr.bf16.gmra.mrb[0].mxu0 %v3108
        %v4289 = vpop.f32.mrb[0].mxu0
        %v4290 = vadd.f32 0.0, %v4289
        %v4291 = vpop.f32.mrb[0].mxu0
        %v4292 = vadd.f32 0.0, %v4291
        %v4293 = vpop.f32.mrb[0].mxu0
        %v4294 = vadd.f32 0.0, %v4293
        %v4295 = vpop.f32.mrb[0].mxu0
        %v4296 = vadd.f32 0.0, %v4295
        %4297 = vmatprep.mubr.bf16.mxu0 %v3111
        %4298 = vmatmul.mubr.bf16.gmra.mrb[0].mxu0 %v3110
        %v4299 = vpop.f32.mrb[0].mxu0
        %v4300 = vadd.f32 0.0, %v4299
        %v4301 = vpop.f32.mrb[0].mxu0
        %v4302 = vadd.f32 0.0, %v4301
        %v4303 = vpop.f32.mrb[0].mxu0
        %v4304 = vadd.f32 0.0, %v4303
        %v4305 = vpop.f32.mrb[0].mxu0
        %v4306 = vadd.f32 0.0, %v4305
        %4307 = vmatprep.mubr.bf16.mxu0 %v3113
        %4308 = vmatmul.mubr.bf16.gmra.mrb[0].mxu0 %v3112
        %v4309 = vpop.f32.mrb[0].mxu0
        %v4310 = vadd.f32 0.0, %v4309
        %v4311 = vpop.f32.mrb[0].mxu0
        %v4312 = vadd.f32 0.0, %v4311
        %v4313 = vpop.f32.mrb[0].mxu0
        %v4314 = vadd.f32 0.0, %v4313
        %v4315 = vpop.f32.mrb[0].mxu0
        %v4316 = vadd.f32 0.0, %v4315
        %4317 = vmatprep.mubr.bf16.mxu0 %v3115
        %4318 = vmatmul.mubr.bf16.gmra.mrb[0].mxu0 %v3114
        %v4319 = vpop.f32.mrb[0].mxu0
        %v4320 = vadd.f32 0.0, %v4319
        %v4321 = vpop.f32.mrb[0].mxu0
        %v4322 = vadd.f32 0.0, %v4321
        %v4323 = vpop.f32.mrb[0].mxu0
        %v4324 = vadd.f32 0.0, %v4323
        %v4325 = vpop.f32.mrb[0].mxu0
        %v4326 = vadd.f32 0.0, %v4325
        %4327 = vmatprep.mubr.bf16.mxu0 %v3117
        %4328 = vmatmul.mubr.bf16.gmra.mrb[0].mxu0 %v3116
        %v4329 = vpop.f32.mrb[0].mxu0
        %v4330 = vadd.f32 0.0, %v4329
        %v4331 = vpop.f32.mrb[0].mxu0
        %v4332 = vadd.f32 0.0, %v4331
        %v4333 = vpop.f32.mrb[0].mxu0
        %v4334 = vadd.f32 0.0, %v4333
        %v4335 = vpop.f32.mrb[0].mxu0
        %v4336 = vadd.f32 0.0, %v4335
        %4337 = vdwg.mxu0
        %v4338 = vmax.f32 %v3921, 0.0
        %v4339 = vmax.f32 %v3923, 0.0
        %v4340 = vmax.f32 %v4034, 0.0
        %v4341 = vmax.f32 %v4036, 0.0
        %v4342 = vmax.f32 %v4147, 0.0
        %v4343 = vmax.f32 %v4149, 0.0
        %v4344 = vmax.f32 %v4260, 0.0
        %v4345 = vmax.f32 %v4262, 0.0
        %v4346 = vmax.f32 %v3925, 0.0
        %v4347 = vmax.f32 %v3927, 0.0
        %v4348 = vmax.f32 %v4038, 0.0
        %v4349 = vmax.f32 %v4040, 0.0
        %v4350 = vmax.f32 %v4151, 0.0
        %v4351 = vmax.f32 %v4153, 0.0
        %v4352 = vmax.f32 %v4264, 0.0
        %v4353 = vmax.f32 %v4266, 0.0
        %v4354 = vmax.f32 %v3931, 0.0
        %v4355 = vmax.f32 %v3933, 0.0
        %v4356 = vmax.f32 %v4044, 0.0
        %v4357 = vmax.f32 %v4046, 0.0
        %v4358 = vmax.f32 %v4157, 0.0
        %v4359 = vmax.f32 %v4159, 0.0
        %v4360 = vmax.f32 %v4270, 0.0
        %v4361 = vmax.f32 %v4272, 0.0
        %v4362 = vmax.f32 %v3935, 0.0
        %v4363 = vmax.f32 %v3937, 0.0
        %v4364 = vmax.f32 %v4048, 0.0
        %v4365 = vmax.f32 %v4050, 0.0
        %v4366 = vmax.f32 %v4161, 0.0
        %v4367 = vmax.f32 %v4163, 0.0
        %v4368 = vmax.f32 %v4274, 0.0
        %v4369 = vmax.f32 %v4276, 0.0
        %v4370 = vmax.f32 %v3941, 0.0
        %v4371 = vmax.f32 %v3943, 0.0
        %v4372 = vmax.f32 %v4054, 0.0
        %v4373 = vmax.f32 %v4056, 0.0
        %v4374 = vmax.f32 %v4167, 0.0
        %v4375 = vmax.f32 %v4169, 0.0
        %v4376 = vmax.f32 %v4280, 0.0
        %v4377 = vmax.f32 %v4282, 0.0
        %v4378 = vmax.f32 %v3945, 0.0
        %v4379 = vmax.f32 %v3947, 0.0
        %v4380 = vmax.f32 %v4058, 0.0
        %v4381 = vmax.f32 %v4060, 0.0
        %v4382 = vmax.f32 %v4171, 0.0
        %v4383 = vmax.f32 %v4173, 0.0
        %v4384 = vmax.f32 %v4284, 0.0
        %v4385 = vmax.f32 %v4286, 0.0
        %v4386 = vmax.f32 %v3951, 0.0
        %v4387 = vmax.f32 %v3953, 0.0
        %v4388 = vmax.f32 %v4064, 0.0
        %v4389 = vmax.f32 %v4066, 0.0
        %v4390 = vmax.f32 %v4177, 0.0
        %v4391 = vmax.f32 %v4179, 0.0
        %v4392 = vmax.f32 %v4290, 0.0
        %v4393 = vmax.f32 %v4292, 0.0
        %v4394 = vmax.f32 %v3955, 0.0
        %v4395 = vmax.f32 %v3957, 0.0
        %v4396 = vmax.f32 %v4068, 0.0
        %v4397 = vmax.f32 %v4070, 0.0
        %v4398 = vmax.f32 %v4181, 0.0
        %v4399 = vmax.f32 %v4183, 0.0
        %v4400 = vmax.f32 %v4294, 0.0
        %v4401 = vmax.f32 %v4296, 0.0
        %v4402 = vmax.f32 %v3961, 0.0
        %v4403 = vmax.f32 %v3963, 0.0
        %v4404 = vmax.f32 %v4074, 0.0
        %v4405 = vmax.f32 %v4076, 0.0
        %v4406 = vmax.f32 %v4187, 0.0
        %v4407 = vmax.f32 %v4189, 0.0
        %v4408 = vmax.f32 %v4300, 0.0
        %v4409 = vmax.f32 %v4302, 0.0
        %v4410 = vmax.f32 %v3965, 0.0
        %v4411 = vmax.f32 %v3967, 0.0
        %v4412 = vmax.f32 %v4078, 0.0
        %v4413 = vmax.f32 %v4080, 0.0
        %v4414 = vmax.f32 %v4191, 0.0
        %v4415 = vmax.f32 %v4193, 0.0
        %v4416 = vmax.f32 %v4304, 0.0
        %v4417 = vmax.f32 %v4306, 0.0
        %v4418 = vmax.f32 %v3971, 0.0
        %v4419 = vmax.f32 %v3973, 0.0
        %v4420 = vmax.f32 %v4084, 0.0
        %v4421 = vmax.f32 %v4086, 0.0
        %v4422 = vmax.f32 %v4197, 0.0
        %v4423 = vmax.f32 %v4199, 0.0
        %v4424 = vmax.f32 %v4310, 0.0
        %v4425 = vmax.f32 %v4312, 0.0
        %v4426 = vmax.f32 %v3975, 0.0
        %v4427 = vmax.f32 %v3977, 0.0
        %v4428 = vmax.f32 %v4088, 0.0
        %v4429 = vmax.f32 %v4090, 0.0
        %v4430 = vmax.f32 %v4201, 0.0
        %v4431 = vmax.f32 %v4203, 0.0
        %v4432 = vmax.f32 %v4314, 0.0
        %v4433 = vmax.f32 %v4316, 0.0
        %v4434 = vmax.f32 %v3981, 0.0
        %v4435 = vmax.f32 %v3983, 0.0
        %v4436 = vmax.f32 %v4094, 0.0
        %v4437 = vmax.f32 %v4096, 0.0
        %v4438 = vmax.f32 %v4207, 0.0
        %v4439 = vmax.f32 %v4209, 0.0
        %v4440 = vmax.f32 %v4320, 0.0
        %v4441 = vmax.f32 %v4322, 0.0
        %v4442 = vmax.f32 %v3985, 0.0
        %v4443 = vmax.f32 %v3987, 0.0
        %v4444 = vmax.f32 %v4098, 0.0
        %v4445 = vmax.f32 %v4100, 0.0
        %v4446 = vmax.f32 %v4211, 0.0
        %v4447 = vmax.f32 %v4213, 0.0
        %v4448 = vmax.f32 %v4324, 0.0
        %v4449 = vmax.f32 %v4326, 0.0
        %v4450 = vmax.f32 %v3991, 0.0
        %v4451 = vmax.f32 %v3993, 0.0
        %v4452 = vmax.f32 %v4104, 0.0
        %v4453 = vmax.f32 %v4106, 0.0
        %v4454 = vmax.f32 %v4217, 0.0
        %v4455 = vmax.f32 %v4219, 0.0
        %v4456 = vmax.f32 %v4330, 0.0
        %v4457 = vmax.f32 %v4332, 0.0
        %v4458 = vmax.f32 %v3995, 0.0
        %v4459 = vmax.f32 %v3997, 0.0
        %v4460 = vmax.f32 %v4108, 0.0
        %v4461 = vmax.f32 %v4110, 0.0
        %v4462 = vmax.f32 %v4221, 0.0
        %v4463 = vmax.f32 %v4223, 0.0
        %v4464 = vmax.f32 %v4334, 0.0
        %v4465 = vmax.f32 %v4336, 0.0
        %v4466 = vmul.f32 %v4338, %v4338
        %v4467 = vmul.f32 %v4339, %v4339
        %v4468 = vmul.f32 %v4340, %v4340
        %v4469 = vmul.f32 %v4341, %v4341
        %v4470 = vmul.f32 %v4342, %v4342
        %v4471 = vmul.f32 %v4343, %v4343
        %v4472 = vmul.f32 %v4344, %v4344
        %v4473 = vmul.f32 %v4345, %v4345
        %v4474 = vmul.f32 %v4346, %v4346
        %v4475 = vmul.f32 %v4347, %v4347
        %v4476 = vmul.f32 %v4348, %v4348
        %v4477 = vmul.f32 %v4349, %v4349
        %v4478 = vmul.f32 %v4350, %v4350
        %v4479 = vmul.f32 %v4351, %v4351
        %v4480 = vmul.f32 %v4352, %v4352
        %v4481 = vmul.f32 %v4353, %v4353
        %v4482 = vmul.f32 %v4354, %v4354
        %v4483 = vmul.f32 %v4355, %v4355
        %v4484 = vmul.f32 %v4356, %v4356
        %v4485 = vmul.f32 %v4357, %v4357
        %v4486 = vmul.f32 %v4358, %v4358
        %v4487 = vmul.f32 %v4359, %v4359
        %v4488 = vmul.f32 %v4360, %v4360
        %v4489 = vmul.f32 %v4361, %v4361
        %v4490 = vmul.f32 %v4362, %v4362
        %v4491 = vmul.f32 %v4363, %v4363
        %v4492 = vmul.f32 %v4364, %v4364
        %v4493 = vmul.f32 %v4365, %v4365
        %v4494 = vmul.f32 %v4366, %v4366
        %v4495 = vmul.f32 %v4367, %v4367
        %v4496 = vmul.f32 %v4368, %v4368
        %v4497 = vmul.f32 %v4369, %v4369
        %v4498 = vmul.f32 %v4370, %v4370
        %v4499 = vmul.f32 %v4371, %v4371
        %v4500 = vmul.f32 %v4372, %v4372
        %v4501 = vmul.f32 %v4373, %v4373
        %v4502 = vmul.f32 %v4374, %v4374
        %v4503 = vmul.f32 %v4375, %v4375
        %v4504 = vmul.f32 %v4376, %v4376
        %v4505 = vmul.f32 %v4377, %v4377
        %v4506 = vmul.f32 %v4378, %v4378
        %v4507 = vmul.f32 %v4379, %v4379
        %v4508 = vmul.f32 %v4380, %v4380
        %v4509 = vmul.f32 %v4381, %v4381
        %v4510 = vmul.f32 %v4382, %v4382
        %v4511 = vmul.f32 %v4383, %v4383
        %v4512 = vmul.f32 %v4384, %v4384
        %v4513 = vmul.f32 %v4385, %v4385
        %v4514 = vmul.f32 %v4386, %v4386
        %v4515 = vmul.f32 %v4387, %v4387
        %v4516 = vmul.f32 %v4388, %v4388
        %v4517 = vmul.f32 %v4389, %v4389
        %v4518 = vmul.f32 %v4390, %v4390
        %v4519 = vmul.f32 %v4391, %v4391
        %v4520 = vmul.f32 %v4392, %v4392
        %v4521 = vmul.f32 %v4393, %v4393
        %v4522 = vmul.f32 %v4394, %v4394
        %v4523 = vmul.f32 %v4395, %v4395
        %v4524 = vmul.f32 %v4396, %v4396
        %v4525 = vmul.f32 %v4397, %v4397
        %v4526 = vmul.f32 %v4398, %v4398
        %v4527 = vmul.f32 %v4399, %v4399
        %v4528 = vmul.f32 %v4400, %v4400
        %v4529 = vmul.f32 %v4401, %v4401
        %v4530 = vmul.f32 %v4402, %v4402
        %v4531 = vmul.f32 %v4403, %v4403
        %v4532 = vmul.f32 %v4404, %v4404
        %v4533 = vmul.f32 %v4405, %v4405
        %v4534 = vmul.f32 %v4406, %v4406
        %v4535 = vmul.f32 %v4407, %v4407
        %v4536 = vmul.f32 %v4408, %v4408
        %v4537 = vmul.f32 %v4409, %v4409
        %v4538 = vmul.f32 %v4410, %v4410
        %v4539 = vmul.f32 %v4411, %v4411
        %v4540 = vmul.f32 %v4412, %v4412
        %v4541 = vmul.f32 %v4413, %v4413
        %v4542 = vmul.f32 %v4414, %v4414
        %v4543 = vmul.f32 %v4415, %v4415
        %v4544 = vmul.f32 %v4416, %v4416
        %v4545 = vmul.f32 %v4417, %v4417
        %v4546 = vmul.f32 %v4418, %v4418
        %v4547 = vmul.f32 %v4419, %v4419
        %v4548 = vmul.f32 %v4420, %v4420
        %v4549 = vmul.f32 %v4421, %v4421
        %v4550 = vmul.f32 %v4422, %v4422
        %v4551 = vmul.f32 %v4423, %v4423
        %v4552 = vmul.f32 %v4424, %v4424
        %v4553 = vmul.f32 %v4425, %v4425
        %v4554 = vmul.f32 %v4426, %v4426
        %v4555 = vmul.f32 %v4427, %v4427
        %v4556 = vmul.f32 %v4428, %v4428
        %v4557 = vmul.f32 %v4429, %v4429
        %v4558 = vmul.f32 %v4430, %v4430
        %v4559 = vmul.f32 %v4431, %v4431
        %v4560 = vmul.f32 %v4432, %v4432
        %v4561 = vmul.f32 %v4433, %v4433
        %v4562 = vmul.f32 %v4434, %v4434
        %v4563 = vmul.f32 %v4435, %v4435
        %v4564 = vmul.f32 %v4436, %v4436
        %v4565 = vmul.f32 %v4437, %v4437
        %v4566 = vmul.f32 %v4438, %v4438
        %v4567 = vmul.f32 %v4439, %v4439
        %v4568 = vmul.f32 %v4440, %v4440
        %v4569 = vmul.f32 %v4441, %v4441
        %v4570 = vmul.f32 %v4442, %v4442
        %v4571 = vmul.f32 %v4443, %v4443
        %v4572 = vmul.f32 %v4444, %v4444
        %v4573 = vmul.f32 %v4445, %v4445
        %v4574 = vmul.f32 %v4446, %v4446
        %v4575 = vmul.f32 %v4447, %v4447
        %v4576 = vmul.f32 %v4448, %v4448
        %v4577 = vmul.f32 %v4449, %v4449
        %v4578 = vmul.f32 %v4450, %v4450
        %v4579 = vmul.f32 %v4451, %v4451
        %v4580 = vmul.f32 %v4452, %v4452
        %v4581 = vmul.f32 %v4453, %v4453
        %v4582 = vmul.f32 %v4454, %v4454
        %v4583 = vmul.f32 %v4455, %v4455
        %v4584 = vmul.f32 %v4456, %v4456
        %v4585 = vmul.f32 %v4457, %v4457
        %v4586 = vmul.f32 %v4458, %v4458
        %v4587 = vmul.f32 %v4459, %v4459
        %v4588 = vmul.f32 %v4460, %v4460
        %v4589 = vmul.f32 %v4461, %v4461
        %v4590 = vmul.f32 %v4462, %v4462
        %v4591 = vmul.f32 %v4463, %v4463
        %v4592 = vmul.f32 %v4464, %v4464
        %v4593 = vmul.f32 %v4465, %v4465
        %v4594 = vpack.c.bf16 %v4474, %v4466
        %v4595 = vpack.c.bf16 %v4475, %v4467
        %v4596 = vpack.c.bf16 %v4476, %v4468
        %v4597 = vpack.c.bf16 %v4477, %v4469
        %v4598 = vpack.c.bf16 %v4478, %v4470
        %v4599 = vpack.c.bf16 %v4479, %v4471
        %v4600 = vpack.c.bf16 %v4480, %v4472
        %v4601 = vpack.c.bf16 %v4481, %v4473
        %v4602 = vpack.c.bf16 %v4490, %v4482
        %v4603 = vpack.c.bf16 %v4491, %v4483
        %v4604 = vpack.c.bf16 %v4492, %v4484
        %v4605 = vpack.c.bf16 %v4493, %v4485
        %v4606 = vpack.c.bf16 %v4494, %v4486
        %v4607 = vpack.c.bf16 %v4495, %v4487
        %v4608 = vpack.c.bf16 %v4496, %v4488
        %v4609 = vpack.c.bf16 %v4497, %v4489
        %v4610 = vpack.c.bf16 %v4506, %v4498
        %v4611 = vpack.c.bf16 %v4507, %v4499
        %v4612 = vpack.c.bf16 %v4508, %v4500
        %v4613 = vpack.c.bf16 %v4509, %v4501
        %v4614 = vpack.c.bf16 %v4510, %v4502
        %v4615 = vpack.c.bf16 %v4511, %v4503
        %v4616 = vpack.c.bf16 %v4512, %v4504
        %v4617 = vpack.c.bf16 %v4513, %v4505
        %v4618 = vpack.c.bf16 %v4522, %v4514
        %v4619 = vpack.c.bf16 %v4523, %v4515
        %v4620 = vpack.c.bf16 %v4524, %v4516
        %v4621 = vpack.c.bf16 %v4525, %v4517
        %v4622 = vpack.c.bf16 %v4526, %v4518
        %v4623 = vpack.c.bf16 %v4527, %v4519
        %v4624 = vpack.c.bf16 %v4528, %v4520
        %v4625 = vpack.c.bf16 %v4529, %v4521
        %v4626 = vpack.c.bf16 %v4538, %v4530
        %v4627 = vpack.c.bf16 %v4539, %v4531
        %v4628 = vpack.c.bf16 %v4540, %v4532
        %v4629 = vpack.c.bf16 %v4541, %v4533
        %v4630 = vpack.c.bf16 %v4542, %v4534
        %v4631 = vpack.c.bf16 %v4543, %v4535
        %v4632 = vpack.c.bf16 %v4544, %v4536
        %v4633 = vpack.c.bf16 %v4545, %v4537
        %v4634 = vpack.c.bf16 %v4554, %v4546
        %v4635 = vpack.c.bf16 %v4555, %v4547
        %v4636 = vpack.c.bf16 %v4556, %v4548
        %v4637 = vpack.c.bf16 %v4557, %v4549
        %v4638 = vpack.c.bf16 %v4558, %v4550
        %v4639 = vpack.c.bf16 %v4559, %v4551
        %v4640 = vpack.c.bf16 %v4560, %v4552
        %v4641 = vpack.c.bf16 %v4561, %v4553
        %v4642 = vpack.c.bf16 %v4570, %v4562
        %v4643 = vpack.c.bf16 %v4571, %v4563
        %v4644 = vpack.c.bf16 %v4572, %v4564
        %v4645 = vpack.c.bf16 %v4573, %v4565
        %v4646 = vpack.c.bf16 %v4574, %v4566
        %v4647 = vpack.c.bf16 %v4575, %v4567
        %v4648 = vpack.c.bf16 %v4576, %v4568
        %v4649 = vpack.c.bf16 %v4577, %v4569
        %v4650 = vpack.c.bf16 %v4586, %v4578
        %v4651 = vpack.c.bf16 %v4587, %v4579
        %v4652 = vpack.c.bf16 %v4588, %v4580
        %v4653 = vpack.c.bf16 %v4589, %v4581
        %v4654 = vpack.c.bf16 %v4590, %v4582
        %v4655 = vpack.c.bf16 %v4591, %v4583
        %v4656 = vpack.c.bf16 %v4592, %v4584
        %v4657 = vpack.c.bf16 %v4593, %v4585
        %v4658 = vld [vmem:[#allocation12] sm:$0xff]
        %v4659 = vld [vmem:[#allocation12 + $0x8] sm:$0xff]
        %v4660 = vld [vmem:[#allocation12 + $0x10] sm:$0xff]
        %v4661 = vld [vmem:[#allocation12 + $0x18] sm:$0xff]
        %v4662 = vld [vmem:[#allocation12 + $0x20] sm:$0xff]
        %v4663 = vld [vmem:[#allocation12 + $0x28] sm:$0xff]
        %v4664 = vld [vmem:[#allocation12 + $0x30] sm:$0xff]
        %v4665 = vld [vmem:[#allocation12 + $0x38] sm:$0xff]
        %v4666 = vld [vmem:[#allocation12 + $0x40] sm:$0xff]
        %v4667 = vld [vmem:[#allocation12 + $0x48] sm:$0xff]
        %v4668 = vld [vmem:[#allocation12 + $0x50] sm:$0xff]
        %v4669 = vld [vmem:[#allocation12 + $0x58] sm:$0xff]
        %v4670 = vld [vmem:[#allocation12 + $0x60] sm:$0xff]
        %v4671 = vld [vmem:[#allocation12 + $0x68] sm:$0xff]
        %v4672 = vld [vmem:[#allocation12 + $0x70] sm:$0xff]
        %v4673 = vld [vmem:[#allocation12 + $0x78] sm:$0xff]
        %v4674 = vld [vmem:[#allocation12 + $0x80] sm:$0xff]
        %v4675 = vld [vmem:[#allocation12 + $0x88] sm:$0xff]
        %v4676 = vld [vmem:[#allocation12 + $0x90] sm:$0xff]
        %v4677 = vld [vmem:[#allocation12 + $0x98] sm:$0xff]
        %v4678 = vld [vmem:[#allocation12 + $0xa0] sm:$0xff]
        %v4679 = vld [vmem:[#allocation12 + $0xa8] sm:$0xff]
        %v4680 = vld [vmem:[#allocation12 + $0xb0] sm:$0xff]
        %v4681 = vld [vmem:[#allocation12 + $0xb8] sm:$0xff]
        %v4682 = vld [vmem:[#allocation12 + $0xc0] sm:$0xff]
        %v4683 = vld [vmem:[#allocation12 + $0xc8] sm:$0xff]
        %v4684 = vld [vmem:[#allocation12 + $0xd0] sm:$0xff]
        %v4685 = vld [vmem:[#allocation12 + $0xd8] sm:$0xff]
        %v4686 = vld [vmem:[#allocation12 + $0xe0] sm:$0xff]
        %v4687 = vld [vmem:[#allocation12 + $0xe8] sm:$0xff]
        %v4688 = vld [vmem:[#allocation12 + $0xf0] sm:$0xff]
        %v4689 = vld [vmem:[#allocation12 + $0xf8] sm:$0xff]
        %v4690 = vld [vmem:[#allocation12 + $0x100] sm:$0xff]
        %v4691 = vld [vmem:[#allocation12 + $0x108] sm:$0xff]
        %v4692 = vld [vmem:[#allocation12 + $0x110] sm:$0xff]
        %v4693 = vld [vmem:[#allocation12 + $0x118] sm:$0xff]
        %v4694 = vld [vmem:[#allocation12 + $0x120] sm:$0xff]
        %v4695 = vld [vmem:[#allocation12 + $0x128] sm:$0xff]
        %v4696 = vld [vmem:[#allocation12 + $0x130] sm:$0xff]
        %v4697 = vld [vmem:[#allocation12 + $0x138] sm:$0xff]
        %v4698 = vld [vmem:[#allocation12 + $0x140] sm:$0xff]
        %v4699 = vld [vmem:[#allocation12 + $0x148] sm:$0xff]
        %v4700 = vld [vmem:[#allocation12 + $0x150] sm:$0xff]
        %v4701 = vld [vmem:[#allocation12 + $0x158] sm:$0xff]
        %v4702 = vld [vmem:[#allocation12 + $0x160] sm:$0xff]
        %v4703 = vld [vmem:[#allocation12 + $0x168] sm:$0xff]
        %v4704 = vld [vmem:[#allocation12 + $0x170] sm:$0xff]
        %v4705 = vld [vmem:[#allocation12 + $0x178] sm:$0xff]
        %v4706 = vld [vmem:[#allocation12 + $0x180] sm:$0xff]
        %v4707 = vld [vmem:[#allocation12 + $0x188] sm:$0xff]
        %v4708 = vld [vmem:[#allocation12 + $0x190] sm:$0xff]
        %v4709 = vld [vmem:[#allocation12 + $0x198] sm:$0xff]
        %v4710 = vld [vmem:[#allocation12 + $0x1a0] sm:$0xff]
        %v4711 = vld [vmem:[#allocation12 + $0x1a8] sm:$0xff]
        %v4712 = vld [vmem:[#allocation12 + $0x1b0] sm:$0xff]
        %v4713 = vld [vmem:[#allocation12 + $0x1b8] sm:$0xff]
        %v4714 = vld [vmem:[#allocation12 + $0x1c0] sm:$0xff]
        %v4715 = vld [vmem:[#allocation12 + $0x1c8] sm:$0xff]
        %v4716 = vld [vmem:[#allocation12 + $0x1d0] sm:$0xff]
        %v4717 = vld [vmem:[#allocation12 + $0x1d8] sm:$0xff]
        %v4718 = vld [vmem:[#allocation12 + $0x1e0] sm:$0xff]
        %v4719 = vld [vmem:[#allocation12 + $0x1e8] sm:$0xff]
        %v4720 = vld [vmem:[#allocation12 + $0x1f0] sm:$0xff]
        %v4721 = vld [vmem:[#allocation12 + $0x1f8] sm:$0xff]
        %v4722 = vld [vmem:[#allocation12 + $0x200] sm:$0xff]
        %v4723 = vld [vmem:[#allocation12 + $0x208] sm:$0xff]
        %v4724 = vld [vmem:[#allocation12 + $0x210] sm:$0xff]
        %v4725 = vld [vmem:[#allocation12 + $0x218] sm:$0xff]
        %v4726 = vld [vmem:[#allocation12 + $0x220] sm:$0xff]
        %v4727 = vld [vmem:[#allocation12 + $0x228] sm:$0xff]
        %v4728 = vld [vmem:[#allocation12 + $0x230] sm:$0xff]
        %v4729 = vld [vmem:[#allocation12 + $0x238] sm:$0xff]
        %v4730 = vld [vmem:[#allocation12 + $0x240] sm:$0xff]
        %v4731 = vld [vmem:[#allocation12 + $0x248] sm:$0xff]
        %v4732 = vld [vmem:[#allocation12 + $0x250] sm:$0xff]
        %v4733 = vld [vmem:[#allocation12 + $0x258] sm:$0xff]
        %v4734 = vld [vmem:[#allocation12 + $0x260] sm:$0xff]
        %v4735 = vld [vmem:[#allocation12 + $0x268] sm:$0xff]
        %v4736 = vld [vmem:[#allocation12 + $0x270] sm:$0xff]
        %v4737 = vld [vmem:[#allocation12 + $0x278] sm:$0xff]
        %v4738 = vld [vmem:[#allocation12 + $0x280] sm:$0xff]
        %v4739 = vld [vmem:[#allocation12 + $0x288] sm:$0xff]
        %v4740 = vld [vmem:[#allocation12 + $0x290] sm:$0xff]
        %v4741 = vld [vmem:[#allocation12 + $0x298] sm:$0xff]
        %v4742 = vld [vmem:[#allocation12 + $0x2a0] sm:$0xff]
        %v4743 = vld [vmem:[#allocation12 + $0x2a8] sm:$0xff]
        %v4744 = vld [vmem:[#allocation12 + $0x2b0] sm:$0xff]
        %v4745 = vld [vmem:[#allocation12 + $0x2b8] sm:$0xff]
        %v4746 = vld [vmem:[#allocation12 + $0x2c0] sm:$0xff]
        %v4747 = vld [vmem:[#allocation12 + $0x2c8] sm:$0xff]
        %v4748 = vld [vmem:[#allocation12 + $0x2d0] sm:$0xff]
        %v4749 = vld [vmem:[#allocation12 + $0x2d8] sm:$0xff]
        %v4750 = vld [vmem:[#allocation12 + $0x2e0] sm:$0xff]
        %v4751 = vld [vmem:[#allocation12 + $0x2e8] sm:$0xff]
        %v4752 = vld [vmem:[#allocation12 + $0x2f0] sm:$0xff]
        %v4753 = vld [vmem:[#allocation12 + $0x2f8] sm:$0xff]
        %v4754 = vld [vmem:[#allocation12 + $0x300] sm:$0xff]
        %v4755 = vld [vmem:[#allocation12 + $0x308] sm:$0xff]
        %v4756 = vld [vmem:[#allocation12 + $0x310] sm:$0xff]
        %v4757 = vld [vmem:[#allocation12 + $0x318] sm:$0xff]
        %v4758 = vld [vmem:[#allocation12 + $0x320] sm:$0xff]
        %v4759 = vld [vmem:[#allocation12 + $0x328] sm:$0xff]
        %v4760 = vld [vmem:[#allocation12 + $0x330] sm:$0xff]
        %v4761 = vld [vmem:[#allocation12 + $0x338] sm:$0xff]
        %v4762 = vld [vmem:[#allocation12 + $0x340] sm:$0xff]
        %v4763 = vld [vmem:[#allocation12 + $0x348] sm:$0xff]
        %v4764 = vld [vmem:[#allocation12 + $0x350] sm:$0xff]
        %v4765 = vld [vmem:[#allocation12 + $0x358] sm:$0xff]
        %v4766 = vld [vmem:[#allocation12 + $0x360] sm:$0xff]
        %v4767 = vld [vmem:[#allocation12 + $0x368] sm:$0xff]
        %v4768 = vld [vmem:[#allocation12 + $0x370] sm:$0xff]
        %v4769 = vld [vmem:[#allocation12 + $0x378] sm:$0xff]
        %v4770 = vld [vmem:[#allocation12 + $0x380] sm:$0xff]
        %v4771 = vld [vmem:[#allocation12 + $0x388] sm:$0xff]
        %v4772 = vld [vmem:[#allocation12 + $0x390] sm:$0xff]
        %v4773 = vld [vmem:[#allocation12 + $0x398] sm:$0xff]
        %v4774 = vld [vmem:[#allocation12 + $0x3a0] sm:$0xff]
        %v4775 = vld [vmem:[#allocation12 + $0x3a8] sm:$0xff]
        %v4776 = vld [vmem:[#allocation12 + $0x3b0] sm:$0xff]
        %v4777 = vld [vmem:[#allocation12 + $0x3b8] sm:$0xff]
        %v4778 = vld [vmem:[#allocation12 + $0x3c0] sm:$0xff]
        %v4779 = vld [vmem:[#allocation12 + $0x3c8] sm:$0xff]
        %v4780 = vld [vmem:[#allocation12 + $0x3d0] sm:$0xff]
        %v4781 = vld [vmem:[#allocation12 + $0x3d8] sm:$0xff]
        %v4782 = vld [vmem:[#allocation12 + $0x3e0] sm:$0xff]
        %v4783 = vld [vmem:[#allocation12 + $0x3e8] sm:$0xff]
        %v4784 = vld [vmem:[#allocation12 + $0x3f0] sm:$0xff]
        %v4785 = vld [vmem:[#allocation12 + $0x3f8] sm:$0xff]
        %v4914 = vunpack.c.l.b16 %v4658
        %v4915 = vunpack.c.h.b16 %v4658
        %v4916 = vunpack.c.l.b16 %v4659
        %v4917 = vunpack.c.h.b16 %v4659
        %v4918 = vunpack.c.l.b16 %v4660
        %v4919 = vunpack.c.h.b16 %v4660
        %v4920 = vunpack.c.l.b16 %v4661
        %v4921 = vunpack.c.h.b16 %v4661
        %v4922 = vunpack.c.l.b16 %v4662
        %v4923 = vunpack.c.h.b16 %v4662
        %v4924 = vunpack.c.l.b16 %v4663
        %v4925 = vunpack.c.h.b16 %v4663
        %v4926 = vunpack.c.l.b16 %v4664
        %v4927 = vunpack.c.h.b16 %v4664
        %v4928 = vunpack.c.l.b16 %v4665
        %v4929 = vunpack.c.h.b16 %v4665
        %v4930 = vunpack.c.l.b16 %v4666
        %v4931 = vunpack.c.h.b16 %v4666
        %v4932 = vunpack.c.l.b16 %v4667
        %v4933 = vunpack.c.h.b16 %v4667
        %v4934 = vunpack.c.l.b16 %v4668
        %v4935 = vunpack.c.h.b16 %v4668
        %v4936 = vunpack.c.l.b16 %v4669
        %v4937 = vunpack.c.h.b16 %v4669
        %v4938 = vunpack.c.l.b16 %v4670
        %v4939 = vunpack.c.h.b16 %v4670
        %v4940 = vunpack.c.l.b16 %v4671
        %v4941 = vunpack.c.h.b16 %v4671
        %v4942 = vunpack.c.l.b16 %v4672
        %v4943 = vunpack.c.h.b16 %v4672
        %v4944 = vunpack.c.l.b16 %v4673
        %v4945 = vunpack.c.h.b16 %v4673
        %v4946 = vunpack.c.l.b16 %v4674
        %v4947 = vunpack.c.h.b16 %v4674
        %v4948 = vunpack.c.l.b16 %v4675
        %v4949 = vunpack.c.h.b16 %v4675
        %v4950 = vunpack.c.l.b16 %v4676
        %v4951 = vunpack.c.h.b16 %v4676
        %v4952 = vunpack.c.l.b16 %v4677
        %v4953 = vunpack.c.h.b16 %v4677
        %v4954 = vunpack.c.l.b16 %v4678
        %v4955 = vunpack.c.h.b16 %v4678
        %v4956 = vunpack.c.l.b16 %v4679
        %v4957 = vunpack.c.h.b16 %v4679
        %v4958 = vunpack.c.l.b16 %v4680
        %v4959 = vunpack.c.h.b16 %v4680
        %v4960 = vunpack.c.l.b16 %v4681
        %v4961 = vunpack.c.h.b16 %v4681
        %v4962 = vunpack.c.l.b16 %v4682
        %v4963 = vunpack.c.h.b16 %v4682
        %v4964 = vunpack.c.l.b16 %v4683
        %v4965 = vunpack.c.h.b16 %v4683
        %v4966 = vunpack.c.l.b16 %v4684
        %v4967 = vunpack.c.h.b16 %v4684
        %v4968 = vunpack.c.l.b16 %v4685
        %v4969 = vunpack.c.h.b16 %v4685
        %v4970 = vunpack.c.l.b16 %v4686
        %v4971 = vunpack.c.h.b16 %v4686
        %v4972 = vunpack.c.l.b16 %v4687
        %v4973 = vunpack.c.h.b16 %v4687
        %v4974 = vunpack.c.l.b16 %v4688
        %v4975 = vunpack.c.h.b16 %v4688
        %v4976 = vunpack.c.l.b16 %v4689
        %v4977 = vunpack.c.h.b16 %v4689
        %v4978 = vunpack.c.l.b16 %v4690
        %v4979 = vunpack.c.h.b16 %v4690
        %v4980 = vunpack.c.l.b16 %v4691
        %v4981 = vunpack.c.h.b16 %v4691
        %v4982 = vunpack.c.l.b16 %v4692
        %v4983 = vunpack.c.h.b16 %v4692
        %v4984 = vunpack.c.l.b16 %v4693
        %v4985 = vunpack.c.h.b16 %v4693
        %v4986 = vunpack.c.l.b16 %v4694
        %v4987 = vunpack.c.h.b16 %v4694
        %v4988 = vunpack.c.l.b16 %v4695
        %v4989 = vunpack.c.h.b16 %v4695
        %v4990 = vunpack.c.l.b16 %v4696
        %v4991 = vunpack.c.h.b16 %v4696
        %v4992 = vunpack.c.l.b16 %v4697
        %v4993 = vunpack.c.h.b16 %v4697
        %v4994 = vunpack.c.l.b16 %v4698
        %v4995 = vunpack.c.h.b16 %v4698
        %v4996 = vunpack.c.l.b16 %v4699
        %v4997 = vunpack.c.h.b16 %v4699
        %v4998 = vunpack.c.l.b16 %v4700
        %v4999 = vunpack.c.h.b16 %v4700
        %v5000 = vunpack.c.l.b16 %v4701
        %v5001 = vunpack.c.h.b16 %v4701
        %v5002 = vunpack.c.l.b16 %v4702
        %v5003 = vunpack.c.h.b16 %v4702
        %v5004 = vunpack.c.l.b16 %v4703
        %v5005 = vunpack.c.h.b16 %v4703
        %v5006 = vunpack.c.l.b16 %v4704
        %v5007 = vunpack.c.h.b16 %v4704
        %v5008 = vunpack.c.l.b16 %v4705
        %v5009 = vunpack.c.h.b16 %v4705
        %v5010 = vunpack.c.l.b16 %v4706
        %v5011 = vunpack.c.h.b16 %v4706
        %v5012 = vunpack.c.l.b16 %v4707
        %v5013 = vunpack.c.h.b16 %v4707
        %v5014 = vunpack.c.l.b16 %v4708
        %v5015 = vunpack.c.h.b16 %v4708
        %v5016 = vunpack.c.l.b16 %v4709
        %v5017 = vunpack.c.h.b16 %v4709
        %v5018 = vunpack.c.l.b16 %v4710
        %v5019 = vunpack.c.h.b16 %v4710
        %v5020 = vunpack.c.l.b16 %v4711
        %v5021 = vunpack.c.h.b16 %v4711
        %v5022 = vunpack.c.l.b16 %v4712
        %v5023 = vunpack.c.h.b16 %v4712
        %v5024 = vunpack.c.l.b16 %v4713
        %v5025 = vunpack.c.h.b16 %v4713
        %v5026 = vunpack.c.l.b16 %v4714
        %v5027 = vunpack.c.h.b16 %v4714
        %v5028 = vunpack.c.l.b16 %v4715
        %v5029 = vunpack.c.h.b16 %v4715
        %v5030 = vunpack.c.l.b16 %v4716
        %v5031 = vunpack.c.h.b16 %v4716
        %v5032 = vunpack.c.l.b16 %v4717
        %v5033 = vunpack.c.h.b16 %v4717
        %v5034 = vunpack.c.l.b16 %v4718
        %v5035 = vunpack.c.h.b16 %v4718
        %v5036 = vunpack.c.l.b16 %v4719
        %v5037 = vunpack.c.h.b16 %v4719
        %v5038 = vunpack.c.l.b16 %v4720
        %v5039 = vunpack.c.h.b16 %v4720
        %v5040 = vunpack.c.l.b16 %v4721
        %v5041 = vunpack.c.h.b16 %v4721
        %v5042 = vunpack.c.l.b16 %v4722
        %v5043 = vunpack.c.h.b16 %v4722
        %v5044 = vunpack.c.l.b16 %v4723
        %v5045 = vunpack.c.h.b16 %v4723
        %v5046 = vunpack.c.l.b16 %v4724
        %v5047 = vunpack.c.h.b16 %v4724
        %v5048 = vunpack.c.l.b16 %v4725
        %v5049 = vunpack.c.h.b16 %v4725
        %v5050 = vunpack.c.l.b16 %v4726
        %v5051 = vunpack.c.h.b16 %v4726
        %v5052 = vunpack.c.l.b16 %v4727
        %v5053 = vunpack.c.h.b16 %v4727
        %v5054 = vunpack.c.l.b16 %v4728
        %v5055 = vunpack.c.h.b16 %v4728
        %v5056 = vunpack.c.l.b16 %v4729
        %v5057 = vunpack.c.h.b16 %v4729
        %v5058 = vunpack.c.l.b16 %v4730
        %v5059 = vunpack.c.h.b16 %v4730
        %v5060 = vunpack.c.l.b16 %v4731
        %v5061 = vunpack.c.h.b16 %v4731
        %v5062 = vunpack.c.l.b16 %v4732
        %v5063 = vunpack.c.h.b16 %v4732
        %v5064 = vunpack.c.l.b16 %v4733
        %v5065 = vunpack.c.h.b16 %v4733
        %v5066 = vunpack.c.l.b16 %v4734
        %v5067 = vunpack.c.h.b16 %v4734
        %v5068 = vunpack.c.l.b16 %v4735
        %v5069 = vunpack.c.h.b16 %v4735
        %v5070 = vunpack.c.l.b16 %v4736
        %v5071 = vunpack.c.h.b16 %v4736
        %v5072 = vunpack.c.l.b16 %v4737
        %v5073 = vunpack.c.h.b16 %v4737
        %v5074 = vunpack.c.l.b16 %v4738
        %v5075 = vunpack.c.h.b16 %v4738
        %v5076 = vunpack.c.l.b16 %v4739
        %v5077 = vunpack.c.h.b16 %v4739
        %v5078 = vunpack.c.l.b16 %v4740
        %v5079 = vunpack.c.h.b16 %v4740
        %v5080 = vunpack.c.l.b16 %v4741
        %v5081 = vunpack.c.h.b16 %v4741
        %v5082 = vunpack.c.l.b16 %v4742
        %v5083 = vunpack.c.h.b16 %v4742
        %v5084 = vunpack.c.l.b16 %v4743
        %v5085 = vunpack.c.h.b16 %v4743
        %v5086 = vunpack.c.l.b16 %v4744
        %v5087 = vunpack.c.h.b16 %v4744
        %v5088 = vunpack.c.l.b16 %v4745
        %v5089 = vunpack.c.h.b16 %v4745
        %v5090 = vunpack.c.l.b16 %v4746
        %v5091 = vunpack.c.h.b16 %v4746
        %v5092 = vunpack.c.l.b16 %v4747
        %v5093 = vunpack.c.h.b16 %v4747
        %v5094 = vunpack.c.l.b16 %v4748
        %v5095 = vunpack.c.h.b16 %v4748
        %v5096 = vunpack.c.l.b16 %v4749
        %v5097 = vunpack.c.h.b16 %v4749
        %v5098 = vunpack.c.l.b16 %v4750
        %v5099 = vunpack.c.h.b16 %v4750
        %v5100 = vunpack.c.l.b16 %v4751
        %v5101 = vunpack.c.h.b16 %v4751
        %v5102 = vunpack.c.l.b16 %v4752
        %v5103 = vunpack.c.h.b16 %v4752
        %v5104 = vunpack.c.l.b16 %v4753
        %v5105 = vunpack.c.h.b16 %v4753
        %v5106 = vunpack.c.l.b16 %v4754
        %v5107 = vunpack.c.h.b16 %v4754
        %v5108 = vunpack.c.l.b16 %v4755
        %v5109 = vunpack.c.h.b16 %v4755
        %v5110 = vunpack.c.l.b16 %v4756
        %v5111 = vunpack.c.h.b16 %v4756
        %v5112 = vunpack.c.l.b16 %v4757
        %v5113 = vunpack.c.h.b16 %v4757
        %v5114 = vunpack.c.l.b16 %v4758
        %v5115 = vunpack.c.h.b16 %v4758
        %v5116 = vunpack.c.l.b16 %v4759
        %v5117 = vunpack.c.h.b16 %v4759
        %v5118 = vunpack.c.l.b16 %v4760
        %v5119 = vunpack.c.h.b16 %v4760
        %v5120 = vunpack.c.l.b16 %v4761
        %v5121 = vunpack.c.h.b16 %v4761
        %v5122 = vunpack.c.l.b16 %v4762
        %v5123 = vunpack.c.h.b16 %v4762
        %v5124 = vunpack.c.l.b16 %v4763
        %v5125 = vunpack.c.h.b16 %v4763
        %v5126 = vunpack.c.l.b16 %v4764
        %v5127 = vunpack.c.h.b16 %v4764
        %v5128 = vunpack.c.l.b16 %v4765
        %v5129 = vunpack.c.h.b16 %v4765
        %v5130 = vunpack.c.l.b16 %v4766
        %v5131 = vunpack.c.h.b16 %v4766
        %v5132 = vunpack.c.l.b16 %v4767
        %v5133 = vunpack.c.h.b16 %v4767
        %v5134 = vunpack.c.l.b16 %v4768
        %v5135 = vunpack.c.h.b16 %v4768
        %v5136 = vunpack.c.l.b16 %v4769
        %v5137 = vunpack.c.h.b16 %v4769
        %v5138 = vunpack.c.l.b16 %v4770
        %v5139 = vunpack.c.h.b16 %v4770
        %v5140 = vunpack.c.l.b16 %v4771
        %v5141 = vunpack.c.h.b16 %v4771
        %v5142 = vunpack.c.l.b16 %v4772
        %v5143 = vunpack.c.h.b16 %v4772
        %v5144 = vunpack.c.l.b16 %v4773
        %v5145 = vunpack.c.h.b16 %v4773
        %v5146 = vunpack.c.l.b16 %v4774
        %v5147 = vunpack.c.h.b16 %v4774
        %v5148 = vunpack.c.l.b16 %v4775
        %v5149 = vunpack.c.h.b16 %v4775
        %v5150 = vunpack.c.l.b16 %v4776
        %v5151 = vunpack.c.h.b16 %v4776
        %v5152 = vunpack.c.l.b16 %v4777
        %v5153 = vunpack.c.h.b16 %v4777
        %v5154 = vunpack.c.l.b16 %v4778
        %v5155 = vunpack.c.h.b16 %v4778
        %v5156 = vunpack.c.l.b16 %v4779
        %v5157 = vunpack.c.h.b16 %v4779
        %v5158 = vunpack.c.l.b16 %v4780
        %v5159 = vunpack.c.h.b16 %v4780
        %v5160 = vunpack.c.l.b16 %v4781
        %v5161 = vunpack.c.h.b16 %v4781
        %v5162 = vunpack.c.l.b16 %v4782
        %v5163 = vunpack.c.h.b16 %v4782
        %v5164 = vunpack.c.l.b16 %v4783
        %v5165 = vunpack.c.h.b16 %v4783
        %v5166 = vunpack.c.l.b16 %v4784
        %v5167 = vunpack.c.h.b16 %v4784
        %v5168 = vunpack.c.l.b16 %v4785
        %v5169 = vunpack.c.h.b16 %v4785
        %v5170 = vpack.c.b16 %v4916, %v4914
        %v5171 = vpack.c.b16 %v4917, %v4915
        %v5172 = vpack.c.b16 %v4920, %v4918
        %v5173 = vpack.c.b16 %v4921, %v4919
        %v5174 = vpack.c.b16 %v4924, %v4922
        %v5175 = vpack.c.b16 %v4925, %v4923
        %v5176 = vpack.c.b16 %v4928, %v4926
        %v5177 = vpack.c.b16 %v4929, %v4927
        %v5178 = vpack.c.b16 %v4932, %v4930
        %v5179 = vpack.c.b16 %v4933, %v4931
        %v5180 = vpack.c.b16 %v4936, %v4934
        %v5181 = vpack.c.b16 %v4937, %v4935
        %v5182 = vpack.c.b16 %v4940, %v4938
        %v5183 = vpack.c.b16 %v4941, %v4939
        %v5184 = vpack.c.b16 %v4944, %v4942
        %v5185 = vpack.c.b16 %v4945, %v4943
        %v5186 = vpack.c.b16 %v4948, %v4946
        %v5187 = vpack.c.b16 %v4949, %v4947
        %v5188 = vpack.c.b16 %v4952, %v4950
        %v5189 = vpack.c.b16 %v4953, %v4951
        %v5190 = vpack.c.b16 %v4956, %v4954
        %v5191 = vpack.c.b16 %v4957, %v4955
        %v5192 = vpack.c.b16 %v4960, %v4958
        %v5193 = vpack.c.b16 %v4961, %v4959
        %v5194 = vpack.c.b16 %v4964, %v4962
        %v5195 = vpack.c.b16 %v4965, %v4963
        %v5196 = vpack.c.b16 %v4968, %v4966
        %v5197 = vpack.c.b16 %v4969, %v4967
        %v5198 = vpack.c.b16 %v4972, %v4970
        %v5199 = vpack.c.b16 %v4973, %v4971
        %v5200 = vpack.c.b16 %v4976, %v4974
        %v5201 = vpack.c.b16 %v4977, %v4975
        %v5202 = vpack.c.b16 %v4980, %v4978
        %v5203 = vpack.c.b16 %v4981, %v4979
        %v5204 = vpack.c.b16 %v4984, %v4982
        %v5205 = vpack.c.b16 %v4985, %v4983
        %v5206 = vpack.c.b16 %v4988, %v4986
        %v5207 = vpack.c.b16 %v4989, %v4987
        %v5208 = vpack.c.b16 %v4992, %v4990
        %v5209 = vpack.c.b16 %v4993, %v4991
        %v5210 = vpack.c.b16 %v4996, %v4994
        %v5211 = vpack.c.b16 %v4997, %v4995
        %v5212 = vpack.c.b16 %v5000, %v4998
        %v5213 = vpack.c.b16 %v5001, %v4999
        %v5214 = vpack.c.b16 %v5004, %v5002
        %v5215 = vpack.c.b16 %v5005, %v5003
        %v5216 = vpack.c.b16 %v5008, %v5006
        %v5217 = vpack.c.b16 %v5009, %v5007
        %v5218 = vpack.c.b16 %v5012, %v5010
        %v5219 = vpack.c.b16 %v5013, %v5011
        %v5220 = vpack.c.b16 %v5016, %v5014
        %v5221 = vpack.c.b16 %v5017, %v5015
        %v5222 = vpack.c.b16 %v5020, %v5018
        %v5223 = vpack.c.b16 %v5021, %v5019
        %v5224 = vpack.c.b16 %v5024, %v5022
        %v5225 = vpack.c.b16 %v5025, %v5023
        %v5226 = vpack.c.b16 %v5028, %v5026
        %v5227 = vpack.c.b16 %v5029, %v5027
        %v5228 = vpack.c.b16 %v5032, %v5030
        %v5229 = vpack.c.b16 %v5033, %v5031
        %v5230 = vpack.c.b16 %v5036, %v5034
        %v5231 = vpack.c.b16 %v5037, %v5035
        %v5232 = vpack.c.b16 %v5040, %v5038
        %v5233 = vpack.c.b16 %v5041, %v5039
        %v5234 = vpack.c.b16 %v5044, %v5042
        %v5235 = vpack.c.b16 %v5045, %v5043
        %v5236 = vpack.c.b16 %v5048, %v5046
        %v5237 = vpack.c.b16 %v5049, %v5047
        %v5238 = vpack.c.b16 %v5052, %v5050
        %v5239 = vpack.c.b16 %v5053, %v5051
        %v5240 = vpack.c.b16 %v5056, %v5054
        %v5241 = vpack.c.b16 %v5057, %v5055
        %v5242 = vpack.c.b16 %v5060, %v5058
        %v5243 = vpack.c.b16 %v5061, %v5059
        %v5244 = vpack.c.b16 %v5064, %v5062
        %v5245 = vpack.c.b16 %v5065, %v5063
        %v5246 = vpack.c.b16 %v5068, %v5066
        %v5247 = vpack.c.b16 %v5069, %v5067
        %v5248 = vpack.c.b16 %v5072, %v5070
        %v5249 = vpack.c.b16 %v5073, %v5071
        %v5250 = vpack.c.b16 %v5076, %v5074
        %v5251 = vpack.c.b16 %v5077, %v5075
        %v5252 = vpack.c.b16 %v5080, %v5078
        %v5253 = vpack.c.b16 %v5081, %v5079
        %v5254 = vpack.c.b16 %v5084, %v5082
        %v5255 = vpack.c.b16 %v5085, %v5083
        %v5256 = vpack.c.b16 %v5088, %v5086
        %v5257 = vpack.c.b16 %v5089, %v5087
        %v5258 = vpack.c.b16 %v5092, %v5090
        %v5259 = vpack.c.b16 %v5093, %v5091
        %v5260 = vpack.c.b16 %v5096, %v5094
        %v5261 = vpack.c.b16 %v5097, %v5095
        %v5262 = vpack.c.b16 %v5100, %v5098
        %v5263 = vpack.c.b16 %v5101, %v5099
        %v5264 = vpack.c.b16 %v5104, %v5102
        %v5265 = vpack.c.b16 %v5105, %v5103
        %v5266 = vpack.c.b16 %v5108, %v5106
        %v5267 = vpack.c.b16 %v5109, %v5107
        %v5268 = vpack.c.b16 %v5112, %v5110
        %v5269 = vpack.c.b16 %v5113, %v5111
        %v5270 = vpack.c.b16 %v5116, %v5114
        %v5271 = vpack.c.b16 %v5117, %v5115
        %v5272 = vpack.c.b16 %v5120, %v5118
        %v5273 = vpack.c.b16 %v5121, %v5119
        %v5274 = vpack.c.b16 %v5124, %v5122
        %v5275 = vpack.c.b16 %v5125, %v5123
        %v5276 = vpack.c.b16 %v5128, %v5126
        %v5277 = vpack.c.b16 %v5129, %v5127
        %v5278 = vpack.c.b16 %v5132, %v5130
        %v5279 = vpack.c.b16 %v5133, %v5131
        %v5280 = vpack.c.b16 %v5136, %v5134
        %v5281 = vpack.c.b16 %v5137, %v5135
        %v5282 = vpack.c.b16 %v5140, %v5138
        %v5283 = vpack.c.b16 %v5141, %v5139
        %v5284 = vpack.c.b16 %v5144, %v5142
        %v5285 = vpack.c.b16 %v5145, %v5143
        %v5286 = vpack.c.b16 %v5148, %v5146
        %v5287 = vpack.c.b16 %v5149, %v5147
        %v5288 = vpack.c.b16 %v5152, %v5150
        %v5289 = vpack.c.b16 %v5153, %v5151
        %v5290 = vpack.c.b16 %v5156, %v5154
        %v5291 = vpack.c.b16 %v5157, %v5155
        %v5292 = vpack.c.b16 %v5160, %v5158
        %v5293 = vpack.c.b16 %v5161, %v5159
        %v5294 = vpack.c.b16 %v5164, %v5162
        %v5295 = vpack.c.b16 %v5165, %v5163
        %v5296 = vpack.c.b16 %v5168, %v5166
        %v5297 = vpack.c.b16 %v5169, %v5167
        %5426 = vmatprep.subr.bf16.mxu0 %v5171
        %5427 = vmatpush1.bf16.msra.mxu0 %v5170
        %5428 = vmatprep.subr.bf16.mxu0 %v5173
        %5429 = vmatpush1.bf16.msra.mxu0 %v5172
        %5430 = vmatprep.subr.bf16.mxu0 %v5175
        %5431 = vmatpush1.bf16.msra.mxu0 %v5174
        %5432 = vmatprep.subr.bf16.mxu0 %v5177
        %5433 = vmatpush1.bf16.msra.mxu0 %v5176
        %5434 = vmatprep.subr.bf16.mxu0 %v5179
        %5435 = vmatpush1.bf16.msra.mxu0 %v5178
        %5436 = vmatprep.subr.bf16.mxu0 %v5181
        %5437 = vmatpush1.bf16.msra.mxu0 %v5180
        %5438 = vmatprep.subr.bf16.mxu0 %v5183
        %5439 = vmatpush1.bf16.msra.mxu0 %v5182
        %5440 = vmatprep.subr.bf16.mxu0 %v5185
        %5441 = vmatpush1.bf16.msra.mxu0 %v5184
        %5442 = vmatprep.subr.bf16.mxu0 %v5187
        %5443 = vmatpush1.bf16.msra.mxu0 %v5186
        %5444 = vmatprep.subr.bf16.mxu0 %v5189
        %5445 = vmatpush1.bf16.msra.mxu0 %v5188
        %5446 = vmatprep.subr.bf16.mxu0 %v5191
        %5447 = vmatpush1.bf16.msra.mxu0 %v5190
        %5448 = vmatprep.subr.bf16.mxu0 %v5193
        %5449 = vmatpush1.bf16.msra.mxu0 %v5192
        %5450 = vmatprep.subr.bf16.mxu0 %v5195
        %5451 = vmatpush1.bf16.msra.mxu0 %v5194
        %5452 = vmatprep.subr.bf16.mxu0 %v5197
        %5453 = vmatpush1.bf16.msra.mxu0 %v5196
        %5454 = vmatprep.subr.bf16.mxu0 %v5199
        %5455 = vmatpush1.bf16.msra.mxu0 %v5198
        %5456 = vmatprep.subr.bf16.mxu0 %v5201
        %5457 = vmatpush1.bf16.msra.mxu0 %v5200
        %5458 = vmatprep.mubr.bf16.mxu0 %v4595
        %5459 = vmatmul.mubr.bf16.gmra.mrb[0].mxu0 %v4594
        %v5460 = vpop.f32.mrb[0].mxu0
        %v5461 = vadd.f32 0.0, %v5460
        %v5462 = vpop.f32.mrb[0].mxu0
        %v5463 = vadd.f32 0.0, %v5462
        %v5464 = vpop.f32.mrb[0].mxu0
        %v5465 = vadd.f32 0.0, %v5464
        %v5466 = vpop.f32.mrb[0].mxu0
        %v5467 = vadd.f32 0.0, %v5466
        %5468 = vmatprep.mubr.bf16.mxu0 %v4603
        %5469 = vmatmul.mubr.bf16.gmra.mrb[0].mxu0 %v4602
        %v5470 = vpop.f32.mrb[0].mxu0
        %v5471 = vadd.f32 0.0, %v5470
        %v5472 = vpop.f32.mrb[0].mxu0
        %v5473 = vadd.f32 0.0, %v5472
        %v5474 = vpop.f32.mrb[0].mxu0
        %v5475 = vadd.f32 0.0, %v5474
        %v5476 = vpop.f32.mrb[0].mxu0
        %v5477 = vadd.f32 0.0, %v5476
        %5478 = vmatprep.mubr.bf16.mxu0 %v4611
        %5479 = vmatmul.mubr.bf16.gmra.mrb[0].mxu0 %v4610
        %v5480 = vpop.f32.mrb[0].mxu0
        %v5481 = vadd.f32 0.0, %v5480
        %v5482 = vpop.f32.mrb[0].mxu0
        %v5483 = vadd.f32 0.0, %v5482
        %v5484 = vpop.f32.mrb[0].mxu0
        %v5485 = vadd.f32 0.0, %v5484
        %v5486 = vpop.f32.mrb[0].mxu0
        %v5487 = vadd.f32 0.0, %v5486
        %5488 = vmatprep.mubr.bf16.mxu0 %v4619
        %5489 = vmatmul.mubr.bf16.gmra.mrb[0].mxu0 %v4618
        %v5490 = vpop.f32.mrb[0].mxu0
        %v5491 = vadd.f32 0.0, %v5490
        %v5492 = vpop.f32.mrb[0].mxu0
        %v5493 = vadd.f32 0.0, %v5492
        %v5494 = vpop.f32.mrb[0].mxu0
        %v5495 = vadd.f32 0.0, %v5494
        %v5496 = vpop.f32.mrb[0].mxu0
        %v5497 = vadd.f32 0.0, %v5496
        %5498 = vmatprep.mubr.bf16.mxu0 %v4627
        %5499 = vmatmul.mubr.bf16.gmra.mrb[0].mxu0 %v4626
        %v5500 = vpop.f32.mrb[0].mxu0
        %v5501 = vadd.f32 0.0, %v5500
        %v5502 = vpop.f32.mrb[0].mxu0
        %v5503 = vadd.f32 0.0, %v5502
        %v5504 = vpop.f32.mrb[0].mxu0
        %v5505 = vadd.f32 0.0, %v5504
        %v5506 = vpop.f32.mrb[0].mxu0
        %v5507 = vadd.f32 0.0, %v5506
        %5508 = vmatprep.mubr.bf16.mxu0 %v4635
        %5509 = vmatmul.mubr.bf16.gmra.mrb[0].mxu0 %v4634
        %v5510 = vpop.f32.mrb[0].mxu0
        %v5511 = vadd.f32 0.0, %v5510
        %v5512 = vpop.f32.mrb[0].mxu0
        %v5513 = vadd.f32 0.0, %v5512
        %v5514 = vpop.f32.mrb[0].mxu0
        %v5515 = vadd.f32 0.0, %v5514
        %v5516 = vpop.f32.mrb[0].mxu0
        %v5517 = vadd.f32 0.0, %v5516
        %5518 = vmatprep.mubr.bf16.mxu0 %v4643
        %5519 = vmatmul.mubr.bf16.gmra.mrb[0].mxu0 %v4642
        %v5520 = vpop.f32.mrb[0].mxu0
        %v5521 = vadd.f32 0.0, %v5520
        %v5522 = vpop.f32.mrb[0].mxu0
        %v5523 = vadd.f32 0.0, %v5522
        %v5524 = vpop.f32.mrb[0].mxu0
        %v5525 = vadd.f32 0.0, %v5524
        %v5526 = vpop.f32.mrb[0].mxu0
        %v5527 = vadd.f32 0.0, %v5526
        %5528 = vmatprep.mubr.bf16.mxu0 %v4651
        %5529 = vmatmul.mubr.bf16.gmra.mrb[0].mxu0 %v4650
        %v5530 = vpop.f32.mrb[0].mxu0
        %v5531 = vadd.f32 0.0, %v5530
        %v5532 = vpop.f32.mrb[0].mxu0
        %v5533 = vadd.f32 0.0, %v5532
        %v5534 = vpop.f32.mrb[0].mxu0
        %v5535 = vadd.f32 0.0, %v5534
        %v5536 = vpop.f32.mrb[0].mxu0
        %v5537 = vadd.f32 0.0, %v5536
        %5538 = vdwg.mxu0
        %5539 = vmatprep.subr.bf16.mxu0 %v5203
        %5540 = vmatpush1.bf16.msra.mxu0 %v5202
        %5541 = vmatprep.subr.bf16.mxu0 %v5205
        %5542 = vmatpush1.bf16.msra.mxu0 %v5204
        %5543 = vmatprep.subr.bf16.mxu0 %v5207
        %5544 = vmatpush1.bf16.msra.mxu0 %v5206
        %5545 = vmatprep.subr.bf16.mxu0 %v5209
        %5546 = vmatpush1.bf16.msra.mxu0 %v5208
        %5547 = vmatprep.subr.bf16.mxu0 %v5211
        %5548 = vmatpush1.bf16.msra.mxu0 %v5210
        %5549 = vmatprep.subr.bf16.mxu0 %v5213
        %5550 = vmatpush1.bf16.msra.mxu0 %v5212
        %5551 = vmatprep.subr.bf16.mxu0 %v5215
        %5552 = vmatpush1.bf16.msra.mxu0 %v5214
        %5553 = vmatprep.subr.bf16.mxu0 %v5217
        %5554 = vmatpush1.bf16.msra.mxu0 %v5216
        %5555 = vmatprep.subr.bf16.mxu0 %v5219
        %5556 = vmatpush1.bf16.msra.mxu0 %v5218
        %5557 = vmatprep.subr.bf16.mxu0 %v5221
        %5558 = vmatpush1.bf16.msra.mxu0 %v5220
        %5559 = vmatprep.subr.bf16.mxu0 %v5223
        %5560 = vmatpush1.bf16.msra.mxu0 %v5222
        %5561 = vmatprep.subr.bf16.mxu0 %v5225
        %5562 = vmatpush1.bf16.msra.mxu0 %v5224
        %5563 = vmatprep.subr.bf16.mxu0 %v5227
        %5564 = vmatpush1.bf16.msra.mxu0 %v5226
        %5565 = vmatprep.subr.bf16.mxu0 %v5229
        %5566 = vmatpush1.bf16.msra.mxu0 %v5228
        %5567 = vmatprep.subr.bf16.mxu0 %v5231
        %5568 = vmatpush1.bf16.msra.mxu0 %v5230
        %5569 = vmatprep.subr.bf16.mxu0 %v5233
        %5570 = vmatpush1.bf16.msra.mxu0 %v5232
        %5571 = vmatprep.mubr.bf16.mxu0 %v4597
        %5572 = vmatmul.mubr.bf16.gmra.mrb[0].mxu0 %v4596
        %v5573 = vpop.f32.mrb[0].mxu0
        %v5574 = vadd.f32 %v5461, %v5573
        %v5575 = vpop.f32.mrb[0].mxu0
        %v5576 = vadd.f32 %v5463, %v5575
        %v5577 = vpop.f32.mrb[0].mxu0
        %v5578 = vadd.f32 %v5465, %v5577
        %v5579 = vpop.f32.mrb[0].mxu0
        %v5580 = vadd.f32 %v5467, %v5579
        %5581 = vmatprep.mubr.bf16.mxu0 %v4605
        %5582 = vmatmul.mubr.bf16.gmra.mrb[0].mxu0 %v4604
        %v5583 = vpop.f32.mrb[0].mxu0
        %v5584 = vadd.f32 %v5471, %v5583
        %v5585 = vpop.f32.mrb[0].mxu0
        %v5586 = vadd.f32 %v5473, %v5585
        %v5587 = vpop.f32.mrb[0].mxu0
        %v5588 = vadd.f32 %v5475, %v5587
        %v5589 = vpop.f32.mrb[0].mxu0
        %v5590 = vadd.f32 %v5477, %v5589
        %5591 = vmatprep.mubr.bf16.mxu0 %v4613
        %5592 = vmatmul.mubr.bf16.gmra.mrb[0].mxu0 %v4612
        %v5593 = vpop.f32.mrb[0].mxu0
        %v5594 = vadd.f32 %v5481, %v5593
        %v5595 = vpop.f32.mrb[0].mxu0
        %v5596 = vadd.f32 %v5483, %v5595
        %v5597 = vpop.f32.mrb[0].mxu0
        %v5598 = vadd.f32 %v5485, %v5597
        %v5599 = vpop.f32.mrb[0].mxu0
        %v5600 = vadd.f32 %v5487, %v5599
        %5601 = vmatprep.mubr.bf16.mxu0 %v4621
        %5602 = vmatmul.mubr.bf16.gmra.mrb[0].mxu0 %v4620
        %v5603 = vpop.f32.mrb[0].mxu0
        %v5604 = vadd.f32 %v5491, %v5603
        %v5605 = vpop.f32.mrb[0].mxu0
        %v5606 = vadd.f32 %v5493, %v5605
        %v5607 = vpop.f32.mrb[0].mxu0
        %v5608 = vadd.f32 %v5495, %v5607
        %v5609 = vpop.f32.mrb[0].mxu0
        %v5610 = vadd.f32 %v5497, %v5609
        %5611 = vmatprep.mubr.bf16.mxu0 %v4629
        %5612 = vmatmul.mubr.bf16.gmra.mrb[0].mxu0 %v4628
        %v5613 = vpop.f32.mrb[0].mxu0
        %v5614 = vadd.f32 %v5501, %v5613
        %v5615 = vpop.f32.mrb[0].mxu0
        %v5616 = vadd.f32 %v5503, %v5615
        %v5617 = vpop.f32.mrb[0].mxu0
        %v5618 = vadd.f32 %v5505, %v5617
        %v5619 = vpop.f32.mrb[0].mxu0
        %v5620 = vadd.f32 %v5507, %v5619
        %5621 = vmatprep.mubr.bf16.mxu0 %v4637
        %5622 = vmatmul.mubr.bf16.gmra.mrb[0].mxu0 %v4636
        %v5623 = vpop.f32.mrb[0].mxu0
        %v5624 = vadd.f32 %v5511, %v5623
        %v5625 = vpop.f32.mrb[0].mxu0
        %v5626 = vadd.f32 %v5513, %v5625
        %v5627 = vpop.f32.mrb[0].mxu0
        %v5628 = vadd.f32 %v5515, %v5627
        %v5629 = vpop.f32.mrb[0].mxu0
        %v5630 = vadd.f32 %v5517, %v5629
        %5631 = vmatprep.mubr.bf16.mxu0 %v4645
        %5632 = vmatmul.mubr.bf16.gmra.mrb[0].mxu0 %v4644
        %v5633 = vpop.f32.mrb[0].mxu0
        %v5634 = vadd.f32 %v5521, %v5633
        %v5635 = vpop.f32.mrb[0].mxu0
        %v5636 = vadd.f32 %v5523, %v5635
        %v5637 = vpop.f32.mrb[0].mxu0
        %v5638 = vadd.f32 %v5525, %v5637
        %v5639 = vpop.f32.mrb[0].mxu0
        %v5640 = vadd.f32 %v5527, %v5639
        %5641 = vmatprep.mubr.bf16.mxu0 %v4653
        %5642 = vmatmul.mubr.bf16.gmra.mrb[0].mxu0 %v4652
        %v5643 = vpop.f32.mrb[0].mxu0
        %v5644 = vadd.f32 %v5531, %v5643
        %v5645 = vpop.f32.mrb[0].mxu0
        %v5646 = vadd.f32 %v5533, %v5645
        %v5647 = vpop.f32.mrb[0].mxu0
        %v5648 = vadd.f32 %v5535, %v5647
        %v5649 = vpop.f32.mrb[0].mxu0
        %v5650 = vadd.f32 %v5537, %v5649
        %5651 = vdwg.mxu0
        %5652 = vmatprep.subr.bf16.mxu0 %v5235
        %5653 = vmatpush1.bf16.msra.mxu0 %v5234
        %5654 = vmatprep.subr.bf16.mxu0 %v5237
        %5655 = vmatpush1.bf16.msra.mxu0 %v5236
        %5656 = vmatprep.subr.bf16.mxu0 %v5239
        %5657 = vmatpush1.bf16.msra.mxu0 %v5238
        %5658 = vmatprep.subr.bf16.mxu0 %v5241
        %5659 = vmatpush1.bf16.msra.mxu0 %v5240
        %5660 = vmatprep.subr.bf16.mxu0 %v5243
        %5661 = vmatpush1.bf16.msra.mxu0 %v5242
        %5662 = vmatprep.subr.bf16.mxu0 %v5245
        %5663 = vmatpush1.bf16.msra.mxu0 %v5244
        %5664 = vmatprep.subr.bf16.mxu0 %v5247
        %5665 = vmatpush1.bf16.msra.mxu0 %v5246
        %5666 = vmatprep.subr.bf16.mxu0 %v5249
        %5667 = vmatpush1.bf16.msra.mxu0 %v5248
        %5668 = vmatprep.subr.bf16.mxu0 %v5251
        %5669 = vmatpush1.bf16.msra.mxu0 %v5250
        %5670 = vmatprep.subr.bf16.mxu0 %v5253
        %5671 = vmatpush1.bf16.msra.mxu0 %v5252
        %5672 = vmatprep.subr.bf16.mxu0 %v5255
        %5673 = vmatpush1.bf16.msra.mxu0 %v5254
        %5674 = vmatprep.subr.bf16.mxu0 %v5257
        %5675 = vmatpush1.bf16.msra.mxu0 %v5256
        %5676 = vmatprep.subr.bf16.mxu0 %v5259
        %5677 = vmatpush1.bf16.msra.mxu0 %v5258
        %5678 = vmatprep.subr.bf16.mxu0 %v5261
        %5679 = vmatpush1.bf16.msra.mxu0 %v5260
        %5680 = vmatprep.subr.bf16.mxu0 %v5263
        %5681 = vmatpush1.bf16.msra.mxu0 %v5262
        %5682 = vmatprep.subr.bf16.mxu0 %v5265
        %5683 = vmatpush1.bf16.msra.mxu0 %v5264
        %5684 = vmatprep.mubr.bf16.mxu0 %v4599
        %5685 = vmatmul.mubr.bf16.gmra.mrb[0].mxu0 %v4598
        %v5686 = vpop.f32.mrb[0].mxu0
        %v5687 = vadd.f32 %v5574, %v5686
        %v5688 = vpop.f32.mrb[0].mxu0
        %v5689 = vadd.f32 %v5576, %v5688
        %v5690 = vpop.f32.mrb[0].mxu0
        %v5691 = vadd.f32 %v5578, %v5690
        %v5692 = vpop.f32.mrb[0].mxu0
        %v5693 = vadd.f32 %v5580, %v5692
        %5694 = vmatprep.mubr.bf16.mxu0 %v4607
        %5695 = vmatmul.mubr.bf16.gmra.mrb[0].mxu0 %v4606
        %v5696 = vpop.f32.mrb[0].mxu0
        %v5697 = vadd.f32 %v5584, %v5696
        %v5698 = vpop.f32.mrb[0].mxu0
        %v5699 = vadd.f32 %v5586, %v5698
        %v5700 = vpop.f32.mrb[0].mxu0
        %v5701 = vadd.f32 %v5588, %v5700
        %v5702 = vpop.f32.mrb[0].mxu0
        %v5703 = vadd.f32 %v5590, %v5702
        %5704 = vmatprep.mubr.bf16.mxu0 %v4615
        %5705 = vmatmul.mubr.bf16.gmra.mrb[0].mxu0 %v4614
        %v5706 = vpop.f32.mrb[0].mxu0
        %v5707 = vadd.f32 %v5594, %v5706
        %v5708 = vpop.f32.mrb[0].mxu0
        %v5709 = vadd.f32 %v5596, %v5708
        %v5710 = vpop.f32.mrb[0].mxu0
        %v5711 = vadd.f32 %v5598, %v5710
        %v5712 = vpop.f32.mrb[0].mxu0
        %v5713 = vadd.f32 %v5600, %v5712
        %5714 = vmatprep.mubr.bf16.mxu0 %v4623
        %5715 = vmatmul.mubr.bf16.gmra.mrb[0].mxu0 %v4622
        %v5716 = vpop.f32.mrb[0].mxu0
        %v5717 = vadd.f32 %v5604, %v5716
        %v5718 = vpop.f32.mrb[0].mxu0
        %v5719 = vadd.f32 %v5606, %v5718
        %v5720 = vpop.f32.mrb[0].mxu0
        %v5721 = vadd.f32 %v5608, %v5720
        %v5722 = vpop.f32.mrb[0].mxu0
        %v5723 = vadd.f32 %v5610, %v5722
        %5724 = vmatprep.mubr.bf16.mxu0 %v4631
        %5725 = vmatmul.mubr.bf16.gmra.mrb[0].mxu0 %v4630
        %v5726 = vpop.f32.mrb[0].mxu0
        %v5727 = vadd.f32 %v5614, %v5726
        %v5728 = vpop.f32.mrb[0].mxu0
        %v5729 = vadd.f32 %v5616, %v5728
        %v5730 = vpop.f32.mrb[0].mxu0
        %v5731 = vadd.f32 %v5618, %v5730
        %v5732 = vpop.f32.mrb[0].mxu0
        %v5733 = vadd.f32 %v5620, %v5732
        %5734 = vmatprep.mubr.bf16.mxu0 %v4639
        %5735 = vmatmul.mubr.bf16.gmra.mrb[0].mxu0 %v4638
        %v5736 = vpop.f32.mrb[0].mxu0
        %v5737 = vadd.f32 %v5624, %v5736
        %v5738 = vpop.f32.mrb[0].mxu0
        %v5739 = vadd.f32 %v5626, %v5738
        %v5740 = vpop.f32.mrb[0].mxu0
        %v5741 = vadd.f32 %v5628, %v5740
        %v5742 = vpop.f32.mrb[0].mxu0
        %v5743 = vadd.f32 %v5630, %v5742
        %5744 = vmatprep.mubr.bf16.mxu0 %v4647
        %5745 = vmatmul.mubr.bf16.gmra.mrb[0].mxu0 %v4646
        %v5746 = vpop.f32.mrb[0].mxu0
        %v5747 = vadd.f32 %v5634, %v5746
        %v5748 = vpop.f32.mrb[0].mxu0
        %v5749 = vadd.f32 %v5636, %v5748
        %v5750 = vpop.f32.mrb[0].mxu0
        %v5751 = vadd.f32 %v5638, %v5750
        %v5752 = vpop.f32.mrb[0].mxu0
        %v5753 = vadd.f32 %v5640, %v5752
        %5754 = vmatprep.mubr.bf16.mxu0 %v4655
        %5755 = vmatmul.mubr.bf16.gmra.mrb[0].mxu0 %v4654
        %v5756 = vpop.f32.mrb[0].mxu0
        %v5757 = vadd.f32 %v5644, %v5756
        %v5758 = vpop.f32.mrb[0].mxu0
        %v5759 = vadd.f32 %v5646, %v5758
        %v5760 = vpop.f32.mrb[0].mxu0
        %v5761 = vadd.f32 %v5648, %v5760
        %v5762 = vpop.f32.mrb[0].mxu0
        %v5763 = vadd.f32 %v5650, %v5762
        %5764 = vdwg.mxu0
        %5765 = vmatprep.subr.bf16.mxu0 %v5267
        %5766 = vmatpush1.bf16.msra.mxu0 %v5266
        %5767 = vmatprep.subr.bf16.mxu0 %v5269
        %5768 = vmatpush1.bf16.msra.mxu0 %v5268
        %5769 = vmatprep.subr.bf16.mxu0 %v5271
        %5770 = vmatpush1.bf16.msra.mxu0 %v5270
        %5771 = vmatprep.subr.bf16.mxu0 %v5273
        %5772 = vmatpush1.bf16.msra.mxu0 %v5272
        %5773 = vmatprep.subr.bf16.mxu0 %v5275
        %5774 = vmatpush1.bf16.msra.mxu0 %v5274
        %5775 = vmatprep.subr.bf16.mxu0 %v5277
        %5776 = vmatpush1.bf16.msra.mxu0 %v5276
        %5777 = vmatprep.subr.bf16.mxu0 %v5279
        %5778 = vmatpush1.bf16.msra.mxu0 %v5278
        %5779 = vmatprep.subr.bf16.mxu0 %v5281
        %5780 = vmatpush1.bf16.msra.mxu0 %v5280
        %5781 = vmatprep.subr.bf16.mxu0 %v5283
        %5782 = vmatpush1.bf16.msra.mxu0 %v5282
        %5783 = vmatprep.subr.bf16.mxu0 %v5285
        %5784 = vmatpush1.bf16.msra.mxu0 %v5284
        %5785 = vmatprep.subr.bf16.mxu0 %v5287
        %5786 = vmatpush1.bf16.msra.mxu0 %v5286
        %5787 = vmatprep.subr.bf16.mxu0 %v5289
        %5788 = vmatpush1.bf16.msra.mxu0 %v5288
        %5789 = vmatprep.subr.bf16.mxu0 %v5291
        %5790 = vmatpush1.bf16.msra.mxu0 %v5290
        %5791 = vmatprep.subr.bf16.mxu0 %v5293
        %5792 = vmatpush1.bf16.msra.mxu0 %v5292
        %5793 = vmatprep.subr.bf16.mxu0 %v5295
        %5794 = vmatpush1.bf16.msra.mxu0 %v5294
        %5795 = vmatprep.subr.bf16.mxu0 %v5297
        %5796 = vmatpush1.bf16.msra.mxu0 %v5296
        %5797 = vmatprep.mubr.bf16.mxu0 %v4601
        %5798 = vmatmul.mubr.bf16.gmra.mrb[0].mxu0 %v4600
        %v5799 = vpop.f32.mrb[0].mxu0
        %v5800 = vadd.f32 %v5687, %v5799
        %v5801 = vpop.f32.mrb[0].mxu0
        %v5802 = vadd.f32 %v5689, %v5801
        %v5803 = vpop.f32.mrb[0].mxu0
        %v5804 = vadd.f32 %v5691, %v5803
        %v5805 = vpop.f32.mrb[0].mxu0
        %v5806 = vadd.f32 %v5693, %v5805
        %5807 = vmatprep.mubr.bf16.mxu0 %v4609
        %5808 = vmatmul.mubr.bf16.gmra.mrb[0].mxu0 %v4608
        %v5809 = vpop.f32.mrb[0].mxu0
        %v5810 = vadd.f32 %v5697, %v5809
        %v5811 = vpop.f32.mrb[0].mxu0
        %v5812 = vadd.f32 %v5699, %v5811
        %v5813 = vpop.f32.mrb[0].mxu0
        %v5814 = vadd.f32 %v5701, %v5813
        %v5815 = vpop.f32.mrb[0].mxu0
        %v5816 = vadd.f32 %v5703, %v5815
        %5817 = vmatprep.mubr.bf16.mxu0 %v4617
        %5818 = vmatmul.mubr.bf16.gmra.mrb[0].mxu0 %v4616
        %v5819 = vpop.f32.mrb[0].mxu0
        %v5820 = vadd.f32 %v5707, %v5819
        %v5821 = vpop.f32.mrb[0].mxu0
        %v5822 = vadd.f32 %v5709, %v5821
        %v5823 = vpop.f32.mrb[0].mxu0
        %v5824 = vadd.f32 %v5711, %v5823
        %v5825 = vpop.f32.mrb[0].mxu0
        %v5826 = vadd.f32 %v5713, %v5825
        %5827 = vmatprep.mubr.bf16.mxu0 %v4625
        %5828 = vmatmul.mubr.bf16.gmra.mrb[0].mxu0 %v4624
        %v5829 = vpop.f32.mrb[0].mxu0
        %v5830 = vadd.f32 %v5717, %v5829
        %v5831 = vpop.f32.mrb[0].mxu0
        %v5832 = vadd.f32 %v5719, %v5831
        %v5833 = vpop.f32.mrb[0].mxu0
        %v5834 = vadd.f32 %v5721, %v5833
        %v5835 = vpop.f32.mrb[0].mxu0
        %v5836 = vadd.f32 %v5723, %v5835
        %5837 = vmatprep.mubr.bf16.mxu0 %v4633
        %5838 = vmatmul.mubr.bf16.gmra.mrb[0].mxu0 %v4632
        %v5839 = vpop.f32.mrb[0].mxu0
        %v5840 = vadd.f32 %v5727, %v5839
        %v5841 = vpop.f32.mrb[0].mxu0
        %v5842 = vadd.f32 %v5729, %v5841
        %v5843 = vpop.f32.mrb[0].mxu0
        %v5844 = vadd.f32 %v5731, %v5843
        %v5845 = vpop.f32.mrb[0].mxu0
        %v5846 = vadd.f32 %v5733, %v5845
        %5847 = vmatprep.mubr.bf16.mxu0 %v4641
        %5848 = vmatmul.mubr.bf16.gmra.mrb[0].mxu0 %v4640
        %v5849 = vpop.f32.mrb[0].mxu0
        %v5850 = vadd.f32 %v5737, %v5849
        %v5851 = vpop.f32.mrb[0].mxu0
        %v5852 = vadd.f32 %v5739, %v5851
        %v5853 = vpop.f32.mrb[0].mxu0
        %v5854 = vadd.f32 %v5741, %v5853
        %v5855 = vpop.f32.mrb[0].mxu0
        %v5856 = vadd.f32 %v5743, %v5855
        %5857 = vmatprep.mubr.bf16.mxu0 %v4649
        %5858 = vmatmul.mubr.bf16.gmra.mrb[0].mxu0 %v4648
        %v5859 = vpop.f32.mrb[0].mxu0
        %v5860 = vadd.f32 %v5747, %v5859
        %v5861 = vpop.f32.mrb[0].mxu0
        %v5862 = vadd.f32 %v5749, %v5861
        %v5863 = vpop.f32.mrb[0].mxu0
        %v5864 = vadd.f32 %v5751, %v5863
        %v5865 = vpop.f32.mrb[0].mxu0
        %v5866 = vadd.f32 %v5753, %v5865
        %5867 = vmatprep.mubr.bf16.mxu0 %v4657
        %5868 = vmatmul.mubr.bf16.gmra.mrb[0].mxu0 %v4656
        %v5869 = vpop.f32.mrb[0].mxu0
        %v5870 = vadd.f32 %v5757, %v5869
        %v5871 = vpop.f32.mrb[0].mxu0
        %v5872 = vadd.f32 %v5759, %v5871
        %v5873 = vpop.f32.mrb[0].mxu0
        %v5874 = vadd.f32 %v5761, %v5873
        %v5875 = vpop.f32.mrb[0].mxu0
        %v5876 = vadd.f32 %v5763, %v5875
        %5877 = vdwg.mxu0
        %v5878 = vadd.f32 %v2910, %v5800
        %v5879 = vadd.f32 %v2911, %v5802
        %v5880 = vadd.f32 %v2912, %v5804
        %v5881 = vadd.f32 %v2913, %v5806
        %v5882 = vadd.f32 %v2914, %v5810
        %v5883 = vadd.f32 %v2915, %v5812
        %v5884 = vadd.f32 %v2916, %v5814
        %v5885 = vadd.f32 %v2917, %v5816
        %v5886 = vadd.f32 %v2918, %v5820
        %v5887 = vadd.f32 %v2919, %v5822
        %v5888 = vadd.f32 %v2920, %v5824
        %v5889 = vadd.f32 %v2921, %v5826
        %v5890 = vadd.f32 %v2922, %v5830
        %v5891 = vadd.f32 %v2923, %v5832
        %v5892 = vadd.f32 %v2924, %v5834
        %v5893 = vadd.f32 %v2925, %v5836
        %v5894 = vadd.f32 %v2926, %v5840
        %v5895 = vadd.f32 %v2927, %v5842
        %v5896 = vadd.f32 %v2928, %v5844
        %v5897 = vadd.f32 %v2929, %v5846
        %v5898 = vadd.f32 %v2930, %v5850
        %v5899 = vadd.f32 %v2931, %v5852
        %v5900 = vadd.f32 %v2932, %v5854
        %v5901 = vadd.f32 %v2933, %v5856
        %v5902 = vadd.f32 %v2934, %v5860
        %v5903 = vadd.f32 %v2935, %v5862
        %v5904 = vadd.f32 %v2936, %v5864
        %v5905 = vadd.f32 %v2937, %v5866
        %v5906 = vadd.f32 %v2938, %v5870
        %v5907 = vadd.f32 %v2939, %v5872
        %v5908 = vadd.f32 %v2940, %v5874
        %v5909 = vadd.f32 %v2941, %v5876
        %5910 = vst [vmem:[%s383] sm:$0xff] %v5878
        %5911 = vst [vmem:[%s383 + $0x8] sm:$0xff] %v5879
        %5912 = vst [vmem:[%s383 + $0x10] sm:$0xff] %v5880
        %5913 = vst [vmem:[%s383 + $0x18] sm:$0xff] %v5881
        %5914 = vst [vmem:[%s383 + $0x20] sm:$0xff] %v5882
        %5915 = vst [vmem:[%s383 + $0x28] sm:$0xff] %v5883
        %5916 = vst [vmem:[%s383 + $0x30] sm:$0xff] %v5884
        %5917 = vst [vmem:[%s383 + $0x38] sm:$0xff] %v5885
        %5918 = vst [vmem:[%s383 + $0x40] sm:$0xff] %v5886
        %5919 = vst [vmem:[%s383 + $0x48] sm:$0xff] %v5887
        %5920 = vst [vmem:[%s383 + $0x50] sm:$0xff] %v5888
        %5921 = vst [vmem:[%s383 + $0x58] sm:$0xff] %v5889
        %5922 = vst [vmem:[%s383 + $0x60] sm:$0xff] %v5890
        %5923 = vst [vmem:[%s383 + $0x68] sm:$0xff] %v5891
        %5924 = vst [vmem:[%s383 + $0x70] sm:$0xff] %v5892
        %5925 = vst [vmem:[%s383 + $0x78] sm:$0xff] %v5893
        %5926 = vst [vmem:[%s383 + $0x80] sm:$0xff] %v5894
        %5927 = vst [vmem:[%s383 + $0x88] sm:$0xff] %v5895
        %5928 = vst [vmem:[%s383 + $0x90] sm:$0xff] %v5896
        %5929 = vst [vmem:[%s383 + $0x98] sm:$0xff] %v5897
        %5930 = vst [vmem:[%s383 + $0xa0] sm:$0xff] %v5898
        %5931 = vst [vmem:[%s383 + $0xa8] sm:$0xff] %v5899
        %5932 = vst [vmem:[%s383 + $0xb0] sm:$0xff] %v5900
        %5933 = vst [vmem:[%s383 + $0xb8] sm:$0xff] %v5901
        %5934 = vst [vmem:[%s383 + $0xc0] sm:$0xff] %v5902
        %5935 = vst [vmem:[%s383 + $0xc8] sm:$0xff] %v5903
        %5936 = vst [vmem:[%s383 + $0xd0] sm:$0xff] %v5904
        %5937 = vst [vmem:[%s383 + $0xd8] sm:$0xff] %v5905
        %5938 = vst [vmem:[%s383 + $0xe0] sm:$0xff] %v5906
        %5939 = vst [vmem:[%s383 + $0xe8] sm:$0xff] %v5907
        %5940 = vst [vmem:[%s383 + $0xf0] sm:$0xff] %v5908
        %5941 = vst [vmem:[%s383 + $0xf8] sm:$0xff] %v5909
        %s5942 = sand.u32 %s187, 1
        %s5943 = scalar_lea.sflag [#allocation6], %s5942
        %s5944 = sand.u32 %s187, 1
        %s5945 = smul.addr %s5944, 256
        %s5946 = scalar_lea.vmem [#allocation16], %s5945
        // Predicated region
        $region84: #{block_forward.1} parent=47 // pred_check
          %p5947 = pneg %p197
        $region85: #{block_forward.1} parent=47 // pred_check_branch
          %5949 = sbr.rel (%p5947) target = $region87
        $region86: #{block_forward.1} parent=47 // pred_region
          %s5951 = ssub.s32 4096, 4096
          %5952 = vsyncadd %s5943, %s5951
          %s5953 = smul.addr %s27, 32
          %s5954 = smul.addr %s5953, 128
          %s5955 = scalar_lea.hbm %s7, %s5954
          %s5956 = sshll.u32 %s5946, 4
          %s5957 = int_to_ptr.vmem [resolvable:$true] %s5956
          %5962 = dma.vmem_to_hbm [thread:$0]  %s5957, 4096, %s5955, %s5943, 256, 256, 16
        $region87: #{block_forward.1} parent=47 // pred_fallthru
          _
      $region48: #{block_forward.1} parent=5 // pred_fallthru
        _
      %p5963 = scmp.le.s32.totalorder 2, %s22
      // Predicated region
      $region88: #{block_forward.1} parent=5 // pred_check
        %p5964 = pneg %p5963
      $region89: #{block_forward.1} parent=5 // pred_check_branch
        %5966 = sbr.rel (%p5964) target = $region91
      $region90: #{block_forward.1} parent=5 // pred_region
        %s5967 = ssub.s32 %s22, 2
        // Predicated region
        $region92: #{block_forward.1} parent=90 // pred_check
          %p5968 = pneg %p203
        $region93: #{block_forward.1} parent=90 // pred_check_branch
          %5970 = sbr.rel (%p5968) target = $region95
        $region94: #{block_forward.1} parent=90 // pred_region
          %s5971 = sand.u32 %s188, 1
          %s5972 = scalar_lea.sflag [#allocation6], %s5971
          %s5973 = sand.u32 %s188, 1
          %s5974 = smul.addr %s5973, 256
          %s5975 = scalar_lea.vmem [#allocation16], %s5974
          %5976 = dma.done %s5972, 4096
        $region95: #{block_forward.1} parent=90 // pred_fallthru
          _
      $region91: #{block_forward.1} parent=5 // pred_fallthru
        _
    $region6: #{block_forward.1} parent=1 // loop_footer
      %s26 = sadd.s32 1, %s22
    $region7: #{block_forward.1} parent=1 // loop_footer_branch
      %21 = sbr.rel target = $region3
    $region8: #{block_forward.1} parent=1 // loop_exit
      _
    %5977 = vsyncpa [#allocation5], 1
    %s5978 = scalar_lea.sflag [#allocation5], 1
    %5979 = vsyncpa %s5978, 1
    %5980 = vsyncpa [#allocation8], 1
    %5981 = vsyncpa [#allocation11], 1
    %5982 = vsyncpa [#allocation14], 1
    %5983 = vsyncpa [#allocation6], 1
    %s5984 = scalar_lea.sflag [#allocation6], 1
    %5985 = vsyncpa %s5984, 1

</llo_original>
